<compile_context>
chip_gen: v7x
topology: tpu7x:2x2x1
jax: 0.10.0
libtpu: 0.0.40
codegen_flags: <defaults>
</compile_context>

<pallas_src>
import functools
import math

import jax
import jax.numpy as jnp
import numpy as np
from jax.experimental import pallas as pl
from jax.experimental.pallas import tpu as pltpu

_LANE = 128
_SUBLANE = 8


def _round_up(x: int, m: int) -> int:
    return (x + m - 1) // m * m


# --------------------------------------------------------------------------- #
# Parameter preparation (glue, plain JAX) -- mirrors `normalize` + gain scale. #
# --------------------------------------------------------------------------- #
def mp_normalize(w: jax.Array, eps: float = 1e-4) -> jax.Array:
    """torch normalize(): per-sample L2 norm over dims 1..ndim-1, keepdim."""
    w32 = w.astype(jnp.float32)
    reduce_dims = tuple(range(1, w32.ndim))
    norm = jnp.sqrt(jnp.sum(w32 * w32, axis=reduce_dims, keepdims=True))
    alpha = (1.0 / float(np.prod(w32.shape[1:]))) ** 0.5   # norm.numel()/x.numel()
    norm = eps + alpha * norm
    return (w32 / norm).astype(w.dtype)


def prepare_weight(weight: jax.Array, gain, training: bool = True,
                   disable_weight_norm: bool = False) -> jax.Array:
    w = weight.astype(jnp.float32)
    if training and not disable_weight_norm:
        w = mp_normalize(w)
    fan_in = float(np.prod(w.shape[1:]))                    # w[0].numel()
    return w * (gain / math.sqrt(fan_in))


# --------------------------------------------------------------------------- #
# Pallas conv2d kernel ('same' padding, stride 1, groups 1)                    #
# --------------------------------------------------------------------------- #
def _mpconv_kernel(x_ref, w_ref, o_ref, *, TH, W, KH, KW, Cin_p, TCO, full_weight):
    # x_ref : (1, TH+KH-1, W+KW-1, Cin_p)   halo'ed input tile (channels on lanes)
    # w_ref : (n_co or 1, KH*KW, Cin_p, TCO) weight; resident when full_weight
    # o_ref : (1, TH, W, TCO)               lane-dense output tile
    co = pl.program_id(1)
    w_lead = co if full_weight else 0          # dynamic index on an untiled lead dim
    acc = None
    for dy in range(KH):                       # static unroll over all taps
        for dx in range(KW):
            # Load each shifted window straight from the ref: no im2col
            # concatenate and no materialized value-level shifted copies.
            tap = x_ref[0, dy:dy + TH, dx:dx + W, :]         # (TH, W, Cin_p)
            wt = w_ref[w_lead, dy * KW + dx]                 # (Cin_p, TCO)
            contrib = jnp.dot(tap.reshape(TH * W, Cin_p), wt,
                              preferred_element_type=jnp.float32)
            acc = contrib if acc is None else acc + contrib  # f32, no VMEM RMW
    o_ref[...] = acc.reshape(1, TH, W, TCO).astype(o_ref.dtype)


def _vmem_need_bytes(TH, W, KH, KW, Cin_p, Cout_p, TCO, isz, full_weight):
    """Rough VMEM footprint for a (TH,...) tile, incl. double buffers + temps."""
    THh, Wp = TH + KH - 1, W + KW - 1
    c_lane = _round_up(Cin_p, _LANE)           # lane-padded channel footprint
    wp8, w8 = _round_up(Wp, _SUBLANE), _round_up(W, _SUBLANE)
    x_blk = THh * wp8 * c_lane * isz
    w_cols = Cout_p if full_weight else TCO
    w_blk = KH * KW * _round_up(Cin_p, _SUBLANE) * w_cols * isz
    o_blk = TH * w8 * TCO * isz
    temps = (2 * TH * W * TCO * 4              # f32 accumulator + dot result
             + TH * w8 * c_lane * isz)         # one tap slab in flight
    return 2 * x_blk + 2 * w_blk + 2 * o_blk + temps


def _choose_tile_h(H, W, KH, KW, Cin_p, Cout_p, TCO, isz, full_weight, cap):
    """Largest row tile fitting the VMEM budget; no divisor-of-H requirement."""
    def need(th):
        return _vmem_need_bytes(th, W, KH, KW, Cin_p, Cout_p, TCO, isz, full_weight)
    if need(H) <= cap:
        return H                               # whole image per tile: no halo gather
    th = 1
    for t in range(H - 1, 0, -1):
        if need(t) <= cap:
            th = t
            break
    n_tiles = -(-H // th)
    return -(-H // n_tiles)                    # minimize padded rows in last tile


def mpconv_forward(x_nchw: jax.Array, weight: jax.Array, gain=1.0,
                   training: bool = True,
                   disable_weight_norm: bool = False) -> jax.Array:
    """MPConv.forward.  x_nchw: (N, Cin, H, W); weight: (Cout, Cin, KH, KW)."""
    w = prepare_weight(weight, gain, training, disable_weight_norm)

    if w.ndim == 2:
        # Linear branch (kernel=()) -- unreachable with a 2-tuple kernel.
        return x_nchw @ w.astype(x_nchw.dtype).T

    N, Cin, H, W = x_nchw.shape
    Cout, Cin_w, KH, KW = w.shape
    assert Cin_w == Cin, "groups != 1 not supported (module default groups=1)"
    assert KH % 2 == 1 and KW % 2 == 1, "even kernel sizes not supported"
    # TODO(synk): even kernels / stride>1 / groups>1 not handled (module defaults).

    dtype = x_nchw.dtype                       # bf16 callers get a bf16 kernel,
    isz = jnp.dtype(dtype).itemsize            # f32 accumulation either way.
    ph, pw = KH // 2, KW // 2

    # Minimal channel padding (sublane granule) -- avoids the 32x traffic/MXU
    # blow-up of padding a Cin=4 first layer all the way to 128 lanes.
    Cin_p = _round_up(Cin, _SUBLANE)
    Cout_p = _round_up(Cout, _LANE)
    TCO = 256 if Cout_p % 256 == 0 else _LANE  # match v6e/v7x 256-wide MXU
    n_co = Cout_p // TCO

    # Per-generation VMEM budget (v5e/v6e ~128 MiB physical, v7x 64 MiB per TC).
    try:
        vmem_cap = int(pltpu.get_tpu_info().vmem_capacity_bytes)
    except Exception:  # pragma: no cover - conservative fallback
        vmem_cap = 64 << 20
    if vmem_cap >= (96 << 20):
        tile_cap, vmem_limit_max, w_budget = 28 << 20, 96 << 20, 16 << 20
    else:
        tile_cap, vmem_limit_max, w_budget = 14 << 20, 48 << 20, 8 << 20

    w_full_bytes = 2 * KH * KW * _round_up(Cin_p, _SUBLANE) * Cout_p * isz
    full_weight = w_full_bytes <= w_budget     # keep the whole weight resident?

    TH = _choose_tile_h(H, W, KH, KW, Cin_p, Cout_p, TCO, isz, full_weight, tile_cap)
    nH = -(-H // TH)
    H_eff = nH * TH
    THh, Wp = TH + KH - 1, W + KW - 1

    # ---- activation prep: NCHW->NHWC, zero pad (spatial halo, bottom rows to
    #      a multiple of TH, channels to Cin_p).
    # TODO(synk): keep activations NHWC end-to-end to drop these transposes.
    x_nhwc = jnp.transpose(x_nchw, (0, 2, 3, 1))
    x_pad = jnp.pad(x_nhwc, ((0, 0), (ph, ph + (H_eff - H)), (pw, pw),
                             (0, Cin_p - Cin)))
    if nH == 1:
        x_in = x_pad                                         # (N, THh, Wp, Cin_p)
        NB = N
    else:
        # TODO(synk): replace this halo-duplicating gather with an in-kernel
        # make_async_copy window fetch from the un-duplicated padded array.
        row_idx = jnp.arange(nH)[:, None] * TH + jnp.arange(THh)[None, :]
        x_in = jnp.take(x_pad, row_idx, axis=1).reshape(N * nH, THh, Wp, Cin_p)
        NB = N * nH

    # ---- weight prep: (Cout,Cin,KH,KW) -> (n_co, KH*KW, Cin_p, TCO).
    w_hwio = jnp.transpose(w, (2, 3, 1, 0))                  # (KH,KW,Cin,Cout)
    w_hwio = jnp.pad(w_hwio, ((0, 0), (0, 0), (0, Cin_p - Cin),
                              (0, Cout_p - Cout)))
    w_mat = (w_hwio.reshape(KH * KW, Cin_p, n_co, TCO)
             .transpose(2, 0, 1, 3)
             .astype(dtype))                                 # (n_co,KH*KW,Cin_p,TCO)

    if full_weight:
        # Constant block index -> DMA'd once, VMEM-resident for the whole grid.
        w_spec = pl.BlockSpec((n_co, KH * KW, Cin_p, TCO), lambda b, co: (0, 0, 0, 0))
    else:
        w_spec = pl.BlockSpec((1, KH * KW, Cin_p, TCO), lambda b, co: (co, 0, 0, 0))

    kernel = functools.partial(_mpconv_kernel, TH=TH, W=W, KH=KH, KW=KW,
                               Cin_p=Cin_p, TCO=TCO, full_weight=full_weight)

    need = _vmem_need_bytes(TH, W, KH, KW, Cin_p, Cout_p, TCO, isz, full_weight)
    vmem_limit = int(min(vmem_limit_max, max(32 << 20, need + (8 << 20))))

    flops = 2 * N * H_eff * W * KH * KW * Cin_p * Cout_p
    bytes_accessed = (x_in.size * isz
                      + w_mat.size * isz * (1 if full_weight else NB)
                      + NB * TH * W * Cout_p * isz)

    out_tiles = pl.pallas_call(
        kernel,
        out_shape=jax.ShapeDtypeStruct((NB, TH, W, Cout_p), dtype),
        grid_spec=pltpu.PrefetchScalarGridSpec(
            num_scalar_prefetch=0,
            # Batch/row-tile axis OUTERMOST: the x block index is constant
            # across the inner Cout-tile axis, so x is streamed from HBM once
            # and reused for every Cout tile (and v7x megacore shards the
            # large NB axis).
            grid=(NB, n_co),
            in_specs=[
                pl.BlockSpec((1, THh, Wp, Cin_p), lambda b, co: (b, 0, 0, 0)),
                w_spec,
            ],
            out_specs=pl.BlockSpec((1, TH, W, TCO), lambda b, co: (b, 0, 0, co)),
        ),
        compiler_params=pltpu.CompilerParams(
            dimension_semantics=("parallel", "parallel"),
            vmem_limit_bytes=vmem_limit),
        cost_estimate=pl.CostEstimate(flops=int(flops), transcendentals=0,
                                      bytes_accessed=int(bytes_accessed)),
    )(x_in, w_mat)

    # (NB, TH, W, Cout_p) -> (N, H, W, Cout) -> NCHW
    out = out_tiles.reshape(N, H_eff, W, Cout_p)[:, :H, :, :Cout]
    return jnp.transpose(out, (0, 3, 1, 2))


# --------------------------------------------------------------------------- #
# Demo / self-check                                                            #
# --------------------------------------------------------------------------- #
def _reference(x, weight, gain):
    w_ref = prepare_weight(weight, gain).astype(x.dtype)
    KH, KW = w_ref.shape[-2:]
    return jax.lax.conv_general_dilated(
        x, w_ref, window_strides=(1, 1),
        padding=((KH // 2, KH // 2), (KW // 2, KW // 2)),
        dimension_numbers=("NCHW", "OIHW", "NCHW"))


if __name__ == "__main__":
    key = jax.random.PRNGKey(0)
    kx1, kw1, kx2, kw2 = jax.random.split(key, 4)

    # Case 1: tiny-Cin first-layer style conv (exercises the small-Cin path).
    N, Cin, H, W = 2, 4, 16, 16
    Cout, KH, KW = 8, 3, 3
    x1 = jax.random.normal(kx1, (N, Cin, H, W), dtype=jnp.float32)
    w1 = jax.random.normal(kw1, (Cout, Cin, KH, KW), dtype=jnp.float32)
    y1 = jax.block_until_ready(mpconv_forward(x1, w1, 1.0))
    y1_ref = _reference(x1, w1, 1.0)
    assert y1.shape == (N, Cout, H, W)
    assert jnp.allclose(y1, y1_ref, rtol=1e-3, atol=1e-3), (
        float(jnp.max(jnp.abs(y1 - y1_ref))))

    # Case 2: lane-dense channels + multiple Cout tiles (exercises co indexing).
    N2, Cin2, H2, W2, Cout2 = 2, 128, 16, 16, 384
    x2 = jax.random.normal(kx2, (N2, Cin2, H2, W2), dtype=jnp.float32)
    w2 = jax.random.normal(kw2, (Cout2, Cin2, KH, KW), dtype=jnp.float32)
    y2 = jax.block_until_ready(mpconv_forward(x2, w2, 1.0))
    y2_ref = _reference(x2, w2, 1.0)
    assert y2.shape == (N2, Cout2, H2, W2)
    assert jnp.allclose(y2, y2_ref, rtol=1e-3, atol=1e-3), (
        float(jnp.max(jnp.abs(y2 - y2_ref))))

    print("KERNEL_OK")
</pallas_src>

<mosaic_0001>
module attributes {stable_mosaic.version = 11 : i64} {
  func.func @_mpconv_kernel(%arg0: i32, %arg1: i32, %arg2: memref<1x18x18x8xf32, #tpu.memory_space<vmem>>, %arg3: memref<1x9x8x128xf32, #tpu.memory_space<vmem>>, %arg4: memref<1x16x16x128xf32, #tpu.memory_space<vmem>>) attributes {dimension_semantics = [#tpu.dimension_semantics<parallel>, #tpu.dimension_semantics<parallel>], iteration_bounds = array<i64: 2, 1>, scalar_prefetch = 0 : i64, scratch_operands = 0 : i64, tpu.core_type = #tpu.core_type<tc>, window_params = [{transform_indices = @transform_0, window_bounds = array<i64: 1, 18, 18, 8>}, {pipeline_mode = #tpu.pipeline_mode<synchronous>, transform_indices = @transform_1, window_bounds = array<i64: 1, 9, 8, 128>}, {transform_indices = @transform_2, window_bounds = array<i64: 1, 16, 16, 128>}]} {
    %c0 = arith.constant 0 : index
    %c0_0 = arith.constant 0 : index
    %c0_1 = arith.constant 0 : index
    %c0_2 = arith.constant 0 : index
    %0 = vector.load %arg2[%c0, %c0_0, %c0_1, %c0_2] : memref<1x18x18x8xf32, #tpu.memory_space<vmem>>, vector<1x16x16x8xf32>
    %1 = vector.shape_cast %0 : vector<1x16x16x8xf32> to vector<16x16x8xf32>
    %2 = arith.index_cast %arg1 : i32 to index
    %c0_3 = arith.constant 0 : index
    %c0_4 = arith.constant 0 : index
    %c0_5 = arith.constant 0 : index
    %3 = vector.load %arg3[%2, %c0_3, %c0_4, %c0_5] : memref<1x9x8x128xf32, #tpu.memory_space<vmem>>, vector<1x1x8x128xf32>
    %4 = vector.shape_cast %3 : vector<1x1x8x128xf32> to vector<8x128xf32>
    %5 = vector.shape_cast %1 : vector<16x16x8xf32> to vector<256x8xf32>
    %cst = arith.constant dense<0.000000e+00> : vector<256x128xf32>
    %6 = tpu.matmul %5, %4, %cst {dimension_numbers = #tpu.dot_dimension_numbers<[1], [0], [0], [1], [0, 0, 1, 1], [], []>} : vector<256x8xf32>, vector<8x128xf32>, vector<256x128xf32> -> vector<256x128xf32>
    %c0_6 = arith.constant 0 : index
    %c0_7 = arith.constant 0 : index
    %c1 = arith.constant 1 : index
    %c0_8 = arith.constant 0 : index
    %7 = vector.load %arg2[%c0_6, %c0_7, %c1, %c0_8] : memref<1x18x18x8xf32, #tpu.memory_space<vmem>>, vector<1x16x16x8xf32>
    %8 = vector.shape_cast %7 : vector<1x16x16x8xf32> to vector<16x16x8xf32>
    %9 = arith.index_cast %arg1 : i32 to index
    %c1_9 = arith.constant 1 : index
    %c0_10 = arith.constant 0 : index
    %c0_11 = arith.constant 0 : index
    %10 = vector.load %arg3[%9, %c1_9, %c0_10, %c0_11] : memref<1x9x8x128xf32, #tpu.memory_space<vmem>>, vector<1x1x8x128xf32>
    %11 = vector.shape_cast %10 : vector<1x1x8x128xf32> to vector<8x128xf32>
    %12 = vector.shape_cast %8 : vector<16x16x8xf32> to vector<256x8xf32>
    %cst_12 = arith.constant dense<0.000000e+00> : vector<256x128xf32>
    %13 = tpu.matmul %12, %11, %cst_12 {dimension_numbers = #tpu.dot_dimension_numbers<[1], [0], [0], [1], [0, 0, 1, 1], [], []>} : vector<256x8xf32>, vector<8x128xf32>, vector<256x128xf32> -> vector<256x128xf32>
    %14 = arith.addf %6, %13 : vector<256x128xf32>
    %c0_13 = arith.constant 0 : index
    %c0_14 = arith.constant 0 : index
    %c2 = arith.constant 2 : index
    %c0_15 = arith.constant 0 : index
    %15 = vector.load %arg2[%c0_13, %c0_14, %c2, %c0_15] : memref<1x18x18x8xf32, #tpu.memory_space<vmem>>, vector<1x16x16x8xf32>
    %16 = vector.shape_cast %15 : vector<1x16x16x8xf32> to vector<16x16x8xf32>
    %17 = arith.index_cast %arg1 : i32 to index
    %c2_16 = arith.constant 2 : index
    %c0_17 = arith.constant 0 : index
    %c0_18 = arith.constant 0 : index
    %18 = vector.load %arg3[%17, %c2_16, %c0_17, %c0_18] : memref<1x9x8x128xf32, #tpu.memory_space<vmem>>, vector<1x1x8x128xf32>
    %19 = vector.shape_cast %18 : vector<1x1x8x128xf32> to vector<8x128xf32>
    %20 = vector.shape_cast %16 : vector<16x16x8xf32> to vector<256x8xf32>
    %cst_19 = arith.constant dense<0.000000e+00> : vector<256x128xf32>
    %21 = tpu.matmul %20, %19, %cst_19 {dimension_numbers = #tpu.dot_dimension_numbers<[1], [0], [0], [1], [0, 0, 1, 1], [], []>} : vector<256x8xf32>, vector<8x128xf32>, vector<256x128xf32> -> vector<256x128xf32>
    %22 = arith.addf %14, %21 : vector<256x128xf32>
    %c0_20 = arith.constant 0 : index
    %c1_21 = arith.constant 1 : index
    %c0_22 = arith.constant 0 : index
    %c0_23 = arith.constant 0 : index
    %23 = vector.load %arg2[%c0_20, %c1_21, %c0_22, %c0_23] : memref<1x18x18x8xf32, #tpu.memory_space<vmem>>, vector<1x16x16x8xf32>
    %24 = vector.shape_cast %23 : vector<1x16x16x8xf32> to vector<16x16x8xf32>
    %25 = arith.index_cast %arg1 : i32 to index
    %c3 = arith.constant 3 : index
    %c0_24 = arith.constant 0 : index
    %c0_25 = arith.constant 0 : index
    %26 = vector.load %arg3[%25, %c3, %c0_24, %c0_25] : memref<1x9x8x128xf32, #tpu.memory_space<vmem>>, vector<1x1x8x128xf32>
    %27 = vector.shape_cast %26 : vector<1x1x8x128xf32> to vector<8x128xf32>
    %28 = vector.shape_cast %24 : vector<16x16x8xf32> to vector<256x8xf32>
    %cst_26 = arith.constant dense<0.000000e+00> : vector<256x128xf32>
    %29 = tpu.matmul %28, %27, %cst_26 {dimension_numbers = #tpu.dot_dimension_numbers<[1], [0], [0], [1], [0, 0, 1, 1], [], []>} : vector<256x8xf32>, vector<8x128xf32>, vector<256x128xf32> -> vector<256x128xf32>
    %30 = arith.addf %22, %29 : vector<256x128xf32>
    %c0_27 = arith.constant 0 : index
    %c1_28 = arith.constant 1 : index
    %c1_29 = arith.constant 1 : index
    %c0_30 = arith.constant 0 : index
    %31 = vector.load %arg2[%c0_27, %c1_28, %c1_29, %c0_30] : memref<1x18x18x8xf32, #tpu.memory_space<vmem>>, vector<1x16x16x8xf32>
    %32 = vector.shape_cast %31 : vector<1x16x16x8xf32> to vector<16x16x8xf32>
    %33 = arith.index_cast %arg1 : i32 to index
    %c4 = arith.constant 4 : index
    %c0_31 = arith.constant 0 : index
    %c0_32 = arith.constant 0 : index
    %34 = vector.load %arg3[%33, %c4, %c0_31, %c0_32] : memref<1x9x8x128xf32, #tpu.memory_space<vmem>>, vector<1x1x8x128xf32>
    %35 = vector.shape_cast %34 : vector<1x1x8x128xf32> to vector<8x128xf32>
    %36 = vector.shape_cast %32 : vector<16x16x8xf32> to vector<256x8xf32>
    %cst_33 = arith.constant dense<0.000000e+00> : vector<256x128xf32>
    %37 = tpu.matmul %36, %35, %cst_33 {dimension_numbers = #tpu.dot_dimension_numbers<[1], [0], [0], [1], [0, 0, 1, 1], [], []>} : vector<256x8xf32>, vector<8x128xf32>, vector<256x128xf32> -> vector<256x128xf32>
    %38 = arith.addf %30, %37 : vector<256x128xf32>
    %c0_34 = arith.constant 0 : index
    %c1_35 = arith.constant 1 : index
    %c2_36 = arith.constant 2 : index
    %c0_37 = arith.constant 0 : index
    %39 = vector.load %arg2[%c0_34, %c1_35, %c2_36, %c0_37] : memref<1x18x18x8xf32, #tpu.memory_space<vmem>>, vector<1x16x16x8xf32>
    %40 = vector.shape_cast %39 : vector<1x16x16x8xf32> to vector<16x16x8xf32>
    %41 = arith.index_cast %arg1 : i32 to index
    %c5 = arith.constant 5 : index
    %c0_38 = arith.constant 0 : index
    %c0_39 = arith.constant 0 : index
    %42 = vector.load %arg3[%41, %c5, %c0_38, %c0_39] : memref<1x9x8x128xf32, #tpu.memory_space<vmem>>, vector<1x1x8x128xf32>
    %43 = vector.shape_cast %42 : vector<1x1x8x128xf32> to vector<8x128xf32>
    %44 = vector.shape_cast %40 : vector<16x16x8xf32> to vector<256x8xf32>
    %cst_40 = arith.constant dense<0.000000e+00> : vector<256x128xf32>
    %45 = tpu.matmul %44, %43, %cst_40 {dimension_numbers = #tpu.dot_dimension_numbers<[1], [0], [0], [1], [0, 0, 1, 1], [], []>} : vector<256x8xf32>, vector<8x128xf32>, vector<256x128xf32> -> vector<256x128xf32>
    %46 = arith.addf %38, %45 : vector<256x128xf32>
    %c0_41 = arith.constant 0 : index
    %c2_42 = arith.constant 2 : index
    %c0_43 = arith.constant 0 : index
    %c0_44 = arith.constant 0 : index
    %47 = vector.load %arg2[%c0_41, %c2_42, %c0_43, %c0_44] : memref<1x18x18x8xf32, #tpu.memory_space<vmem>>, vector<1x16x16x8xf32>
    %48 = vector.shape_cast %47 : vector<1x16x16x8xf32> to vector<16x16x8xf32>
    %49 = arith.index_cast %arg1 : i32 to index
    %c6 = arith.constant 6 : index
    %c0_45 = arith.constant 0 : index
    %c0_46 = arith.constant 0 : index
    %50 = vector.load %arg3[%49, %c6, %c0_45, %c0_46] : memref<1x9x8x128xf32, #tpu.memory_space<vmem>>, vector<1x1x8x128xf32>
    %51 = vector.shape_cast %50 : vector<1x1x8x128xf32> to vector<8x128xf32>
    %52 = vector.shape_cast %48 : vector<16x16x8xf32> to vector<256x8xf32>
    %cst_47 = arith.constant dense<0.000000e+00> : vector<256x128xf32>
    %53 = tpu.matmul %52, %51, %cst_47 {dimension_numbers = #tpu.dot_dimension_numbers<[1], [0], [0], [1], [0, 0, 1, 1], [], []>} : vector<256x8xf32>, vector<8x128xf32>, vector<256x128xf32> -> vector<256x128xf32>
    %54 = arith.addf %46, %53 : vector<256x128xf32>
    %c0_48 = arith.constant 0 : index
    %c2_49 = arith.constant 2 : index
    %c1_50 = arith.constant 1 : index
    %c0_51 = arith.constant 0 : index
    %55 = vector.load %arg2[%c0_48, %c2_49, %c1_50, %c0_51] : memref<1x18x18x8xf32, #tpu.memory_space<vmem>>, vector<1x16x16x8xf32>
    %56 = vector.shape_cast %55 : vector<1x16x16x8xf32> to vector<16x16x8xf32>
    %57 = arith.index_cast %arg1 : i32 to index
    %c7 = arith.constant 7 : index
    %c0_52 = arith.constant 0 : index
    %c0_53 = arith.constant 0 : index
    %58 = vector.load %arg3[%57, %c7, %c0_52, %c0_53] : memref<1x9x8x128xf32, #tpu.memory_space<vmem>>, vector<1x1x8x128xf32>
    %59 = vector.shape_cast %58 : vector<1x1x8x128xf32> to vector<8x128xf32>
    %60 = vector.shape_cast %56 : vector<16x16x8xf32> to vector<256x8xf32>
    %cst_54 = arith.constant dense<0.000000e+00> : vector<256x128xf32>
    %61 = tpu.matmul %60, %59, %cst_54 {dimension_numbers = #tpu.dot_dimension_numbers<[1], [0], [0], [1], [0, 0, 1, 1], [], []>} : vector<256x8xf32>, vector<8x128xf32>, vector<256x128xf32> -> vector<256x128xf32>
    %62 = arith.addf %54, %61 : vector<256x128xf32>
    %c0_55 = arith.constant 0 : index
    %c2_56 = arith.constant 2 : index
    %c2_57 = arith.constant 2 : index
    %c0_58 = arith.constant 0 : index
    %63 = vector.load %arg2[%c0_55, %c2_56, %c2_57, %c0_58] : memref<1x18x18x8xf32, #tpu.memory_space<vmem>>, vector<1x16x16x8xf32>
    %64 = vector.shape_cast %63 : vector<1x16x16x8xf32> to vector<16x16x8xf32>
    %65 = arith.index_cast %arg1 : i32 to index
    %c8 = arith.constant 8 : index
    %c0_59 = arith.constant 0 : index
    %c0_60 = arith.constant 0 : index
    %66 = vector.load %arg3[%65, %c8, %c0_59, %c0_60] : memref<1x9x8x128xf32, #tpu.memory_space<vmem>>, vector<1x1x8x128xf32>
    %67 = vector.shape_cast %66 : vector<1x1x8x128xf32> to vector<8x128xf32>
    %68 = vector.shape_cast %64 : vector<16x16x8xf32> to vector<256x8xf32>
    %cst_61 = arith.constant dense<0.000000e+00> : vector<256x128xf32>
    %69 = tpu.matmul %68, %67, %cst_61 {dimension_numbers = #tpu.dot_dimension_numbers<[1], [0], [0], [1], [0, 0, 1, 1], [], []>} : vector<256x8xf32>, vector<8x128xf32>, vector<256x128xf32> -> vector<256x128xf32>
    %70 = arith.addf %62, %69 : vector<256x128xf32>
    %71 = vector.shape_cast %70 : vector<256x128xf32> to vector<1x16x16x128xf32>
    %c0_62 = arith.constant 0 : index
    %c0_63 = arith.constant 0 : index
    %c0_64 = arith.constant 0 : index
    %c0_65 = arith.constant 0 : index
    %72 = vector.load %arg4[%c0_62, %c0_63, %c0_64, %c0_65] : memref<1x16x16x128xf32, #tpu.memory_space<vmem>>, vector<1x16x16x128xf32>
    tpu.vector_store %arg4[%c0_62, %c0_63, %c0_64, %c0_65], %71 {strides = array<i32>} : memref<1x16x16x128xf32, #tpu.memory_space<vmem>>, vector<1x16x16x128xf32>,
    return
  }
  func.func @transform_0(%arg0: i32, %arg1: i32) -> (i32, i32, i32, i32) {
    %c0_i32 = arith.constant 0 : i32
    %c0_i32_0 = arith.constant 0 : i32
    %c0_i32_1 = arith.constant 0 : i32
    %c0_i32_2 = arith.constant 0 : i32
    return %arg0, %c0_i32, %c0_i32_0, %c0_i32_1 : i32, i32, i32, i32
  }
  func.func @transform_1(%arg0: i32, %arg1: i32) -> (i32, i32, i32, i32) {
    %c0_i32 = arith.constant 0 : i32
    %c0_i32_0 = arith.constant 0 : i32
    %c0_i32_1 = arith.constant 0 : i32
    %c0_i32_2 = arith.constant 0 : i32
    %c0_i32_3 = arith.constant 0 : i32
    return %c0_i32, %c0_i32_0, %c0_i32_1, %c0_i32_2 : i32, i32, i32, i32
  }
  func.func @transform_2(%arg0: i32, %arg1: i32) -> (i32, i32, i32, i32) {
    %c0_i32 = arith.constant 0 : i32
    %c0_i32_0 = arith.constant 0 : i32
    %c0_i32_1 = arith.constant 0 : i32
    return %arg0, %c0_i32, %c0_i32_0, %arg1 : i32, i32, i32, i32
  }
}

</mosaic_0001>

<llo_original>
// kernel: tpu_custom_call.1
$region0: #{tpu_custom_call.1}
  #allocation0 [shape = 'u32[]', space=smem, size = 0x4, offset = 0x4, fixed_abs, tag = 'smem constant byte address 0x4 - core index']
  #allocation1 [shape = 'u32[144,128]{1,0:T(1,128)}', space=vmem, size = 0x12000, scoped, tag = 'internal scratch']
  %s0 = inlined_call_operand.vmem [shape: f32[2,18,18,8], index: 0, kind: input, shape index: {}]
  %s1 = inlined_call_operand.vmem [shape: f32[1,9,8,128], index: 1, kind: input, shape index: {}]
  %s2 = inlined_call_operand.hbm [shape: f32[2,16,16,128], index: 2, kind: output, shape index: {}]
  %s3 = sld [smem:[#allocation0]]
  $region41: #{tpu_custom_call.1} parent=0
    _
  %s5 = ssub.s32 1, %s3
  %s6 = scalar_select 0, %s5, %s3
  $region1: #{tpu_custom_call.1} parent=0
    #allocation2 [shape = 'u8[262144]{0}', space=vmem, size = 0x40000, scoped, tag = 'output window, operand 0']
    #allocation3 [shape = 's32[2]{0}', space=sflag, size = 0x8, scoped, tag = 'scoped memory for tpu_custom_call.1']
    %7 = vsyncpa [#allocation3], 0
    %s8 = scalar_lea.sflag [#allocation3], 1
    %9 = vsyncpa %s8, 0
    loop: start=0, step=1, limit=4
    $region2: #{tpu_custom_call.1} parent=1 // loop_pre_header
      _
    $region3: #{tpu_custom_call.1} parent=1 // loop_header
      %s11 = sphi 0, %s15
      %p12 = scmp.ge.s32.totalorder %s11, 4
      %s18 = sphi 0, %s30
      %s19 = sphi 0, %s26
      %s20 = sphi 0, %s18
      %s21 = sphi 0, %s19
      %s22 = sphi 0, %s20
      %s23 = sphi 0, %s21
      %s33 = sphi 0, %s35
      %s36 = sphi 0, %s33
      %s37 = sphi 0, %s36
      %s53 = sphi 0, %s37
      %s57 = sphi 0, %s57
      %s59 = sphi 0, %s57
      %s60 = sphi 0, %s59
      %s74 = sphi 0, %s60
      %s82 = sphi 0, %s84
      %s85 = sphi 0, %s82
      %s86 = sphi 0, %s85
      %s102 = sphi 0, %s86
    $region4: #{tpu_custom_call.1} parent=1 // loop_header_branch
      %14 = sbr.rel (%p12) target = $region8
    $region5: #{tpu_custom_call.1} parent=1 // loop_body
      %s16 = ssub.s32 %s11, 1
      %s17 = ssub.s32 %s11, 2
      %s24 = sadd.s32 1, %s19
      %p25 = scmp.ge.s32.totalorder %s24, 1
      %s26 = scalar_select %p25, 0, %s24
      %s27 = sadd.s32 1, %s18
      %s28 = scalar_select %p25, %s27, %s18
      %p29 = scmp.ge.s32.totalorder %s28, 2
      %s30 = scalar_select %p29, 0, %s28
      %s31 = ssub.s32 %s18, %s30
      %p32 = scmp.eq.s32.totalorder %s31, 0
      %s34 = sadd.s32 %s33, 1
      %s35 = scalar_select %p32, %s33, %s34
      %p38 = pneg %p32
      %p39 = scmp.eq.s32.totalorder %s11, 1
      %p40 = por %p38, %p39
      %p41 = scmp.ne.s32.totalorder %s33, %s36
      %p42 = scmp.eq.s32.totalorder %s11, 0
      %p43 = por %p41, %p42
      %p44 = scmp.ne.s32.totalorder %s33, %s36
      %p45 = scmp.eq.s32.totalorder %s16, 1
      %p46 = por %p44, %p45
      %p47 = scmp.ne.s32.totalorder %s36, %s37
      %p48 = scmp.eq.s32.totalorder %s16, 0
      %p49 = por %p47, %p48
      %p50 = scmp.ne.s32.totalorder %s36, %s37
      %p51 = scmp.eq.s32.totalorder %s17, 1
      %p52 = por %p50, %p51
      %p54 = scmp.ne.s32.totalorder %s37, %s53
      %p55 = scmp.eq.s32.totalorder %s17, 0
      %p56 = por %p54, %p55
      %s58 = sadd.s32 %s57, 1
      %p61 = scmp.eq.s32.totalorder %s11, 1
      %p62 = scmp.ne.s32.totalorder %s57, %s59
      %p63 = scmp.eq.s32.totalorder %s11, 0
      %p64 = por %p62, %p63
      %p65 = scmp.ne.s32.totalorder %s57, %s59
      %p66 = scmp.eq.s32.totalorder %s16, 1
      %p67 = por %p65, %p66
      %p68 = scmp.ne.s32.totalorder %s59, %s60
      %p69 = scmp.eq.s32.totalorder %s16, 0
      %p70 = por %p68, %p69
      %p71 = scmp.ne.s32.totalorder %s59, %s60
      %p72 = scmp.eq.s32.totalorder %s17, 1
      %p73 = por %p71, %p72
      %p75 = scmp.ne.s32.totalorder %s60, %s74
      %p76 = scmp.eq.s32.totalorder %s17, 0
      %p77 = por %p75, %p76
      %s78 = ssub.s32 %s18, %s30
      %s79 = ssub.s32 %s19, %s26
      %s80 = sor.u32 %s78, %s79
      %p81 = scmp.eq.s32.totalorder %s80, 0
      %s83 = sadd.s32 %s82, 1
      %s84 = scalar_select %p81, %s82, %s83
      %p87 = pneg %p81
      %p88 = scmp.eq.s32.totalorder %s11, 1
      %p89 = por %p87, %p88
      %p90 = scmp.ne.s32.totalorder %s82, %s85
      %p91 = scmp.eq.s32.totalorder %s11, 0
      %p92 = por %p90, %p91
      %p93 = scmp.ne.s32.totalorder %s82, %s85
      %p94 = scmp.eq.s32.totalorder %s16, 1
      %p95 = por %p93, %p94
      %p96 = scmp.ne.s32.totalorder %s85, %s86
      %p97 = scmp.eq.s32.totalorder %s16, 0
      %p98 = por %p96, %p97
      %p99 = scmp.ne.s32.totalorder %s85, %s86
      %p100 = scmp.eq.s32.totalorder %s17, 1
      %p101 = por %p99, %p100
      %p103 = scmp.ne.s32.totalorder %s86, %s102
      %p104 = scmp.eq.s32.totalorder %s17, 0
      %p105 = por %p103, %p104
      %p106 = scmp.le.s32.totalorder 1, %s11
      %p107 = scmp.lt.s32.totalorder %s11, 3
      %p108 = pnand %p106, %p107
      %p109 = pneg %p108
      // Predicated region
      $region9: #{tpu_custom_call.1} parent=5 // pred_check
        _
      $region10: #{tpu_custom_call.1} parent=5 // pred_check_branch
        %111 = sbr.rel (%p108) target = $region12
      $region11: #{tpu_custom_call.1} parent=5 // pred_region
        %s112 = ssub.s32 %s11, 1
        // Predicated region
        $region13: #{tpu_custom_call.1} parent=11 // pred_check
          %p113 = pneg %p70
        $region14: #{tpu_custom_call.1} parent=11 // pred_check_branch
          %115 = sbr.rel (%p113) target = $region16
        $region15: #{tpu_custom_call.1} parent=11 // pred_region
          _
        $region16: #{tpu_custom_call.1} parent=11 // pred_fallthru
          _
      $region12: #{tpu_custom_call.1} parent=5 // pred_fallthru
        _
      %p116 = scmp.lt.s32.totalorder %s11, 2
      // Predicated region
      $region17: #{tpu_custom_call.1} parent=5 // pred_check
        %p117 = pneg %p116
      $region18: #{tpu_custom_call.1} parent=5 // pred_check_branch
        %119 = sbr.rel (%p117) target = $region20
      $region19: #{tpu_custom_call.1} parent=5 // pred_region
        // Predicated region
        $region21: #{tpu_custom_call.1} parent=19 // pred_check
          %p120 = pneg %p43
        $region22: #{tpu_custom_call.1} parent=19 // pred_check_branch
          %122 = sbr.rel (%p120) target = $region24
        $region23: #{tpu_custom_call.1} parent=19 // pred_region
          %p123 = scmp.lt.s32.totalorder %s18, 1
          %s124 = scalar_select %p123, %s18, 1
          %s125 = smul.addr %s124, 54
          %s126 = smul.addr %s125, 8
          %s127 = scalar_lea.vmem %s0, %s126
        $region24: #{tpu_custom_call.1} parent=19 // pred_fallthru
          _
      $region20: #{tpu_custom_call.1} parent=5 // pred_fallthru
        _
      %p128 = scmp.le.s32.totalorder 1, %s11
      %p129 = scmp.lt.s32.totalorder %s11, 3
      %p130 = pnand %p128, %p129
      %p131 = pneg %p130
      // Predicated region
      $region25: #{tpu_custom_call.1} parent=5 // pred_check
        _
      $region26: #{tpu_custom_call.1} parent=5 // pred_check_branch
        %133 = sbr.rel (%p130) target = $region28
      $region27: #{tpu_custom_call.1} parent=5 // pred_region
        %s134 = ssub.s32 %s11, 1
        %p135 = scmp.lt.s32.totalorder %s20, 1
        %s136 = scalar_select %p135, %s20, 1
        %s137 = smul.addr %s136, 54
        %s138 = smul.addr %s137, 8
        %s139 = scalar_lea.vmem %s0, %s138
        %p140 = pneg %p49
        %p141 = pneg %p46
        %p142 = pneg %p70
        %p143 = pneg %p67
        %p144 = pneg %p98
        %p145 = pneg %p95
        %s146 = sand.u32 %s85, 1
        %s147 = scalar_lea.sflag [#allocation3], %s146
        %s148 = sand.u32 %s85, 1
        %s149 = smul.addr %s148, 256
        %s150 = scalar_lea.vmem [#allocation2], %s149
        %p151 = scmp.lt.s32.totalorder %s20, 1
        %s152 = scalar_select %p151, %s20, 1
        %s153 = smul.addr %s152, 54
        %s154 = smul.addr %s153, 8
        %s155 = scalar_lea.vmem %s0, %s154
        %v156 = vld [vmem:[%s155] sm:$0xff]
        %v157 = vld [vmem:[%s155 + $0x8] sm:$0xff]
        %v158 = vld [vmem:[%s155 + $0x18] sm:$0xff]
        %v159 = vld [vmem:[%s155 + $0x20] sm:$0xff]
        %v160 = vld [vmem:[%s155 + $0x30] sm:$0xff]
        %v161 = vld [vmem:[%s155 + $0x38] sm:$0xff]
        %v162 = vld [vmem:[%s155 + $0x48] sm:$0xff]
        %v163 = vld [vmem:[%s155 + $0x50] sm:$0xff]
        %v164 = vld [vmem:[%s155 + $0x60] sm:$0xff]
        %v165 = vld [vmem:[%s155 + $0x68] sm:$0xff]
        %v166 = vld [vmem:[%s155 + $0x78] sm:$0xff]
        %v167 = vld [vmem:[%s155 + $0x80] sm:$0xff]
        %v168 = vld [vmem:[%s155 + $0x90] sm:$0xff]
        %v169 = vld [vmem:[%s155 + $0x98] sm:$0xff]
        %v170 = vld [vmem:[%s155 + $0xa8] sm:$0xff]
        %v171 = vld [vmem:[%s155 + $0xb0] sm:$0xff]
        %v172 = vld [vmem:[%s155 + $0xc0] sm:$0xff]
        %v173 = vld [vmem:[%s155 + $0xc8] sm:$0xff]
        %v174 = vld [vmem:[%s155 + $0xd8] sm:$0xff]
        %v175 = vld [vmem:[%s155 + $0xe0] sm:$0xff]
        %v176 = vld [vmem:[%s155 + $0xf0] sm:$0xff]
        %v177 = vld [vmem:[%s155 + $0xf8] sm:$0xff]
        %v178 = vld [vmem:[%s155 + $0x108] sm:$0xff]
        %v179 = vld [vmem:[%s155 + $0x110] sm:$0xff]
        %v180 = vld [vmem:[%s155 + $0x120] sm:$0xff]
        %v181 = vld [vmem:[%s155 + $0x128] sm:$0xff]
        %v182 = vld [vmem:[%s155 + $0x138] sm:$0xff]
        %v183 = vld [vmem:[%s155 + $0x140] sm:$0xff]
        %v184 = vld [vmem:[%s155 + $0x150] sm:$0xff]
        %v185 = vld [vmem:[%s155 + $0x158] sm:$0xff]
        %v186 = vld [vmem:[%s155 + $0x168] sm:$0xff]
        %v187 = vld [vmem:[%s155 + $0x170] sm:$0xff]
        %s188 = smul.u32 %s21, 72
        %s189 = scalar_lea.vmem %s1, %s188
        %v190 = vld [vmem:[%s189] sm:$0xff]
        %v191 = vld [vmem:[%s155 + $0x1] sm:$0xff]
        %v192 = vld [vmem:[%s155 + $0x9] sm:$0xff]
        %v193 = vld [vmem:[%s155 + $0x19] sm:$0xff]
        %v194 = vld [vmem:[%s155 + $0x21] sm:$0xff]
        %v195 = vld [vmem:[%s155 + $0x31] sm:$0xff]
        %v196 = vld [vmem:[%s155 + $0x39] sm:$0xff]
        %v197 = vld [vmem:[%s155 + $0x49] sm:$0xff]
        %v198 = vld [vmem:[%s155 + $0x51] sm:$0xff]
        %v199 = vld [vmem:[%s155 + $0x61] sm:$0xff]
        %v200 = vld [vmem:[%s155 + $0x69] sm:$0xff]
        %v201 = vld [vmem:[%s155 + $0x79] sm:$0xff]
        %v202 = vld [vmem:[%s155 + $0x81] sm:$0xff]
        %v203 = vld [vmem:[%s155 + $0x91] sm:$0xff]
        %v204 = vld [vmem:[%s155 + $0x99] sm:$0xff]
        %v205 = vld [vmem:[%s155 + $0xa9] sm:$0xff]
        %v206 = vld [vmem:[%s155 + $0xb1] sm:$0xff]
        %v207 = vld [vmem:[%s155 + $0xc1] sm:$0xff]
        %v208 = vld [vmem:[%s155 + $0xc9] sm:$0xff]
        %v209 = vld [vmem:[%s155 + $0xd9] sm:$0xff]
        %v210 = vld [vmem:[%s155 + $0xe1] sm:$0xff]
        %v211 = vld [vmem:[%s155 + $0xf1] sm:$0xff]
        %v212 = vld [vmem:[%s155 + $0xf9] sm:$0xff]
        %v213 = vld [vmem:[%s155 + $0x109] sm:$0xff]
        %v214 = vld [vmem:[%s155 + $0x111] sm:$0xff]
        %v215 = vld [vmem:[%s155 + $0x121] sm:$0xff]
        %v216 = vld [vmem:[%s155 + $0x129] sm:$0xff]
        %v217 = vld [vmem:[%s155 + $0x139] sm:$0xff]
        %v218 = vld [vmem:[%s155 + $0x141] sm:$0xff]
        %v219 = vld [vmem:[%s155 + $0x151] sm:$0xff]
        %v220 = vld [vmem:[%s155 + $0x159] sm:$0xff]
        %v221 = vld [vmem:[%s155 + $0x169] sm:$0xff]
        %v222 = vld [vmem:[%s155 + $0x171] sm:$0xff]
        %s223 = sadd.s32 8, %s188
        %s224 = scalar_lea.vmem %s1, %s223
        %v225 = vld [vmem:[%s224] sm:$0xff]
        %vm226 = vcmask 64512
        %v228 = vsel %vm226, %v191, 0
        %v231 = vsel %vm226, %v192, 0
        %v234 = vsel %vm226, %v193, 0
        %v237 = vsel %vm226, %v194, 0
        %v240 = vsel %vm226, %v195, 0
        %v243 = vsel %vm226, %v196, 0
        %v246 = vsel %vm226, %v197, 0
        %v249 = vsel %vm226, %v198, 0
        %v252 = vsel %vm226, %v199, 0
        %v255 = vsel %vm226, %v200, 0
        %v258 = vsel %vm226, %v201, 0
        %v261 = vsel %vm226, %v202, 0
        %v264 = vsel %vm226, %v203, 0
        %v267 = vsel %vm226, %v204, 0
        %v270 = vsel %vm226, %v205, 0
        %v273 = vsel %vm226, %v206, 0
        %v276 = vsel %vm226, %v207, 0
        %v279 = vsel %vm226, %v208, 0
        %v282 = vsel %vm226, %v209, 0
        %v285 = vsel %vm226, %v210, 0
        %v288 = vsel %vm226, %v211, 0
        %v291 = vsel %vm226, %v212, 0
        %v294 = vsel %vm226, %v213, 0
        %v297 = vsel %vm226, %v214, 0
        %v300 = vsel %vm226, %v215, 0
        %v303 = vsel %vm226, %v216, 0
        %v306 = vsel %vm226, %v217, 0
        %v309 = vsel %vm226, %v218, 0
        %v312 = vsel %vm226, %v219, 0
        %v315 = vsel %vm226, %v220, 0
        %v318 = vsel %vm226, %v221, 0
        %v321 = vsel %vm226, %v222, 0
        %323 = vmatprep.subr.mxu0 0.0
        %324 = vmatpush1.msra.mxu0 %v225
        %325 = vmatprep.subr.mxu0 0.0
        %326 = vmatpush1.msra.mxu0 0.0
        %327 = vmatprep.subr.mxu0 0.0
        %328 = vmatpush1.msra.mxu0 0.0
        %329 = vmatprep.subr.mxu0 0.0
        %330 = vmatpush1.msra.mxu0 0.0
        %331 = vmatprep.subr.mxu0 0.0
        %332 = vmatpush1.msra.mxu0 0.0
        %333 = vmatprep.subr.mxu0 0.0
        %334 = vmatpush1.msra.mxu0 0.0
        %335 = vmatprep.subr.mxu0 0.0
        %336 = vmatpush1.msra.mxu0 0.0
        %337 = vmatprep.subr.mxu0 0.0
        %338 = vmatpush1.msra.mxu0 0.0
        %339 = vmatprep.subr.mxu0 0.0
        %340 = vmatpush1.msra.mxu0 0.0
        %341 = vmatprep.subr.mxu0 0.0
        %342 = vmatpush1.msra.mxu0 0.0
        %343 = vmatprep.subr.mxu0 0.0
        %344 = vmatpush1.msra.mxu0 0.0
        %345 = vmatprep.subr.mxu0 0.0
        %346 = vmatpush1.msra.mxu0 0.0
        %347 = vmatprep.subr.mxu0 0.0
        %348 = vmatpush1.msra.mxu0 0.0
        %349 = vmatprep.subr.mxu0 0.0
        %350 = vmatpush1.msra.mxu0 0.0
        %351 = vmatprep.subr.mxu0 0.0
        %352 = vmatpush1.msra.mxu0 0.0
        %353 = vmatprep.subr.mxu0 0.0
        %354 = vmatpush1.msra.mxu0 0.0
        %355 = vmatprep.subr.mxu0 0.0
        %356 = vmatpush1.msra.mxu0 0.0
        %357 = vmatprep.subr.mxu0 0.0
        %358 = vmatpush1.msra.mxu0 0.0
        %359 = vmatprep.subr.mxu0 0.0
        %360 = vmatpush1.msra.mxu0 0.0
        %361 = vmatprep.subr.mxu0 0.0
        %362 = vmatpush1.msra.mxu0 0.0
        %363 = vmatprep.subr.mxu0 0.0
        %364 = vmatpush1.msra.mxu0 0.0
        %365 = vmatprep.subr.mxu0 0.0
        %366 = vmatpush1.msra.mxu0 0.0
        %367 = vmatprep.subr.mxu0 0.0
        %368 = vmatpush1.msra.mxu0 0.0
        %369 = vmatprep.subr.mxu0 0.0
        %370 = vmatpush1.msra.mxu0 0.0
        %371 = vmatprep.subr.mxu0 0.0
        %372 = vmatpush1.msra.mxu0 0.0
        %373 = vmatprep.subr.mxu0 0.0
        %374 = vmatpush1.msra.mxu0 0.0
        %375 = vmatprep.subr.mxu0 0.0
        %376 = vmatpush1.msra.mxu0 0.0
        %377 = vmatprep.subr.mxu0 0.0
        %378 = vmatpush1.msra.mxu0 0.0
        %379 = vmatprep.subr.mxu0 0.0
        %380 = vmatpush1.msra.mxu0 0.0
        %381 = vmatprep.subr.mxu0 0.0
        %382 = vmatpush1.msra.mxu0 0.0
        %383 = vmatprep.subr.mxu0 0.0
        %384 = vmatpush1.msra.mxu0 0.0
        %385 = vmatprep.subr.mxu0 0.0
        %386 = vmatpush1.msra.mxu0 0.0
        %387 = vmatprep.mubr.f32.mxu0 0.0
        %388 = vmatmul.mubr.f32.gmra.mrb[0].mxu0 %v228
        %v389 = vpop.f32.mrb[0].mxu0
        %v390 = vadd.f32 0.0, %v389
        %v391 = vpop.f32.mrb[0].mxu0
        %392 = vmatprep.mubr.f32.mxu0 0.0
        %393 = vmatmul.mubr.f32.gmra.mrb[0].mxu0 %v231
        %v394 = vpop.f32.mrb[0].mxu0
        %v395 = vadd.f32 0.0, %v394
        %v396 = vpop.f32.mrb[0].mxu0
        %397 = vmatprep.mubr.f32.mxu0 0.0
        %398 = vmatmul.mubr.f32.gmra.mrb[0].mxu0 %v234
        %v399 = vpop.f32.mrb[0].mxu0
        %v400 = vadd.f32 0.0, %v399
        %v401 = vpop.f32.mrb[0].mxu0
        %402 = vmatprep.mubr.f32.mxu0 0.0
        %403 = vmatmul.mubr.f32.gmra.mrb[0].mxu0 %v237
        %v404 = vpop.f32.mrb[0].mxu0
        %v405 = vadd.f32 0.0, %v404
        %v406 = vpop.f32.mrb[0].mxu0
        %407 = vmatprep.mubr.f32.mxu0 0.0
        %408 = vmatmul.mubr.f32.gmra.mrb[0].mxu0 %v240
        %v409 = vpop.f32.mrb[0].mxu0
        %v410 = vadd.f32 0.0, %v409
        %v411 = vpop.f32.mrb[0].mxu0
        %412 = vmatprep.mubr.f32.mxu0 0.0
        %413 = vmatmul.mubr.f32.gmra.mrb[0].mxu0 %v243
        %v414 = vpop.f32.mrb[0].mxu0
        %v415 = vadd.f32 0.0, %v414
        %v416 = vpop.f32.mrb[0].mxu0
        %417 = vmatprep.mubr.f32.mxu0 0.0
        %418 = vmatmul.mubr.f32.gmra.mrb[0].mxu0 %v246
        %v419 = vpop.f32.mrb[0].mxu0
        %v420 = vadd.f32 0.0, %v419
        %v421 = vpop.f32.mrb[0].mxu0
        %422 = vmatprep.mubr.f32.mxu0 0.0
        %423 = vmatmul.mubr.f32.gmra.mrb[0].mxu0 %v249
        %v424 = vpop.f32.mrb[0].mxu0
        %v425 = vadd.f32 0.0, %v424
        %v426 = vpop.f32.mrb[0].mxu0
        %427 = vmatprep.mubr.f32.mxu0 0.0
        %428 = vmatmul.mubr.f32.gmra.mrb[0].mxu0 %v252
        %v429 = vpop.f32.mrb[0].mxu0
        %v430 = vadd.f32 0.0, %v429
        %v431 = vpop.f32.mrb[0].mxu0
        %432 = vmatprep.mubr.f32.mxu0 0.0
        %433 = vmatmul.mubr.f32.gmra.mrb[0].mxu0 %v255
        %v434 = vpop.f32.mrb[0].mxu0
        %v435 = vadd.f32 0.0, %v434
        %v436 = vpop.f32.mrb[0].mxu0
        %437 = vmatprep.mubr.f32.mxu0 0.0
        %438 = vmatmul.mubr.f32.gmra.mrb[0].mxu0 %v258
        %v439 = vpop.f32.mrb[0].mxu0
        %v440 = vadd.f32 0.0, %v439
        %v441 = vpop.f32.mrb[0].mxu0
        %442 = vmatprep.mubr.f32.mxu0 0.0
        %443 = vmatmul.mubr.f32.gmra.mrb[0].mxu0 %v261
        %v444 = vpop.f32.mrb[0].mxu0
        %v445 = vadd.f32 0.0, %v444
        %v446 = vpop.f32.mrb[0].mxu0
        %447 = vmatprep.mubr.f32.mxu0 0.0
        %448 = vmatmul.mubr.f32.gmra.mrb[0].mxu0 %v264
        %v449 = vpop.f32.mrb[0].mxu0
        %v450 = vadd.f32 0.0, %v449
        %v451 = vpop.f32.mrb[0].mxu0
        %452 = vmatprep.mubr.f32.mxu0 0.0
        %453 = vmatmul.mubr.f32.gmra.mrb[0].mxu0 %v267
        %v454 = vpop.f32.mrb[0].mxu0
        %v455 = vadd.f32 0.0, %v454
        %v456 = vpop.f32.mrb[0].mxu0
        %457 = vmatprep.mubr.f32.mxu0 0.0
        %458 = vmatmul.mubr.f32.gmra.mrb[0].mxu0 %v270
        %v459 = vpop.f32.mrb[0].mxu0
        %v460 = vadd.f32 0.0, %v459
        %v461 = vpop.f32.mrb[0].mxu0
        %462 = vmatprep.mubr.f32.mxu0 0.0
        %463 = vmatmul.mubr.f32.gmra.mrb[0].mxu0 %v273
        %v464 = vpop.f32.mrb[0].mxu0
        %v465 = vadd.f32 0.0, %v464
        %v466 = vpop.f32.mrb[0].mxu0
        %467 = vmatprep.mubr.f32.mxu0 0.0
        %468 = vmatmul.mubr.f32.gmra.mrb[0].mxu0 %v276
        %v469 = vpop.f32.mrb[0].mxu0
        %v470 = vadd.f32 0.0, %v469
        %v471 = vpop.f32.mrb[0].mxu0
        %472 = vmatprep.mubr.f32.mxu0 0.0
        %473 = vmatmul.mubr.f32.gmra.mrb[0].mxu0 %v279
        %v474 = vpop.f32.mrb[0].mxu0
        %v475 = vadd.f32 0.0, %v474
        %v476 = vpop.f32.mrb[0].mxu0
        %477 = vmatprep.mubr.f32.mxu0 0.0
        %478 = vmatmul.mubr.f32.gmra.mrb[0].mxu0 %v282
        %v479 = vpop.f32.mrb[0].mxu0
        %v480 = vadd.f32 0.0, %v479
        %v481 = vpop.f32.mrb[0].mxu0
        %482 = vmatprep.mubr.f32.mxu0 0.0
        %483 = vmatmul.mubr.f32.gmra.mrb[0].mxu0 %v285
        %v484 = vpop.f32.mrb[0].mxu0
        %v485 = vadd.f32 0.0, %v484
        %v486 = vpop.f32.mrb[0].mxu0
        %487 = vmatprep.mubr.f32.mxu0 0.0
        %488 = vmatmul.mubr.f32.gmra.mrb[0].mxu0 %v288
        %v489 = vpop.f32.mrb[0].mxu0
        %v490 = vadd.f32 0.0, %v489
        %v491 = vpop.f32.mrb[0].mxu0
        %492 = vmatprep.mubr.f32.mxu0 0.0
        %493 = vmatmul.mubr.f32.gmra.mrb[0].mxu0 %v291
        %v494 = vpop.f32.mrb[0].mxu0
        %v495 = vadd.f32 0.0, %v494
        %v496 = vpop.f32.mrb[0].mxu0
        %497 = vmatprep.mubr.f32.mxu0 0.0
        %498 = vmatmul.mubr.f32.gmra.mrb[0].mxu0 %v294
        %v499 = vpop.f32.mrb[0].mxu0
        %v500 = vadd.f32 0.0, %v499
        %v501 = vpop.f32.mrb[0].mxu0
        %502 = vmatprep.mubr.f32.mxu0 0.0
        %503 = vmatmul.mubr.f32.gmra.mrb[0].mxu0 %v297
        %v504 = vpop.f32.mrb[0].mxu0
        %v505 = vadd.f32 0.0, %v504
        %v506 = vpop.f32.mrb[0].mxu0
        %507 = vmatprep.mubr.f32.mxu0 0.0
        %508 = vmatmul.mubr.f32.gmra.mrb[0].mxu0 %v300
        %v509 = vpop.f32.mrb[0].mxu0
        %v510 = vadd.f32 0.0, %v509
        %v511 = vpop.f32.mrb[0].mxu0
        %512 = vmatprep.mubr.f32.mxu0 0.0
        %513 = vmatmul.mubr.f32.gmra.mrb[0].mxu0 %v303
        %v514 = vpop.f32.mrb[0].mxu0
        %v515 = vadd.f32 0.0, %v514
        %v516 = vpop.f32.mrb[0].mxu0
        %517 = vmatprep.mubr.f32.mxu0 0.0
        %518 = vmatmul.mubr.f32.gmra.mrb[0].mxu0 %v306
        %v519 = vpop.f32.mrb[0].mxu0
        %v520 = vadd.f32 0.0, %v519
        %v521 = vpop.f32.mrb[0].mxu0
        %522 = vmatprep.mubr.f32.mxu0 0.0
        %523 = vmatmul.mubr.f32.gmra.mrb[0].mxu0 %v309
        %v524 = vpop.f32.mrb[0].mxu0
        %v525 = vadd.f32 0.0, %v524
        %v526 = vpop.f32.mrb[0].mxu0
        %527 = vmatprep.mubr.f32.mxu0 0.0
        %528 = vmatmul.mubr.f32.gmra.mrb[0].mxu0 %v312
        %v529 = vpop.f32.mrb[0].mxu0
        %v530 = vadd.f32 0.0, %v529
        %v531 = vpop.f32.mrb[0].mxu0
        %532 = vmatprep.mubr.f32.mxu0 0.0
        %533 = vmatmul.mubr.f32.gmra.mrb[0].mxu0 %v315
        %v534 = vpop.f32.mrb[0].mxu0
        %v535 = vadd.f32 0.0, %v534
        %v536 = vpop.f32.mrb[0].mxu0
        %537 = vmatprep.mubr.f32.mxu0 0.0
        %538 = vmatmul.mubr.f32.gmra.mrb[0].mxu0 %v318
        %v539 = vpop.f32.mrb[0].mxu0
        %v540 = vadd.f32 0.0, %v539
        %v541 = vpop.f32.mrb[0].mxu0
        %542 = vmatprep.mubr.f32.mxu0 0.0
        %543 = vmatmul.mubr.f32.gmra.mrb[0].mxu0 %v321
        %v544 = vpop.f32.mrb[0].mxu0
        %v545 = vadd.f32 0.0, %v544
        %v546 = vpop.f32.mrb[0].mxu0
        %547 = vdwg.mxu0
        %v549 = vsel %vm226, %v156, 0
        %v552 = vsel %vm226, %v157, 0
        %v555 = vsel %vm226, %v158, 0
        %v558 = vsel %vm226, %v159, 0
        %v561 = vsel %vm226, %v160, 0
        %v564 = vsel %vm226, %v161, 0
        %v567 = vsel %vm226, %v162, 0
        %v570 = vsel %vm226, %v163, 0
        %v573 = vsel %vm226, %v164, 0
        %v576 = vsel %vm226, %v165, 0
        %v579 = vsel %vm226, %v166, 0
        %v582 = vsel %vm226, %v167, 0
        %v585 = vsel %vm226, %v168, 0
        %v588 = vsel %vm226, %v169, 0
        %v591 = vsel %vm226, %v170, 0
        %v594 = vsel %vm226, %v171, 0
        %v597 = vsel %vm226, %v172, 0
        %v600 = vsel %vm226, %v173, 0
        %v603 = vsel %vm226, %v174, 0
        %v606 = vsel %vm226, %v175, 0
        %v609 = vsel %vm226, %v176, 0
        %v612 = vsel %vm226, %v177, 0
        %v615 = vsel %vm226, %v178, 0
        %v618 = vsel %vm226, %v179, 0
        %v621 = vsel %vm226, %v180, 0
        %v624 = vsel %vm226, %v181, 0
        %v627 = vsel %vm226, %v182, 0
        %v630 = vsel %vm226, %v183, 0
        %v633 = vsel %vm226, %v184, 0
        %v636 = vsel %vm226, %v185, 0
        %v639 = vsel %vm226, %v186, 0
        %v642 = vsel %vm226, %v187, 0
        %644 = vmatprep.subr.mxu0 0.0
        %645 = vmatpush1.msra.mxu0 %v190
        %646 = vmatprep.subr.mxu0 0.0
        %647 = vmatpush1.msra.mxu0 0.0
        %648 = vmatprep.subr.mxu0 0.0
        %649 = vmatpush1.msra.mxu0 0.0
        %650 = vmatprep.subr.mxu0 0.0
        %651 = vmatpush1.msra.mxu0 0.0
        %652 = vmatprep.subr.mxu0 0.0
        %653 = vmatpush1.msra.mxu0 0.0
        %654 = vmatprep.subr.mxu0 0.0
        %655 = vmatpush1.msra.mxu0 0.0
        %656 = vmatprep.subr.mxu0 0.0
        %657 = vmatpush1.msra.mxu0 0.0
        %658 = vmatprep.subr.mxu0 0.0
        %659 = vmatpush1.msra.mxu0 0.0
        %660 = vmatprep.subr.mxu0 0.0
        %661 = vmatpush1.msra.mxu0 0.0
        %662 = vmatprep.subr.mxu0 0.0
        %663 = vmatpush1.msra.mxu0 0.0
        %664 = vmatprep.subr.mxu0 0.0
        %665 = vmatpush1.msra.mxu0 0.0
        %666 = vmatprep.subr.mxu0 0.0
        %667 = vmatpush1.msra.mxu0 0.0
        %668 = vmatprep.subr.mxu0 0.0
        %669 = vmatpush1.msra.mxu0 0.0
        %670 = vmatprep.subr.mxu0 0.0
        %671 = vmatpush1.msra.mxu0 0.0
        %672 = vmatprep.subr.mxu0 0.0
        %673 = vmatpush1.msra.mxu0 0.0
        %674 = vmatprep.subr.mxu0 0.0
        %675 = vmatpush1.msra.mxu0 0.0
        %676 = vmatprep.subr.mxu0 0.0
        %677 = vmatpush1.msra.mxu0 0.0
        %678 = vmatprep.subr.mxu0 0.0
        %679 = vmatpush1.msra.mxu0 0.0
        %680 = vmatprep.subr.mxu0 0.0
        %681 = vmatpush1.msra.mxu0 0.0
        %682 = vmatprep.subr.mxu0 0.0
        %683 = vmatpush1.msra.mxu0 0.0
        %684 = vmatprep.subr.mxu0 0.0
        %685 = vmatpush1.msra.mxu0 0.0
        %686 = vmatprep.subr.mxu0 0.0
        %687 = vmatpush1.msra.mxu0 0.0
        %688 = vmatprep.subr.mxu0 0.0
        %689 = vmatpush1.msra.mxu0 0.0
        %690 = vmatprep.subr.mxu0 0.0
        %691 = vmatpush1.msra.mxu0 0.0
        %692 = vmatprep.subr.mxu0 0.0
        %693 = vmatpush1.msra.mxu0 0.0
        %694 = vmatprep.subr.mxu0 0.0
        %695 = vmatpush1.msra.mxu0 0.0
        %696 = vmatprep.subr.mxu0 0.0
        %697 = vmatpush1.msra.mxu0 0.0
        %698 = vmatprep.subr.mxu0 0.0
        %699 = vmatpush1.msra.mxu0 0.0
        %700 = vmatprep.subr.mxu0 0.0
        %701 = vmatpush1.msra.mxu0 0.0
        %702 = vmatprep.subr.mxu0 0.0
        %703 = vmatpush1.msra.mxu0 0.0
        %704 = vmatprep.subr.mxu0 0.0
        %705 = vmatpush1.msra.mxu0 0.0
        %706 = vmatprep.subr.mxu0 0.0
        %707 = vmatpush1.msra.mxu0 0.0
        %708 = vmatprep.mubr.f32.mxu0 0.0
        %709 = vmatmul.mubr.f32.gmra.mrb[0].mxu0 %v549
        %v710 = vpop.f32.mrb[0].mxu0
        %v711 = vadd.f32 %v390, %v710
        %v712 = vpop.f32.mrb[0].mxu0
        %713 = vmatprep.mubr.f32.mxu0 0.0
        %714 = vmatmul.mubr.f32.gmra.mrb[0].mxu0 %v552
        %v715 = vpop.f32.mrb[0].mxu0
        %v716 = vadd.f32 %v395, %v715
        %v717 = vpop.f32.mrb[0].mxu0
        %718 = vmatprep.mubr.f32.mxu0 0.0
        %719 = vmatmul.mubr.f32.gmra.mrb[0].mxu0 %v555
        %v720 = vpop.f32.mrb[0].mxu0
        %v721 = vadd.f32 %v400, %v720
        %v722 = vpop.f32.mrb[0].mxu0
        %723 = vmatprep.mubr.f32.mxu0 0.0
        %724 = vmatmul.mubr.f32.gmra.mrb[0].mxu0 %v558
        %v725 = vpop.f32.mrb[0].mxu0
        %v726 = vadd.f32 %v405, %v725
        %v727 = vpop.f32.mrb[0].mxu0
        %728 = vmatprep.mubr.f32.mxu0 0.0
        %729 = vmatmul.mubr.f32.gmra.mrb[0].mxu0 %v561
        %v730 = vpop.f32.mrb[0].mxu0
        %v731 = vadd.f32 %v410, %v730
        %v732 = vpop.f32.mrb[0].mxu0
        %733 = vmatprep.mubr.f32.mxu0 0.0
        %734 = vmatmul.mubr.f32.gmra.mrb[0].mxu0 %v564
        %v735 = vpop.f32.mrb[0].mxu0
        %v736 = vadd.f32 %v415, %v735
        %v737 = vpop.f32.mrb[0].mxu0
        %738 = vmatprep.mubr.f32.mxu0 0.0
        %739 = vmatmul.mubr.f32.gmra.mrb[0].mxu0 %v567
        %v740 = vpop.f32.mrb[0].mxu0
        %v741 = vadd.f32 %v420, %v740
        %v742 = vpop.f32.mrb[0].mxu0
        %743 = vmatprep.mubr.f32.mxu0 0.0
        %744 = vmatmul.mubr.f32.gmra.mrb[0].mxu0 %v570
        %v745 = vpop.f32.mrb[0].mxu0
        %v746 = vadd.f32 %v425, %v745
        %v747 = vpop.f32.mrb[0].mxu0
        %748 = vmatprep.mubr.f32.mxu0 0.0
        %749 = vmatmul.mubr.f32.gmra.mrb[0].mxu0 %v573
        %v750 = vpop.f32.mrb[0].mxu0
        %v751 = vadd.f32 %v430, %v750
        %v752 = vpop.f32.mrb[0].mxu0
        %753 = vmatprep.mubr.f32.mxu0 0.0
        %754 = vmatmul.mubr.f32.gmra.mrb[0].mxu0 %v576
        %v755 = vpop.f32.mrb[0].mxu0
        %v756 = vadd.f32 %v435, %v755
        %v757 = vpop.f32.mrb[0].mxu0
        %758 = vmatprep.mubr.f32.mxu0 0.0
        %759 = vmatmul.mubr.f32.gmra.mrb[0].mxu0 %v579
        %v760 = vpop.f32.mrb[0].mxu0
        %v761 = vadd.f32 %v440, %v760
        %v762 = vpop.f32.mrb[0].mxu0
        %763 = vmatprep.mubr.f32.mxu0 0.0
        %764 = vmatmul.mubr.f32.gmra.mrb[0].mxu0 %v582
        %v765 = vpop.f32.mrb[0].mxu0
        %v766 = vadd.f32 %v445, %v765
        %v767 = vpop.f32.mrb[0].mxu0
        %768 = vmatprep.mubr.f32.mxu0 0.0
        %769 = vmatmul.mubr.f32.gmra.mrb[0].mxu0 %v585
        %v770 = vpop.f32.mrb[0].mxu0
        %v771 = vadd.f32 %v450, %v770
        %v772 = vpop.f32.mrb[0].mxu0
        %773 = vmatprep.mubr.f32.mxu0 0.0
        %774 = vmatmul.mubr.f32.gmra.mrb[0].mxu0 %v588
        %v775 = vpop.f32.mrb[0].mxu0
        %v776 = vadd.f32 %v455, %v775
        %v777 = vpop.f32.mrb[0].mxu0
        %778 = vmatprep.mubr.f32.mxu0 0.0
        %779 = vmatmul.mubr.f32.gmra.mrb[0].mxu0 %v591
        %v780 = vpop.f32.mrb[0].mxu0
        %v781 = vadd.f32 %v460, %v780
        %v782 = vpop.f32.mrb[0].mxu0
        %783 = vmatprep.mubr.f32.mxu0 0.0
        %784 = vmatmul.mubr.f32.gmra.mrb[0].mxu0 %v594
        %v785 = vpop.f32.mrb[0].mxu0
        %v786 = vadd.f32 %v465, %v785
        %v787 = vpop.f32.mrb[0].mxu0
        %788 = vmatprep.mubr.f32.mxu0 0.0
        %789 = vmatmul.mubr.f32.gmra.mrb[0].mxu0 %v597
        %v790 = vpop.f32.mrb[0].mxu0
        %v791 = vadd.f32 %v470, %v790
        %v792 = vpop.f32.mrb[0].mxu0
        %793 = vmatprep.mubr.f32.mxu0 0.0
        %794 = vmatmul.mubr.f32.gmra.mrb[0].mxu0 %v600
        %v795 = vpop.f32.mrb[0].mxu0
        %v796 = vadd.f32 %v475, %v795
        %v797 = vpop.f32.mrb[0].mxu0
        %798 = vmatprep.mubr.f32.mxu0 0.0
        %799 = vmatmul.mubr.f32.gmra.mrb[0].mxu0 %v603
        %v800 = vpop.f32.mrb[0].mxu0
        %v801 = vadd.f32 %v480, %v800
        %v802 = vpop.f32.mrb[0].mxu0
        %803 = vmatprep.mubr.f32.mxu0 0.0
        %804 = vmatmul.mubr.f32.gmra.mrb[0].mxu0 %v606
        %v805 = vpop.f32.mrb[0].mxu0
        %v806 = vadd.f32 %v485, %v805
        %v807 = vpop.f32.mrb[0].mxu0
        %808 = vmatprep.mubr.f32.mxu0 0.0
        %809 = vmatmul.mubr.f32.gmra.mrb[0].mxu0 %v609
        %v810 = vpop.f32.mrb[0].mxu0
        %v811 = vadd.f32 %v490, %v810
        %v812 = vpop.f32.mrb[0].mxu0
        %813 = vmatprep.mubr.f32.mxu0 0.0
        %814 = vmatmul.mubr.f32.gmra.mrb[0].mxu0 %v612
        %v815 = vpop.f32.mrb[0].mxu0
        %v816 = vadd.f32 %v495, %v815
        %v817 = vpop.f32.mrb[0].mxu0
        %818 = vmatprep.mubr.f32.mxu0 0.0
        %819 = vmatmul.mubr.f32.gmra.mrb[0].mxu0 %v615
        %v820 = vpop.f32.mrb[0].mxu0
        %v821 = vadd.f32 %v500, %v820
        %v822 = vpop.f32.mrb[0].mxu0
        %823 = vmatprep.mubr.f32.mxu0 0.0
        %824 = vmatmul.mubr.f32.gmra.mrb[0].mxu0 %v618
        %v825 = vpop.f32.mrb[0].mxu0
        %v826 = vadd.f32 %v505, %v825
        %v827 = vpop.f32.mrb[0].mxu0
        %828 = vmatprep.mubr.f32.mxu0 0.0
        %829 = vmatmul.mubr.f32.gmra.mrb[0].mxu0 %v621
        %v830 = vpop.f32.mrb[0].mxu0
        %v831 = vadd.f32 %v510, %v830
        %v832 = vpop.f32.mrb[0].mxu0
        %833 = vmatprep.mubr.f32.mxu0 0.0
        %834 = vmatmul.mubr.f32.gmra.mrb[0].mxu0 %v624
        %v835 = vpop.f32.mrb[0].mxu0
        %v836 = vadd.f32 %v515, %v835
        %v837 = vpop.f32.mrb[0].mxu0
        %838 = vmatprep.mubr.f32.mxu0 0.0
        %839 = vmatmul.mubr.f32.gmra.mrb[0].mxu0 %v627
        %v840 = vpop.f32.mrb[0].mxu0
        %v841 = vadd.f32 %v520, %v840
        %v842 = vpop.f32.mrb[0].mxu0
        %843 = vmatprep.mubr.f32.mxu0 0.0
        %844 = vmatmul.mubr.f32.gmra.mrb[0].mxu0 %v630
        %v845 = vpop.f32.mrb[0].mxu0
        %v846 = vadd.f32 %v525, %v845
        %v847 = vpop.f32.mrb[0].mxu0
        %848 = vmatprep.mubr.f32.mxu0 0.0
        %849 = vmatmul.mubr.f32.gmra.mrb[0].mxu0 %v633
        %v850 = vpop.f32.mrb[0].mxu0
        %v851 = vadd.f32 %v530, %v850
        %v852 = vpop.f32.mrb[0].mxu0
        %853 = vmatprep.mubr.f32.mxu0 0.0
        %854 = vmatmul.mubr.f32.gmra.mrb[0].mxu0 %v636
        %v855 = vpop.f32.mrb[0].mxu0
        %v856 = vadd.f32 %v535, %v855
        %v857 = vpop.f32.mrb[0].mxu0
        %858 = vmatprep.mubr.f32.mxu0 0.0
        %859 = vmatmul.mubr.f32.gmra.mrb[0].mxu0 %v639
        %v860 = vpop.f32.mrb[0].mxu0
        %v861 = vadd.f32 %v540, %v860
        %v862 = vpop.f32.mrb[0].mxu0
        %863 = vmatprep.mubr.f32.mxu0 0.0
        %864 = vmatmul.mubr.f32.gmra.mrb[0].mxu0 %v642
        %v865 = vpop.f32.mrb[0].mxu0
        %v866 = vadd.f32 %v545, %v865
        %v867 = vpop.f32.mrb[0].mxu0
        %868 = vdwg.mxu0
        %v869 = vld [vmem:[%s155 + $0x2] sm:$0xff]
        %v870 = vld [vmem:[%s155 + $0xa] sm:$0xff]
        %v871 = vld [vmem:[%s155 + $0x1a] sm:$0xff]
        %v872 = vld [vmem:[%s155 + $0x22] sm:$0xff]
        %v873 = vld [vmem:[%s155 + $0x32] sm:$0xff]
        %v874 = vld [vmem:[%s155 + $0x3a] sm:$0xff]
        %v875 = vld [vmem:[%s155 + $0x4a] sm:$0xff]
        %v876 = vld [vmem:[%s155 + $0x52] sm:$0xff]
        %v877 = vld [vmem:[%s155 + $0x62] sm:$0xff]
        %v878 = vld [vmem:[%s155 + $0x6a] sm:$0xff]
        %v879 = vld [vmem:[%s155 + $0x7a] sm:$0xff]
        %v880 = vld [vmem:[%s155 + $0x82] sm:$0xff]
        %v881 = vld [vmem:[%s155 + $0x92] sm:$0xff]
        %v882 = vld [vmem:[%s155 + $0x9a] sm:$0xff]
        %v883 = vld [vmem:[%s155 + $0xaa] sm:$0xff]
        %v884 = vld [vmem:[%s155 + $0xb2] sm:$0xff]
        %v885 = vld [vmem:[%s155 + $0xc2] sm:$0xff]
        %v886 = vld [vmem:[%s155 + $0xca] sm:$0xff]
        %v887 = vld [vmem:[%s155 + $0xda] sm:$0xff]
        %v888 = vld [vmem:[%s155 + $0xe2] sm:$0xff]
        %v889 = vld [vmem:[%s155 + $0xf2] sm:$0xff]
        %v890 = vld [vmem:[%s155 + $0xfa] sm:$0xff]
        %v891 = vld [vmem:[%s155 + $0x10a] sm:$0xff]
        %v892 = vld [vmem:[%s155 + $0x112] sm:$0xff]
        %v893 = vld [vmem:[%s155 + $0x122] sm:$0xff]
        %v894 = vld [vmem:[%s155 + $0x12a] sm:$0xff]
        %v895 = vld [vmem:[%s155 + $0x13a] sm:$0xff]
        %v896 = vld [vmem:[%s155 + $0x142] sm:$0xff]
        %v897 = vld [vmem:[%s155 + $0x152] sm:$0xff]
        %v898 = vld [vmem:[%s155 + $0x15a] sm:$0xff]
        %v899 = vld [vmem:[%s155 + $0x16a] sm:$0xff]
        %v900 = vld [vmem:[%s155 + $0x172] sm:$0xff]
        %s901 = sadd.s32 16, %s188
        %s902 = scalar_lea.vmem %s1, %s901
        %v903 = vld [vmem:[%s902] sm:$0xff]
        %v905 = vsel %vm226, %v869, 0
        %v908 = vsel %vm226, %v870, 0
        %v911 = vsel %vm226, %v871, 0
        %v914 = vsel %vm226, %v872, 0
        %v917 = vsel %vm226, %v873, 0
        %v920 = vsel %vm226, %v874, 0
        %v923 = vsel %vm226, %v875, 0
        %v926 = vsel %vm226, %v876, 0
        %v929 = vsel %vm226, %v877, 0
        %v932 = vsel %vm226, %v878, 0
        %v935 = vsel %vm226, %v879, 0
        %v938 = vsel %vm226, %v880, 0
        %v941 = vsel %vm226, %v881, 0
        %v944 = vsel %vm226, %v882, 0
        %v947 = vsel %vm226, %v883, 0
        %v950 = vsel %vm226, %v884, 0
        %v953 = vsel %vm226, %v885, 0
        %v956 = vsel %vm226, %v886, 0
        %v959 = vsel %vm226, %v887, 0
        %v962 = vsel %vm226, %v888, 0
        %v965 = vsel %vm226, %v889, 0
        %v968 = vsel %vm226, %v890, 0
        %v971 = vsel %vm226, %v891, 0
        %v974 = vsel %vm226, %v892, 0
        %v977 = vsel %vm226, %v893, 0
        %v980 = vsel %vm226, %v894, 0
        %v983 = vsel %vm226, %v895, 0
        %v986 = vsel %vm226, %v896, 0
        %v989 = vsel %vm226, %v897, 0
        %v992 = vsel %vm226, %v898, 0
        %v995 = vsel %vm226, %v899, 0
        %v998 = vsel %vm226, %v900, 0
        %1000 = vmatprep.subr.mxu0 0.0
        %1001 = vmatpush1.msra.mxu0 %v903
        %1002 = vmatprep.subr.mxu0 0.0
        %1003 = vmatpush1.msra.mxu0 0.0
        %1004 = vmatprep.subr.mxu0 0.0
        %1005 = vmatpush1.msra.mxu0 0.0
        %1006 = vmatprep.subr.mxu0 0.0
        %1007 = vmatpush1.msra.mxu0 0.0
        %1008 = vmatprep.subr.mxu0 0.0
        %1009 = vmatpush1.msra.mxu0 0.0
        %1010 = vmatprep.subr.mxu0 0.0
        %1011 = vmatpush1.msra.mxu0 0.0
        %1012 = vmatprep.subr.mxu0 0.0
        %1013 = vmatpush1.msra.mxu0 0.0
        %1014 = vmatprep.subr.mxu0 0.0
        %1015 = vmatpush1.msra.mxu0 0.0
        %1016 = vmatprep.subr.mxu0 0.0
        %1017 = vmatpush1.msra.mxu0 0.0
        %1018 = vmatprep.subr.mxu0 0.0
        %1019 = vmatpush1.msra.mxu0 0.0
        %1020 = vmatprep.subr.mxu0 0.0
        %1021 = vmatpush1.msra.mxu0 0.0
        %1022 = vmatprep.subr.mxu0 0.0
        %1023 = vmatpush1.msra.mxu0 0.0
        %1024 = vmatprep.subr.mxu0 0.0
        %1025 = vmatpush1.msra.mxu0 0.0
        %1026 = vmatprep.subr.mxu0 0.0
        %1027 = vmatpush1.msra.mxu0 0.0
        %1028 = vmatprep.subr.mxu0 0.0
        %1029 = vmatpush1.msra.mxu0 0.0
        %1030 = vmatprep.subr.mxu0 0.0
        %1031 = vmatpush1.msra.mxu0 0.0
        %1032 = vmatprep.subr.mxu0 0.0
        %1033 = vmatpush1.msra.mxu0 0.0
        %1034 = vmatprep.subr.mxu0 0.0
        %1035 = vmatpush1.msra.mxu0 0.0
        %1036 = vmatprep.subr.mxu0 0.0
        %1037 = vmatpush1.msra.mxu0 0.0
        %1038 = vmatprep.subr.mxu0 0.0
        %1039 = vmatpush1.msra.mxu0 0.0
        %1040 = vmatprep.subr.mxu0 0.0
        %1041 = vmatpush1.msra.mxu0 0.0
        %1042 = vmatprep.subr.mxu0 0.0
        %1043 = vmatpush1.msra.mxu0 0.0
        %1044 = vmatprep.subr.mxu0 0.0
        %1045 = vmatpush1.msra.mxu0 0.0
        %1046 = vmatprep.subr.mxu0 0.0
        %1047 = vmatpush1.msra.mxu0 0.0
        %1048 = vmatprep.subr.mxu0 0.0
        %1049 = vmatpush1.msra.mxu0 0.0
        %1050 = vmatprep.subr.mxu0 0.0
        %1051 = vmatpush1.msra.mxu0 0.0
        %1052 = vmatprep.subr.mxu0 0.0
        %1053 = vmatpush1.msra.mxu0 0.0
        %1054 = vmatprep.subr.mxu0 0.0
        %1055 = vmatpush1.msra.mxu0 0.0
        %1056 = vmatprep.subr.mxu0 0.0
        %1057 = vmatpush1.msra.mxu0 0.0
        %1058 = vmatprep.subr.mxu0 0.0
        %1059 = vmatpush1.msra.mxu0 0.0
        %1060 = vmatprep.subr.mxu0 0.0
        %1061 = vmatpush1.msra.mxu0 0.0
        %1062 = vmatprep.subr.mxu0 0.0
        %1063 = vmatpush1.msra.mxu0 0.0
        %1064 = vmatprep.mubr.f32.mxu0 0.0
        %1065 = vmatmul.mubr.f32.gmra.mrb[0].mxu0 %v905
        %v1066 = vpop.f32.mrb[0].mxu0
        %v1067 = vadd.f32 0.0, %v1066
        %v1068 = vpop.f32.mrb[0].mxu0
        %1069 = vmatprep.mubr.f32.mxu0 0.0
        %1070 = vmatmul.mubr.f32.gmra.mrb[0].mxu0 %v908
        %v1071 = vpop.f32.mrb[0].mxu0
        %v1072 = vadd.f32 0.0, %v1071
        %v1073 = vpop.f32.mrb[0].mxu0
        %1074 = vmatprep.mubr.f32.mxu0 0.0
        %1075 = vmatmul.mubr.f32.gmra.mrb[0].mxu0 %v911
        %v1076 = vpop.f32.mrb[0].mxu0
        %v1077 = vadd.f32 0.0, %v1076
        %v1078 = vpop.f32.mrb[0].mxu0
        %1079 = vmatprep.mubr.f32.mxu0 0.0
        %1080 = vmatmul.mubr.f32.gmra.mrb[0].mxu0 %v914
        %v1081 = vpop.f32.mrb[0].mxu0
        %v1082 = vadd.f32 0.0, %v1081
        %v1083 = vpop.f32.mrb[0].mxu0
        %1084 = vmatprep.mubr.f32.mxu0 0.0
        %1085 = vmatmul.mubr.f32.gmra.mrb[0].mxu0 %v917
        %v1086 = vpop.f32.mrb[0].mxu0
        %v1087 = vadd.f32 0.0, %v1086
        %v1088 = vpop.f32.mrb[0].mxu0
        %1089 = vmatprep.mubr.f32.mxu0 0.0
        %1090 = vmatmul.mubr.f32.gmra.mrb[0].mxu0 %v920
        %v1091 = vpop.f32.mrb[0].mxu0
        %v1092 = vadd.f32 0.0, %v1091
        %v1093 = vpop.f32.mrb[0].mxu0
        %1094 = vmatprep.mubr.f32.mxu0 0.0
        %1095 = vmatmul.mubr.f32.gmra.mrb[0].mxu0 %v923
        %v1096 = vpop.f32.mrb[0].mxu0
        %v1097 = vadd.f32 0.0, %v1096
        %v1098 = vpop.f32.mrb[0].mxu0
        %1099 = vmatprep.mubr.f32.mxu0 0.0
        %1100 = vmatmul.mubr.f32.gmra.mrb[0].mxu0 %v926
        %v1101 = vpop.f32.mrb[0].mxu0
        %v1102 = vadd.f32 0.0, %v1101
        %v1103 = vpop.f32.mrb[0].mxu0
        %1104 = vmatprep.mubr.f32.mxu0 0.0
        %1105 = vmatmul.mubr.f32.gmra.mrb[0].mxu0 %v929
        %v1106 = vpop.f32.mrb[0].mxu0
        %v1107 = vadd.f32 0.0, %v1106
        %v1108 = vpop.f32.mrb[0].mxu0
        %1109 = vmatprep.mubr.f32.mxu0 0.0
        %1110 = vmatmul.mubr.f32.gmra.mrb[0].mxu0 %v932
        %v1111 = vpop.f32.mrb[0].mxu0
        %v1112 = vadd.f32 0.0, %v1111
        %v1113 = vpop.f32.mrb[0].mxu0
        %1114 = vmatprep.mubr.f32.mxu0 0.0
        %1115 = vmatmul.mubr.f32.gmra.mrb[0].mxu0 %v935
        %v1116 = vpop.f32.mrb[0].mxu0
        %v1117 = vadd.f32 0.0, %v1116
        %v1118 = vpop.f32.mrb[0].mxu0
        %1119 = vmatprep.mubr.f32.mxu0 0.0
        %1120 = vmatmul.mubr.f32.gmra.mrb[0].mxu0 %v938
        %v1121 = vpop.f32.mrb[0].mxu0
        %v1122 = vadd.f32 0.0, %v1121
        %v1123 = vpop.f32.mrb[0].mxu0
        %1124 = vmatprep.mubr.f32.mxu0 0.0
        %1125 = vmatmul.mubr.f32.gmra.mrb[0].mxu0 %v941
        %v1126 = vpop.f32.mrb[0].mxu0
        %v1127 = vadd.f32 0.0, %v1126
        %v1128 = vpop.f32.mrb[0].mxu0
        %1129 = vmatprep.mubr.f32.mxu0 0.0
        %1130 = vmatmul.mubr.f32.gmra.mrb[0].mxu0 %v944
        %v1131 = vpop.f32.mrb[0].mxu0
        %v1132 = vadd.f32 0.0, %v1131
        %v1133 = vpop.f32.mrb[0].mxu0
        %1134 = vmatprep.mubr.f32.mxu0 0.0
        %1135 = vmatmul.mubr.f32.gmra.mrb[0].mxu0 %v947
        %v1136 = vpop.f32.mrb[0].mxu0
        %v1137 = vadd.f32 0.0, %v1136
        %v1138 = vpop.f32.mrb[0].mxu0
        %1139 = vmatprep.mubr.f32.mxu0 0.0
        %1140 = vmatmul.mubr.f32.gmra.mrb[0].mxu0 %v950
        %v1141 = vpop.f32.mrb[0].mxu0
        %v1142 = vadd.f32 0.0, %v1141
        %v1143 = vpop.f32.mrb[0].mxu0
        %1144 = vmatprep.mubr.f32.mxu0 0.0
        %1145 = vmatmul.mubr.f32.gmra.mrb[0].mxu0 %v953
        %v1146 = vpop.f32.mrb[0].mxu0
        %v1147 = vadd.f32 0.0, %v1146
        %v1148 = vpop.f32.mrb[0].mxu0
        %1149 = vmatprep.mubr.f32.mxu0 0.0
        %1150 = vmatmul.mubr.f32.gmra.mrb[0].mxu0 %v956
        %v1151 = vpop.f32.mrb[0].mxu0
        %v1152 = vadd.f32 0.0, %v1151
        %v1153 = vpop.f32.mrb[0].mxu0
        %1154 = vmatprep.mubr.f32.mxu0 0.0
        %1155 = vmatmul.mubr.f32.gmra.mrb[0].mxu0 %v959
        %v1156 = vpop.f32.mrb[0].mxu0
        %v1157 = vadd.f32 0.0, %v1156
        %v1158 = vpop.f32.mrb[0].mxu0
        %1159 = vmatprep.mubr.f32.mxu0 0.0
        %1160 = vmatmul.mubr.f32.gmra.mrb[0].mxu0 %v962
        %v1161 = vpop.f32.mrb[0].mxu0
        %v1162 = vadd.f32 0.0, %v1161
        %v1163 = vpop.f32.mrb[0].mxu0
        %1164 = vmatprep.mubr.f32.mxu0 0.0
        %1165 = vmatmul.mubr.f32.gmra.mrb[0].mxu0 %v965
        %v1166 = vpop.f32.mrb[0].mxu0
        %v1167 = vadd.f32 0.0, %v1166
        %v1168 = vpop.f32.mrb[0].mxu0
        %1169 = vmatprep.mubr.f32.mxu0 0.0
        %1170 = vmatmul.mubr.f32.gmra.mrb[0].mxu0 %v968
        %v1171 = vpop.f32.mrb[0].mxu0
        %v1172 = vadd.f32 0.0, %v1171
        %v1173 = vpop.f32.mrb[0].mxu0
        %1174 = vmatprep.mubr.f32.mxu0 0.0
        %1175 = vmatmul.mubr.f32.gmra.mrb[0].mxu0 %v971
        %v1176 = vpop.f32.mrb[0].mxu0
        %v1177 = vadd.f32 0.0, %v1176
        %v1178 = vpop.f32.mrb[0].mxu0
        %1179 = vmatprep.mubr.f32.mxu0 0.0
        %1180 = vmatmul.mubr.f32.gmra.mrb[0].mxu0 %v974
        %v1181 = vpop.f32.mrb[0].mxu0
        %v1182 = vadd.f32 0.0, %v1181
        %v1183 = vpop.f32.mrb[0].mxu0
        %1184 = vmatprep.mubr.f32.mxu0 0.0
        %1185 = vmatmul.mubr.f32.gmra.mrb[0].mxu0 %v977
        %v1186 = vpop.f32.mrb[0].mxu0
        %v1187 = vadd.f32 0.0, %v1186
        %v1188 = vpop.f32.mrb[0].mxu0
        %1189 = vmatprep.mubr.f32.mxu0 0.0
        %1190 = vmatmul.mubr.f32.gmra.mrb[0].mxu0 %v980
        %v1191 = vpop.f32.mrb[0].mxu0
        %v1192 = vadd.f32 0.0, %v1191
        %v1193 = vpop.f32.mrb[0].mxu0
        %1194 = vmatprep.mubr.f32.mxu0 0.0
        %1195 = vmatmul.mubr.f32.gmra.mrb[0].mxu0 %v983
        %v1196 = vpop.f32.mrb[0].mxu0
        %v1197 = vadd.f32 0.0, %v1196
        %v1198 = vpop.f32.mrb[0].mxu0
        %1199 = vmatprep.mubr.f32.mxu0 0.0
        %1200 = vmatmul.mubr.f32.gmra.mrb[0].mxu0 %v986
        %v1201 = vpop.f32.mrb[0].mxu0
        %v1202 = vadd.f32 0.0, %v1201
        %v1203 = vpop.f32.mrb[0].mxu0
        %1204 = vmatprep.mubr.f32.mxu0 0.0
        %1205 = vmatmul.mubr.f32.gmra.mrb[0].mxu0 %v989
        %v1206 = vpop.f32.mrb[0].mxu0
        %v1207 = vadd.f32 0.0, %v1206
        %v1208 = vpop.f32.mrb[0].mxu0
        %1209 = vmatprep.mubr.f32.mxu0 0.0
        %1210 = vmatmul.mubr.f32.gmra.mrb[0].mxu0 %v992
        %v1211 = vpop.f32.mrb[0].mxu0
        %v1212 = vadd.f32 0.0, %v1211
        %v1213 = vpop.f32.mrb[0].mxu0
        %1214 = vmatprep.mubr.f32.mxu0 0.0
        %1215 = vmatmul.mubr.f32.gmra.mrb[0].mxu0 %v995
        %v1216 = vpop.f32.mrb[0].mxu0
        %v1217 = vadd.f32 0.0, %v1216
        %v1218 = vpop.f32.mrb[0].mxu0
        %1219 = vmatprep.mubr.f32.mxu0 0.0
        %1220 = vmatmul.mubr.f32.gmra.mrb[0].mxu0 %v998
        %v1221 = vpop.f32.mrb[0].mxu0
        %v1222 = vadd.f32 0.0, %v1221
        %v1223 = vpop.f32.mrb[0].mxu0
        %1224 = vdwg.mxu0
        %v1225 = vadd.f32 %v711, %v1067
        %v1226 = vadd.f32 %v716, %v1072
        %v1227 = vadd.f32 %v721, %v1077
        %v1228 = vadd.f32 %v726, %v1082
        %v1229 = vadd.f32 %v731, %v1087
        %v1230 = vadd.f32 %v736, %v1092
        %v1231 = vadd.f32 %v741, %v1097
        %v1232 = vadd.f32 %v746, %v1102
        %v1233 = vadd.f32 %v751, %v1107
        %v1234 = vadd.f32 %v756, %v1112
        %v1235 = vadd.f32 %v761, %v1117
        %v1236 = vadd.f32 %v766, %v1122
        %v1237 = vadd.f32 %v771, %v1127
        %v1238 = vadd.f32 %v776, %v1132
        %v1239 = vadd.f32 %v781, %v1137
        %v1240 = vadd.f32 %v786, %v1142
        %v1241 = vadd.f32 %v791, %v1147
        %v1242 = vadd.f32 %v796, %v1152
        %v1243 = vadd.f32 %v801, %v1157
        %v1244 = vadd.f32 %v806, %v1162
        %v1245 = vadd.f32 %v811, %v1167
        %v1246 = vadd.f32 %v816, %v1172
        %v1247 = vadd.f32 %v821, %v1177
        %v1248 = vadd.f32 %v826, %v1182
        %v1249 = vadd.f32 %v831, %v1187
        %v1250 = vadd.f32 %v836, %v1192
        %v1251 = vadd.f32 %v841, %v1197
        %v1252 = vadd.f32 %v846, %v1202
        %v1253 = vadd.f32 %v851, %v1207
        %v1254 = vadd.f32 %v856, %v1212
        %v1255 = vadd.f32 %v861, %v1217
        %v1256 = vadd.f32 %v866, %v1222
        %s1257 = scalar_lea.vmem %s155, 24
        %v1258 = vld [vmem:[%s1257] sm:$0xff]
        %v1259 = vld [vmem:[%s1257 + $0x8] sm:$0xff]
        %v1260 = vld [vmem:[%s1257 + $0x18] sm:$0xff]
        %v1261 = vld [vmem:[%s1257 + $0x20] sm:$0xff]
        %v1262 = vld [vmem:[%s1257 + $0x30] sm:$0xff]
        %v1263 = vld [vmem:[%s1257 + $0x38] sm:$0xff]
        %v1264 = vld [vmem:[%s1257 + $0x48] sm:$0xff]
        %v1265 = vld [vmem:[%s1257 + $0x50] sm:$0xff]
        %v1266 = vld [vmem:[%s1257 + $0x60] sm:$0xff]
        %v1267 = vld [vmem:[%s1257 + $0x68] sm:$0xff]
        %v1268 = vld [vmem:[%s1257 + $0x78] sm:$0xff]
        %v1269 = vld [vmem:[%s1257 + $0x80] sm:$0xff]
        %v1270 = vld [vmem:[%s1257 + $0x90] sm:$0xff]
        %v1271 = vld [vmem:[%s1257 + $0x98] sm:$0xff]
        %v1272 = vld [vmem:[%s1257 + $0xa8] sm:$0xff]
        %v1273 = vld [vmem:[%s1257 + $0xb0] sm:$0xff]
        %v1274 = vld [vmem:[%s1257 + $0xc0] sm:$0xff]
        %v1275 = vld [vmem:[%s1257 + $0xc8] sm:$0xff]
        %v1276 = vld [vmem:[%s1257 + $0xd8] sm:$0xff]
        %v1277 = vld [vmem:[%s1257 + $0xe0] sm:$0xff]
        %v1278 = vld [vmem:[%s1257 + $0xf0] sm:$0xff]
        %v1279 = vld [vmem:[%s1257 + $0xf8] sm:$0xff]
        %v1280 = vld [vmem:[%s1257 + $0x108] sm:$0xff]
        %v1281 = vld [vmem:[%s1257 + $0x110] sm:$0xff]
        %v1282 = vld [vmem:[%s1257 + $0x120] sm:$0xff]
        %v1283 = vld [vmem:[%s1257 + $0x128] sm:$0xff]
        %v1284 = vld [vmem:[%s1257 + $0x138] sm:$0xff]
        %v1285 = vld [vmem:[%s1257 + $0x140] sm:$0xff]
        %v1286 = vld [vmem:[%s1257 + $0x150] sm:$0xff]
        %v1287 = vld [vmem:[%s1257 + $0x158] sm:$0xff]
        %v1288 = vld [vmem:[%s1257 + $0x168] sm:$0xff]
        %v1289 = vld [vmem:[%s1257 + $0x170] sm:$0xff]
        %s1290 = sadd.s32 24, %s188
        %s1291 = scalar_lea.vmem %s1, %s1290
        %v1292 = vld [vmem:[%s1291] sm:$0xff]
        %v1294 = vsel %vm226, %v1258, 0
        %v1297 = vsel %vm226, %v1259, 0
        %v1300 = vsel %vm226, %v1260, 0
        %v1303 = vsel %vm226, %v1261, 0
        %v1306 = vsel %vm226, %v1262, 0
        %v1309 = vsel %vm226, %v1263, 0
        %v1312 = vsel %vm226, %v1264, 0
        %v1315 = vsel %vm226, %v1265, 0
        %v1318 = vsel %vm226, %v1266, 0
        %v1321 = vsel %vm226, %v1267, 0
        %v1324 = vsel %vm226, %v1268, 0
        %v1327 = vsel %vm226, %v1269, 0
        %v1330 = vsel %vm226, %v1270, 0
        %v1333 = vsel %vm226, %v1271, 0
        %v1336 = vsel %vm226, %v1272, 0
        %v1339 = vsel %vm226, %v1273, 0
        %v1342 = vsel %vm226, %v1274, 0
        %v1345 = vsel %vm226, %v1275, 0
        %v1348 = vsel %vm226, %v1276, 0
        %v1351 = vsel %vm226, %v1277, 0
        %v1354 = vsel %vm226, %v1278, 0
        %v1357 = vsel %vm226, %v1279, 0
        %v1360 = vsel %vm226, %v1280, 0
        %v1363 = vsel %vm226, %v1281, 0
        %v1366 = vsel %vm226, %v1282, 0
        %v1369 = vsel %vm226, %v1283, 0
        %v1372 = vsel %vm226, %v1284, 0
        %v1375 = vsel %vm226, %v1285, 0
        %v1378 = vsel %vm226, %v1286, 0
        %v1381 = vsel %vm226, %v1287, 0
        %v1384 = vsel %vm226, %v1288, 0
        %v1387 = vsel %vm226, %v1289, 0
        %1389 = vmatprep.subr.mxu0 0.0
        %1390 = vmatpush1.msra.mxu0 %v1292
        %1391 = vmatprep.subr.mxu0 0.0
        %1392 = vmatpush1.msra.mxu0 0.0
        %1393 = vmatprep.subr.mxu0 0.0
        %1394 = vmatpush1.msra.mxu0 0.0
        %1395 = vmatprep.subr.mxu0 0.0
        %1396 = vmatpush1.msra.mxu0 0.0
        %1397 = vmatprep.subr.mxu0 0.0
        %1398 = vmatpush1.msra.mxu0 0.0
        %1399 = vmatprep.subr.mxu0 0.0
        %1400 = vmatpush1.msra.mxu0 0.0
        %1401 = vmatprep.subr.mxu0 0.0
        %1402 = vmatpush1.msra.mxu0 0.0
        %1403 = vmatprep.subr.mxu0 0.0
        %1404 = vmatpush1.msra.mxu0 0.0
        %1405 = vmatprep.subr.mxu0 0.0
        %1406 = vmatpush1.msra.mxu0 0.0
        %1407 = vmatprep.subr.mxu0 0.0
        %1408 = vmatpush1.msra.mxu0 0.0
        %1409 = vmatprep.subr.mxu0 0.0
        %1410 = vmatpush1.msra.mxu0 0.0
        %1411 = vmatprep.subr.mxu0 0.0
        %1412 = vmatpush1.msra.mxu0 0.0
        %1413 = vmatprep.subr.mxu0 0.0
        %1414 = vmatpush1.msra.mxu0 0.0
        %1415 = vmatprep.subr.mxu0 0.0
        %1416 = vmatpush1.msra.mxu0 0.0
        %1417 = vmatprep.subr.mxu0 0.0
        %1418 = vmatpush1.msra.mxu0 0.0
        %1419 = vmatprep.subr.mxu0 0.0
        %1420 = vmatpush1.msra.mxu0 0.0
        %1421 = vmatprep.subr.mxu0 0.0
        %1422 = vmatpush1.msra.mxu0 0.0
        %1423 = vmatprep.subr.mxu0 0.0
        %1424 = vmatpush1.msra.mxu0 0.0
        %1425 = vmatprep.subr.mxu0 0.0
        %1426 = vmatpush1.msra.mxu0 0.0
        %1427 = vmatprep.subr.mxu0 0.0
        %1428 = vmatpush1.msra.mxu0 0.0
        %1429 = vmatprep.subr.mxu0 0.0
        %1430 = vmatpush1.msra.mxu0 0.0
        %1431 = vmatprep.subr.mxu0 0.0
        %1432 = vmatpush1.msra.mxu0 0.0
        %1433 = vmatprep.subr.mxu0 0.0
        %1434 = vmatpush1.msra.mxu0 0.0
        %1435 = vmatprep.subr.mxu0 0.0
        %1436 = vmatpush1.msra.mxu0 0.0
        %1437 = vmatprep.subr.mxu0 0.0
        %1438 = vmatpush1.msra.mxu0 0.0
        %1439 = vmatprep.subr.mxu0 0.0
        %1440 = vmatpush1.msra.mxu0 0.0
        %1441 = vmatprep.subr.mxu0 0.0
        %1442 = vmatpush1.msra.mxu0 0.0
        %1443 = vmatprep.subr.mxu0 0.0
        %1444 = vmatpush1.msra.mxu0 0.0
        %1445 = vmatprep.subr.mxu0 0.0
        %1446 = vmatpush1.msra.mxu0 0.0
        %1447 = vmatprep.subr.mxu0 0.0
        %1448 = vmatpush1.msra.mxu0 0.0
        %1449 = vmatprep.subr.mxu0 0.0
        %1450 = vmatpush1.msra.mxu0 0.0
        %1451 = vmatprep.subr.mxu0 0.0
        %1452 = vmatpush1.msra.mxu0 0.0
        %1453 = vmatprep.mubr.f32.mxu0 0.0
        %1454 = vmatmul.mubr.f32.gmra.mrb[0].mxu0 %v1294
        %v1455 = vpop.f32.mrb[0].mxu0
        %v1456 = vadd.f32 0.0, %v1455
        %v1457 = vpop.f32.mrb[0].mxu0
        %1458 = vmatprep.mubr.f32.mxu0 0.0
        %1459 = vmatmul.mubr.f32.gmra.mrb[0].mxu0 %v1297
        %v1460 = vpop.f32.mrb[0].mxu0
        %v1461 = vadd.f32 0.0, %v1460
        %v1462 = vpop.f32.mrb[0].mxu0
        %1463 = vmatprep.mubr.f32.mxu0 0.0
        %1464 = vmatmul.mubr.f32.gmra.mrb[0].mxu0 %v1300
        %v1465 = vpop.f32.mrb[0].mxu0
        %v1466 = vadd.f32 0.0, %v1465
        %v1467 = vpop.f32.mrb[0].mxu0
        %1468 = vmatprep.mubr.f32.mxu0 0.0
        %1469 = vmatmul.mubr.f32.gmra.mrb[0].mxu0 %v1303
        %v1470 = vpop.f32.mrb[0].mxu0
        %v1471 = vadd.f32 0.0, %v1470
        %v1472 = vpop.f32.mrb[0].mxu0
        %1473 = vmatprep.mubr.f32.mxu0 0.0
        %1474 = vmatmul.mubr.f32.gmra.mrb[0].mxu0 %v1306
        %v1475 = vpop.f32.mrb[0].mxu0
        %v1476 = vadd.f32 0.0, %v1475
        %v1477 = vpop.f32.mrb[0].mxu0
        %1478 = vmatprep.mubr.f32.mxu0 0.0
        %1479 = vmatmul.mubr.f32.gmra.mrb[0].mxu0 %v1309
        %v1480 = vpop.f32.mrb[0].mxu0
        %v1481 = vadd.f32 0.0, %v1480
        %v1482 = vpop.f32.mrb[0].mxu0
        %1483 = vmatprep.mubr.f32.mxu0 0.0
        %1484 = vmatmul.mubr.f32.gmra.mrb[0].mxu0 %v1312
        %v1485 = vpop.f32.mrb[0].mxu0
        %v1486 = vadd.f32 0.0, %v1485
        %v1487 = vpop.f32.mrb[0].mxu0
        %1488 = vmatprep.mubr.f32.mxu0 0.0
        %1489 = vmatmul.mubr.f32.gmra.mrb[0].mxu0 %v1315
        %v1490 = vpop.f32.mrb[0].mxu0
        %v1491 = vadd.f32 0.0, %v1490
        %v1492 = vpop.f32.mrb[0].mxu0
        %1493 = vmatprep.mubr.f32.mxu0 0.0
        %1494 = vmatmul.mubr.f32.gmra.mrb[0].mxu0 %v1318
        %v1495 = vpop.f32.mrb[0].mxu0
        %v1496 = vadd.f32 0.0, %v1495
        %v1497 = vpop.f32.mrb[0].mxu0
        %1498 = vmatprep.mubr.f32.mxu0 0.0
        %1499 = vmatmul.mubr.f32.gmra.mrb[0].mxu0 %v1321
        %v1500 = vpop.f32.mrb[0].mxu0
        %v1501 = vadd.f32 0.0, %v1500
        %v1502 = vpop.f32.mrb[0].mxu0
        %1503 = vmatprep.mubr.f32.mxu0 0.0
        %1504 = vmatmul.mubr.f32.gmra.mrb[0].mxu0 %v1324
        %v1505 = vpop.f32.mrb[0].mxu0
        %v1506 = vadd.f32 0.0, %v1505
        %v1507 = vpop.f32.mrb[0].mxu0
        %1508 = vmatprep.mubr.f32.mxu0 0.0
        %1509 = vmatmul.mubr.f32.gmra.mrb[0].mxu0 %v1327
        %v1510 = vpop.f32.mrb[0].mxu0
        %v1511 = vadd.f32 0.0, %v1510
        %v1512 = vpop.f32.mrb[0].mxu0
        %1513 = vmatprep.mubr.f32.mxu0 0.0
        %1514 = vmatmul.mubr.f32.gmra.mrb[0].mxu0 %v1330
        %v1515 = vpop.f32.mrb[0].mxu0
        %v1516 = vadd.f32 0.0, %v1515
        %v1517 = vpop.f32.mrb[0].mxu0
        %1518 = vmatprep.mubr.f32.mxu0 0.0
        %1519 = vmatmul.mubr.f32.gmra.mrb[0].mxu0 %v1333
        %v1520 = vpop.f32.mrb[0].mxu0
        %v1521 = vadd.f32 0.0, %v1520
        %v1522 = vpop.f32.mrb[0].mxu0
        %1523 = vmatprep.mubr.f32.mxu0 0.0
        %1524 = vmatmul.mubr.f32.gmra.mrb[0].mxu0 %v1336
        %v1525 = vpop.f32.mrb[0].mxu0
        %v1526 = vadd.f32 0.0, %v1525
        %v1527 = vpop.f32.mrb[0].mxu0
        %1528 = vmatprep.mubr.f32.mxu0 0.0
        %1529 = vmatmul.mubr.f32.gmra.mrb[0].mxu0 %v1339
        %v1530 = vpop.f32.mrb[0].mxu0
        %v1531 = vadd.f32 0.0, %v1530
        %v1532 = vpop.f32.mrb[0].mxu0
        %1533 = vmatprep.mubr.f32.mxu0 0.0
        %1534 = vmatmul.mubr.f32.gmra.mrb[0].mxu0 %v1342
        %v1535 = vpop.f32.mrb[0].mxu0
        %v1536 = vadd.f32 0.0, %v1535
        %v1537 = vpop.f32.mrb[0].mxu0
        %1538 = vmatprep.mubr.f32.mxu0 0.0
        %1539 = vmatmul.mubr.f32.gmra.mrb[0].mxu0 %v1345
        %v1540 = vpop.f32.mrb[0].mxu0
        %v1541 = vadd.f32 0.0, %v1540
        %v1542 = vpop.f32.mrb[0].mxu0
        %1543 = vmatprep.mubr.f32.mxu0 0.0
        %1544 = vmatmul.mubr.f32.gmra.mrb[0].mxu0 %v1348
        %v1545 = vpop.f32.mrb[0].mxu0
        %v1546 = vadd.f32 0.0, %v1545
        %v1547 = vpop.f32.mrb[0].mxu0
        %1548 = vmatprep.mubr.f32.mxu0 0.0
        %1549 = vmatmul.mubr.f32.gmra.mrb[0].mxu0 %v1351
        %v1550 = vpop.f32.mrb[0].mxu0
        %v1551 = vadd.f32 0.0, %v1550
        %v1552 = vpop.f32.mrb[0].mxu0
        %1553 = vmatprep.mubr.f32.mxu0 0.0
        %1554 = vmatmul.mubr.f32.gmra.mrb[0].mxu0 %v1354
        %v1555 = vpop.f32.mrb[0].mxu0
        %v1556 = vadd.f32 0.0, %v1555
        %v1557 = vpop.f32.mrb[0].mxu0
        %1558 = vmatprep.mubr.f32.mxu0 0.0
        %1559 = vmatmul.mubr.f32.gmra.mrb[0].mxu0 %v1357
        %v1560 = vpop.f32.mrb[0].mxu0
        %v1561 = vadd.f32 0.0, %v1560
        %v1562 = vpop.f32.mrb[0].mxu0
        %1563 = vmatprep.mubr.f32.mxu0 0.0
        %1564 = vmatmul.mubr.f32.gmra.mrb[0].mxu0 %v1360
        %v1565 = vpop.f32.mrb[0].mxu0
        %v1566 = vadd.f32 0.0, %v1565
        %v1567 = vpop.f32.mrb[0].mxu0
        %1568 = vmatprep.mubr.f32.mxu0 0.0
        %1569 = vmatmul.mubr.f32.gmra.mrb[0].mxu0 %v1363
        %v1570 = vpop.f32.mrb[0].mxu0
        %v1571 = vadd.f32 0.0, %v1570
        %v1572 = vpop.f32.mrb[0].mxu0
        %1573 = vmatprep.mubr.f32.mxu0 0.0
        %1574 = vmatmul.mubr.f32.gmra.mrb[0].mxu0 %v1366
        %v1575 = vpop.f32.mrb[0].mxu0
        %v1576 = vadd.f32 0.0, %v1575
        %v1577 = vpop.f32.mrb[0].mxu0
        %1578 = vmatprep.mubr.f32.mxu0 0.0
        %1579 = vmatmul.mubr.f32.gmra.mrb[0].mxu0 %v1369
        %v1580 = vpop.f32.mrb[0].mxu0
        %v1581 = vadd.f32 0.0, %v1580
        %v1582 = vpop.f32.mrb[0].mxu0
        %1583 = vmatprep.mubr.f32.mxu0 0.0
        %1584 = vmatmul.mubr.f32.gmra.mrb[0].mxu0 %v1372
        %v1585 = vpop.f32.mrb[0].mxu0
        %v1586 = vadd.f32 0.0, %v1585
        %v1587 = vpop.f32.mrb[0].mxu0
        %1588 = vmatprep.mubr.f32.mxu0 0.0
        %1589 = vmatmul.mubr.f32.gmra.mrb[0].mxu0 %v1375
        %v1590 = vpop.f32.mrb[0].mxu0
        %v1591 = vadd.f32 0.0, %v1590
        %v1592 = vpop.f32.mrb[0].mxu0
        %1593 = vmatprep.mubr.f32.mxu0 0.0
        %1594 = vmatmul.mubr.f32.gmra.mrb[0].mxu0 %v1378
        %v1595 = vpop.f32.mrb[0].mxu0
        %v1596 = vadd.f32 0.0, %v1595
        %v1597 = vpop.f32.mrb[0].mxu0
        %1598 = vmatprep.mubr.f32.mxu0 0.0
        %1599 = vmatmul.mubr.f32.gmra.mrb[0].mxu0 %v1381
        %v1600 = vpop.f32.mrb[0].mxu0
        %v1601 = vadd.f32 0.0, %v1600
        %v1602 = vpop.f32.mrb[0].mxu0
        %1603 = vmatprep.mubr.f32.mxu0 0.0
        %1604 = vmatmul.mubr.f32.gmra.mrb[0].mxu0 %v1384
        %v1605 = vpop.f32.mrb[0].mxu0
        %v1606 = vadd.f32 0.0, %v1605
        %v1607 = vpop.f32.mrb[0].mxu0
        %1608 = vmatprep.mubr.f32.mxu0 0.0
        %1609 = vmatmul.mubr.f32.gmra.mrb[0].mxu0 %v1387
        %v1610 = vpop.f32.mrb[0].mxu0
        %v1611 = vadd.f32 0.0, %v1610
        %v1612 = vpop.f32.mrb[0].mxu0
        %1613 = vdwg.mxu0
        %v1614 = vadd.f32 %v1225, %v1456
        %v1615 = vadd.f32 %v1226, %v1461
        %v1616 = vadd.f32 %v1227, %v1466
        %v1617 = vadd.f32 %v1228, %v1471
        %v1618 = vadd.f32 %v1229, %v1476
        %v1619 = vadd.f32 %v1230, %v1481
        %v1620 = vadd.f32 %v1231, %v1486
        %v1621 = vadd.f32 %v1232, %v1491
        %v1622 = vadd.f32 %v1233, %v1496
        %v1623 = vadd.f32 %v1234, %v1501
        %v1624 = vadd.f32 %v1235, %v1506
        %v1625 = vadd.f32 %v1236, %v1511
        %v1626 = vadd.f32 %v1237, %v1516
        %v1627 = vadd.f32 %v1238, %v1521
        %v1628 = vadd.f32 %v1239, %v1526
        %v1629 = vadd.f32 %v1240, %v1531
        %v1630 = vadd.f32 %v1241, %v1536
        %v1631 = vadd.f32 %v1242, %v1541
        %v1632 = vadd.f32 %v1243, %v1546
        %v1633 = vadd.f32 %v1244, %v1551
        %v1634 = vadd.f32 %v1245, %v1556
        %v1635 = vadd.f32 %v1246, %v1561
        %v1636 = vadd.f32 %v1247, %v1566
        %v1637 = vadd.f32 %v1248, %v1571
        %v1638 = vadd.f32 %v1249, %v1576
        %v1639 = vadd.f32 %v1250, %v1581
        %v1640 = vadd.f32 %v1251, %v1586
        %v1641 = vadd.f32 %v1252, %v1591
        %v1642 = vadd.f32 %v1253, %v1596
        %v1643 = vadd.f32 %v1254, %v1601
        %v1644 = vadd.f32 %v1255, %v1606
        %v1645 = vadd.f32 %v1256, %v1611
        %v1646 = vld [vmem:[%s1257 + $0x1] sm:$0xff]
        %v1647 = vld [vmem:[%s1257 + $0x9] sm:$0xff]
        %v1648 = vld [vmem:[%s1257 + $0x19] sm:$0xff]
        %v1649 = vld [vmem:[%s1257 + $0x21] sm:$0xff]
        %v1650 = vld [vmem:[%s1257 + $0x31] sm:$0xff]
        %v1651 = vld [vmem:[%s1257 + $0x39] sm:$0xff]
        %v1652 = vld [vmem:[%s1257 + $0x49] sm:$0xff]
        %v1653 = vld [vmem:[%s1257 + $0x51] sm:$0xff]
        %v1654 = vld [vmem:[%s1257 + $0x61] sm:$0xff]
        %v1655 = vld [vmem:[%s1257 + $0x69] sm:$0xff]
        %v1656 = vld [vmem:[%s1257 + $0x79] sm:$0xff]
        %v1657 = vld [vmem:[%s1257 + $0x81] sm:$0xff]
        %v1658 = vld [vmem:[%s1257 + $0x91] sm:$0xff]
        %v1659 = vld [vmem:[%s1257 + $0x99] sm:$0xff]
        %v1660 = vld [vmem:[%s1257 + $0xa9] sm:$0xff]
        %v1661 = vld [vmem:[%s1257 + $0xb1] sm:$0xff]
        %v1662 = vld [vmem:[%s1257 + $0xc1] sm:$0xff]
        %v1663 = vld [vmem:[%s1257 + $0xc9] sm:$0xff]
        %v1664 = vld [vmem:[%s1257 + $0xd9] sm:$0xff]
        %v1665 = vld [vmem:[%s1257 + $0xe1] sm:$0xff]
        %v1666 = vld [vmem:[%s1257 + $0xf1] sm:$0xff]
        %v1667 = vld [vmem:[%s1257 + $0xf9] sm:$0xff]
        %v1668 = vld [vmem:[%s1257 + $0x109] sm:$0xff]
        %v1669 = vld [vmem:[%s1257 + $0x111] sm:$0xff]
        %v1670 = vld [vmem:[%s1257 + $0x121] sm:$0xff]
        %v1671 = vld [vmem:[%s1257 + $0x129] sm:$0xff]
        %v1672 = vld [vmem:[%s1257 + $0x139] sm:$0xff]
        %v1673 = vld [vmem:[%s1257 + $0x141] sm:$0xff]
        %v1674 = vld [vmem:[%s1257 + $0x151] sm:$0xff]
        %v1675 = vld [vmem:[%s1257 + $0x159] sm:$0xff]
        %v1676 = vld [vmem:[%s1257 + $0x169] sm:$0xff]
        %v1677 = vld [vmem:[%s1257 + $0x171] sm:$0xff]
        %s1678 = sadd.s32 32, %s188
        %s1679 = scalar_lea.vmem %s1, %s1678
        %v1680 = vld [vmem:[%s1679] sm:$0xff]
        %v1682 = vsel %vm226, %v1646, 0
        %v1685 = vsel %vm226, %v1647, 0
        %v1688 = vsel %vm226, %v1648, 0
        %v1691 = vsel %vm226, %v1649, 0
        %v1694 = vsel %vm226, %v1650, 0
        %v1697 = vsel %vm226, %v1651, 0
        %v1700 = vsel %vm226, %v1652, 0
        %v1703 = vsel %vm226, %v1653, 0
        %v1706 = vsel %vm226, %v1654, 0
        %v1709 = vsel %vm226, %v1655, 0
        %v1712 = vsel %vm226, %v1656, 0
        %v1715 = vsel %vm226, %v1657, 0
        %v1718 = vsel %vm226, %v1658, 0
        %v1721 = vsel %vm226, %v1659, 0
        %v1724 = vsel %vm226, %v1660, 0
        %v1727 = vsel %vm226, %v1661, 0
        %v1730 = vsel %vm226, %v1662, 0
        %v1733 = vsel %vm226, %v1663, 0
        %v1736 = vsel %vm226, %v1664, 0
        %v1739 = vsel %vm226, %v1665, 0
        %v1742 = vsel %vm226, %v1666, 0
        %v1745 = vsel %vm226, %v1667, 0
        %v1748 = vsel %vm226, %v1668, 0
        %v1751 = vsel %vm226, %v1669, 0
        %v1754 = vsel %vm226, %v1670, 0
        %v1757 = vsel %vm226, %v1671, 0
        %v1760 = vsel %vm226, %v1672, 0
        %v1763 = vsel %vm226, %v1673, 0
        %v1766 = vsel %vm226, %v1674, 0
        %v1769 = vsel %vm226, %v1675, 0
        %v1772 = vsel %vm226, %v1676, 0
        %v1775 = vsel %vm226, %v1677, 0
        %1777 = vmatprep.subr.mxu0 0.0
        %1778 = vmatpush1.msra.mxu0 %v1680
        %1779 = vmatprep.subr.mxu0 0.0
        %1780 = vmatpush1.msra.mxu0 0.0
        %1781 = vmatprep.subr.mxu0 0.0
        %1782 = vmatpush1.msra.mxu0 0.0
        %1783 = vmatprep.subr.mxu0 0.0
        %1784 = vmatpush1.msra.mxu0 0.0
        %1785 = vmatprep.subr.mxu0 0.0
        %1786 = vmatpush1.msra.mxu0 0.0
        %1787 = vmatprep.subr.mxu0 0.0
        %1788 = vmatpush1.msra.mxu0 0.0
        %1789 = vmatprep.subr.mxu0 0.0
        %1790 = vmatpush1.msra.mxu0 0.0
        %1791 = vmatprep.subr.mxu0 0.0
        %1792 = vmatpush1.msra.mxu0 0.0
        %1793 = vmatprep.subr.mxu0 0.0
        %1794 = vmatpush1.msra.mxu0 0.0
        %1795 = vmatprep.subr.mxu0 0.0
        %1796 = vmatpush1.msra.mxu0 0.0
        %1797 = vmatprep.subr.mxu0 0.0
        %1798 = vmatpush1.msra.mxu0 0.0
        %1799 = vmatprep.subr.mxu0 0.0
        %1800 = vmatpush1.msra.mxu0 0.0
        %1801 = vmatprep.subr.mxu0 0.0
        %1802 = vmatpush1.msra.mxu0 0.0
        %1803 = vmatprep.subr.mxu0 0.0
        %1804 = vmatpush1.msra.mxu0 0.0
        %1805 = vmatprep.subr.mxu0 0.0
        %1806 = vmatpush1.msra.mxu0 0.0
        %1807 = vmatprep.subr.mxu0 0.0
        %1808 = vmatpush1.msra.mxu0 0.0
        %1809 = vmatprep.subr.mxu0 0.0
        %1810 = vmatpush1.msra.mxu0 0.0
        %1811 = vmatprep.subr.mxu0 0.0
        %1812 = vmatpush1.msra.mxu0 0.0
        %1813 = vmatprep.subr.mxu0 0.0
        %1814 = vmatpush1.msra.mxu0 0.0
        %1815 = vmatprep.subr.mxu0 0.0
        %1816 = vmatpush1.msra.mxu0 0.0
        %1817 = vmatprep.subr.mxu0 0.0
        %1818 = vmatpush1.msra.mxu0 0.0
        %1819 = vmatprep.subr.mxu0 0.0
        %1820 = vmatpush1.msra.mxu0 0.0
        %1821 = vmatprep.subr.mxu0 0.0
        %1822 = vmatpush1.msra.mxu0 0.0
        %1823 = vmatprep.subr.mxu0 0.0
        %1824 = vmatpush1.msra.mxu0 0.0
        %1825 = vmatprep.subr.mxu0 0.0
        %1826 = vmatpush1.msra.mxu0 0.0
        %1827 = vmatprep.subr.mxu0 0.0
        %1828 = vmatpush1.msra.mxu0 0.0
        %1829 = vmatprep.subr.mxu0 0.0
        %1830 = vmatpush1.msra.mxu0 0.0
        %1831 = vmatprep.subr.mxu0 0.0
        %1832 = vmatpush1.msra.mxu0 0.0
        %1833 = vmatprep.subr.mxu0 0.0
        %1834 = vmatpush1.msra.mxu0 0.0
        %1835 = vmatprep.subr.mxu0 0.0
        %1836 = vmatpush1.msra.mxu0 0.0
        %1837 = vmatprep.subr.mxu0 0.0
        %1838 = vmatpush1.msra.mxu0 0.0
        %1839 = vmatprep.subr.mxu0 0.0
        %1840 = vmatpush1.msra.mxu0 0.0
        %1841 = vmatprep.mubr.f32.mxu0 0.0
        %1842 = vmatmul.mubr.f32.gmra.mrb[0].mxu0 %v1682
        %v1843 = vpop.f32.mrb[0].mxu0
        %v1844 = vadd.f32 0.0, %v1843
        %v1845 = vpop.f32.mrb[0].mxu0
        %1846 = vmatprep.mubr.f32.mxu0 0.0
        %1847 = vmatmul.mubr.f32.gmra.mrb[0].mxu0 %v1685
        %v1848 = vpop.f32.mrb[0].mxu0
        %v1849 = vadd.f32 0.0, %v1848
        %v1850 = vpop.f32.mrb[0].mxu0
        %1851 = vmatprep.mubr.f32.mxu0 0.0
        %1852 = vmatmul.mubr.f32.gmra.mrb[0].mxu0 %v1688
        %v1853 = vpop.f32.mrb[0].mxu0
        %v1854 = vadd.f32 0.0, %v1853
        %v1855 = vpop.f32.mrb[0].mxu0
        %1856 = vmatprep.mubr.f32.mxu0 0.0
        %1857 = vmatmul.mubr.f32.gmra.mrb[0].mxu0 %v1691
        %v1858 = vpop.f32.mrb[0].mxu0
        %v1859 = vadd.f32 0.0, %v1858
        %v1860 = vpop.f32.mrb[0].mxu0
        %1861 = vmatprep.mubr.f32.mxu0 0.0
        %1862 = vmatmul.mubr.f32.gmra.mrb[0].mxu0 %v1694
        %v1863 = vpop.f32.mrb[0].mxu0
        %v1864 = vadd.f32 0.0, %v1863
        %v1865 = vpop.f32.mrb[0].mxu0
        %1866 = vmatprep.mubr.f32.mxu0 0.0
        %1867 = vmatmul.mubr.f32.gmra.mrb[0].mxu0 %v1697
        %v1868 = vpop.f32.mrb[0].mxu0
        %v1869 = vadd.f32 0.0, %v1868
        %v1870 = vpop.f32.mrb[0].mxu0
        %1871 = vmatprep.mubr.f32.mxu0 0.0
        %1872 = vmatmul.mubr.f32.gmra.mrb[0].mxu0 %v1700
        %v1873 = vpop.f32.mrb[0].mxu0
        %v1874 = vadd.f32 0.0, %v1873
        %v1875 = vpop.f32.mrb[0].mxu0
        %1876 = vmatprep.mubr.f32.mxu0 0.0
        %1877 = vmatmul.mubr.f32.gmra.mrb[0].mxu0 %v1703
        %v1878 = vpop.f32.mrb[0].mxu0
        %v1879 = vadd.f32 0.0, %v1878
        %v1880 = vpop.f32.mrb[0].mxu0
        %1881 = vmatprep.mubr.f32.mxu0 0.0
        %1882 = vmatmul.mubr.f32.gmra.mrb[0].mxu0 %v1706
        %v1883 = vpop.f32.mrb[0].mxu0
        %v1884 = vadd.f32 0.0, %v1883
        %v1885 = vpop.f32.mrb[0].mxu0
        %1886 = vmatprep.mubr.f32.mxu0 0.0
        %1887 = vmatmul.mubr.f32.gmra.mrb[0].mxu0 %v1709
        %v1888 = vpop.f32.mrb[0].mxu0
        %v1889 = vadd.f32 0.0, %v1888
        %v1890 = vpop.f32.mrb[0].mxu0
        %1891 = vmatprep.mubr.f32.mxu0 0.0
        %1892 = vmatmul.mubr.f32.gmra.mrb[0].mxu0 %v1712
        %v1893 = vpop.f32.mrb[0].mxu0
        %v1894 = vadd.f32 0.0, %v1893
        %v1895 = vpop.f32.mrb[0].mxu0
        %1896 = vmatprep.mubr.f32.mxu0 0.0
        %1897 = vmatmul.mubr.f32.gmra.mrb[0].mxu0 %v1715
        %v1898 = vpop.f32.mrb[0].mxu0
        %v1899 = vadd.f32 0.0, %v1898
        %v1900 = vpop.f32.mrb[0].mxu0
        %1901 = vmatprep.mubr.f32.mxu0 0.0
        %1902 = vmatmul.mubr.f32.gmra.mrb[0].mxu0 %v1718
        %v1903 = vpop.f32.mrb[0].mxu0
        %v1904 = vadd.f32 0.0, %v1903
        %v1905 = vpop.f32.mrb[0].mxu0
        %1906 = vmatprep.mubr.f32.mxu0 0.0
        %1907 = vmatmul.mubr.f32.gmra.mrb[0].mxu0 %v1721
        %v1908 = vpop.f32.mrb[0].mxu0
        %v1909 = vadd.f32 0.0, %v1908
        %v1910 = vpop.f32.mrb[0].mxu0
        %1911 = vmatprep.mubr.f32.mxu0 0.0
        %1912 = vmatmul.mubr.f32.gmra.mrb[0].mxu0 %v1724
        %v1913 = vpop.f32.mrb[0].mxu0
        %v1914 = vadd.f32 0.0, %v1913
        %v1915 = vpop.f32.mrb[0].mxu0
        %1916 = vmatprep.mubr.f32.mxu0 0.0
        %1917 = vmatmul.mubr.f32.gmra.mrb[0].mxu0 %v1727
        %v1918 = vpop.f32.mrb[0].mxu0
        %v1919 = vadd.f32 0.0, %v1918
        %v1920 = vpop.f32.mrb[0].mxu0
        %1921 = vmatprep.mubr.f32.mxu0 0.0
        %1922 = vmatmul.mubr.f32.gmra.mrb[0].mxu0 %v1730
        %v1923 = vpop.f32.mrb[0].mxu0
        %v1924 = vadd.f32 0.0, %v1923
        %v1925 = vpop.f32.mrb[0].mxu0
        %1926 = vmatprep.mubr.f32.mxu0 0.0
        %1927 = vmatmul.mubr.f32.gmra.mrb[0].mxu0 %v1733
        %v1928 = vpop.f32.mrb[0].mxu0
        %v1929 = vadd.f32 0.0, %v1928
        %v1930 = vpop.f32.mrb[0].mxu0
        %1931 = vmatprep.mubr.f32.mxu0 0.0
        %1932 = vmatmul.mubr.f32.gmra.mrb[0].mxu0 %v1736
        %v1933 = vpop.f32.mrb[0].mxu0
        %v1934 = vadd.f32 0.0, %v1933
        %v1935 = vpop.f32.mrb[0].mxu0
        %1936 = vmatprep.mubr.f32.mxu0 0.0
        %1937 = vmatmul.mubr.f32.gmra.mrb[0].mxu0 %v1739
        %v1938 = vpop.f32.mrb[0].mxu0
        %v1939 = vadd.f32 0.0, %v1938
        %v1940 = vpop.f32.mrb[0].mxu0
        %1941 = vmatprep.mubr.f32.mxu0 0.0
        %1942 = vmatmul.mubr.f32.gmra.mrb[0].mxu0 %v1742
        %v1943 = vpop.f32.mrb[0].mxu0
        %v1944 = vadd.f32 0.0, %v1943
        %v1945 = vpop.f32.mrb[0].mxu0
        %1946 = vmatprep.mubr.f32.mxu0 0.0
        %1947 = vmatmul.mubr.f32.gmra.mrb[0].mxu0 %v1745
        %v1948 = vpop.f32.mrb[0].mxu0
        %v1949 = vadd.f32 0.0, %v1948
        %v1950 = vpop.f32.mrb[0].mxu0
        %1951 = vmatprep.mubr.f32.mxu0 0.0
        %1952 = vmatmul.mubr.f32.gmra.mrb[0].mxu0 %v1748
        %v1953 = vpop.f32.mrb[0].mxu0
        %v1954 = vadd.f32 0.0, %v1953
        %v1955 = vpop.f32.mrb[0].mxu0
        %1956 = vmatprep.mubr.f32.mxu0 0.0
        %1957 = vmatmul.mubr.f32.gmra.mrb[0].mxu0 %v1751
        %v1958 = vpop.f32.mrb[0].mxu0
        %v1959 = vadd.f32 0.0, %v1958
        %v1960 = vpop.f32.mrb[0].mxu0
        %1961 = vmatprep.mubr.f32.mxu0 0.0
        %1962 = vmatmul.mubr.f32.gmra.mrb[0].mxu0 %v1754
        %v1963 = vpop.f32.mrb[0].mxu0
        %v1964 = vadd.f32 0.0, %v1963
        %v1965 = vpop.f32.mrb[0].mxu0
        %1966 = vmatprep.mubr.f32.mxu0 0.0
        %1967 = vmatmul.mubr.f32.gmra.mrb[0].mxu0 %v1757
        %v1968 = vpop.f32.mrb[0].mxu0
        %v1969 = vadd.f32 0.0, %v1968
        %v1970 = vpop.f32.mrb[0].mxu0
        %1971 = vmatprep.mubr.f32.mxu0 0.0
        %1972 = vmatmul.mubr.f32.gmra.mrb[0].mxu0 %v1760
        %v1973 = vpop.f32.mrb[0].mxu0
        %v1974 = vadd.f32 0.0, %v1973
        %v1975 = vpop.f32.mrb[0].mxu0
        %1976 = vmatprep.mubr.f32.mxu0 0.0
        %1977 = vmatmul.mubr.f32.gmra.mrb[0].mxu0 %v1763
        %v1978 = vpop.f32.mrb[0].mxu0
        %v1979 = vadd.f32 0.0, %v1978
        %v1980 = vpop.f32.mrb[0].mxu0
        %1981 = vmatprep.mubr.f32.mxu0 0.0
        %1982 = vmatmul.mubr.f32.gmra.mrb[0].mxu0 %v1766
        %v1983 = vpop.f32.mrb[0].mxu0
        %v1984 = vadd.f32 0.0, %v1983
        %v1985 = vpop.f32.mrb[0].mxu0
        %1986 = vmatprep.mubr.f32.mxu0 0.0
        %1987 = vmatmul.mubr.f32.gmra.mrb[0].mxu0 %v1769
        %v1988 = vpop.f32.mrb[0].mxu0
        %v1989 = vadd.f32 0.0, %v1988
        %v1990 = vpop.f32.mrb[0].mxu0
        %1991 = vmatprep.mubr.f32.mxu0 0.0
        %1992 = vmatmul.mubr.f32.gmra.mrb[0].mxu0 %v1772
        %v1993 = vpop.f32.mrb[0].mxu0
        %v1994 = vadd.f32 0.0, %v1993
        %v1995 = vpop.f32.mrb[0].mxu0
        %1996 = vmatprep.mubr.f32.mxu0 0.0
        %1997 = vmatmul.mubr.f32.gmra.mrb[0].mxu0 %v1775
        %v1998 = vpop.f32.mrb[0].mxu0
        %v1999 = vadd.f32 0.0, %v1998
        %v2000 = vpop.f32.mrb[0].mxu0
        %2001 = vdwg.mxu0
        %v2002 = vadd.f32 %v1614, %v1844
        %v2003 = vadd.f32 %v1615, %v1849
        %v2004 = vadd.f32 %v1616, %v1854
        %v2005 = vadd.f32 %v1617, %v1859
        %v2006 = vadd.f32 %v1618, %v1864
        %v2007 = vadd.f32 %v1619, %v1869
        %v2008 = vadd.f32 %v1620, %v1874
        %v2009 = vadd.f32 %v1621, %v1879
        %v2010 = vadd.f32 %v1622, %v1884
        %v2011 = vadd.f32 %v1623, %v1889
        %v2012 = vadd.f32 %v1624, %v1894
        %v2013 = vadd.f32 %v1625, %v1899
        %v2014 = vadd.f32 %v1626, %v1904
        %v2015 = vadd.f32 %v1627, %v1909
        %v2016 = vadd.f32 %v1628, %v1914
        %v2017 = vadd.f32 %v1629, %v1919
        %v2018 = vadd.f32 %v1630, %v1924
        %v2019 = vadd.f32 %v1631, %v1929
        %v2020 = vadd.f32 %v1632, %v1934
        %v2021 = vadd.f32 %v1633, %v1939
        %v2022 = vadd.f32 %v1634, %v1944
        %v2023 = vadd.f32 %v1635, %v1949
        %v2024 = vadd.f32 %v1636, %v1954
        %v2025 = vadd.f32 %v1637, %v1959
        %v2026 = vadd.f32 %v1638, %v1964
        %v2027 = vadd.f32 %v1639, %v1969
        %v2028 = vadd.f32 %v1640, %v1974
        %v2029 = vadd.f32 %v1641, %v1979
        %v2030 = vadd.f32 %v1642, %v1984
        %v2031 = vadd.f32 %v1643, %v1989
        %v2032 = vadd.f32 %v1644, %v1994
        %v2033 = vadd.f32 %v1645, %v1999
        %v2034 = vld [vmem:[%s1257 + $0x2] sm:$0xff]
        %v2035 = vld [vmem:[%s1257 + $0xa] sm:$0xff]
        %v2036 = vld [vmem:[%s1257 + $0x1a] sm:$0xff]
        %v2037 = vld [vmem:[%s1257 + $0x22] sm:$0xff]
        %v2038 = vld [vmem:[%s1257 + $0x32] sm:$0xff]
        %v2039 = vld [vmem:[%s1257 + $0x3a] sm:$0xff]
        %v2040 = vld [vmem:[%s1257 + $0x4a] sm:$0xff]
        %v2041 = vld [vmem:[%s1257 + $0x52] sm:$0xff]
        %v2042 = vld [vmem:[%s1257 + $0x62] sm:$0xff]
        %v2043 = vld [vmem:[%s1257 + $0x6a] sm:$0xff]
        %v2044 = vld [vmem:[%s1257 + $0x7a] sm:$0xff]
        %v2045 = vld [vmem:[%s1257 + $0x82] sm:$0xff]
        %v2046 = vld [vmem:[%s1257 + $0x92] sm:$0xff]
        %v2047 = vld [vmem:[%s1257 + $0x9a] sm:$0xff]
        %v2048 = vld [vmem:[%s1257 + $0xaa] sm:$0xff]
        %v2049 = vld [vmem:[%s1257 + $0xb2] sm:$0xff]
        %v2050 = vld [vmem:[%s1257 + $0xc2] sm:$0xff]
        %v2051 = vld [vmem:[%s1257 + $0xca] sm:$0xff]
        %v2052 = vld [vmem:[%s1257 + $0xda] sm:$0xff]
        %v2053 = vld [vmem:[%s1257 + $0xe2] sm:$0xff]
        %v2054 = vld [vmem:[%s1257 + $0xf2] sm:$0xff]
        %v2055 = vld [vmem:[%s1257 + $0xfa] sm:$0xff]
        %v2056 = vld [vmem:[%s1257 + $0x10a] sm:$0xff]
        %v2057 = vld [vmem:[%s1257 + $0x112] sm:$0xff]
        %v2058 = vld [vmem:[%s1257 + $0x122] sm:$0xff]
        %v2059 = vld [vmem:[%s1257 + $0x12a] sm:$0xff]
        %v2060 = vld [vmem:[%s1257 + $0x13a] sm:$0xff]
        %v2061 = vld [vmem:[%s1257 + $0x142] sm:$0xff]
        %v2062 = vld [vmem:[%s1257 + $0x152] sm:$0xff]
        %v2063 = vld [vmem:[%s1257 + $0x15a] sm:$0xff]
        %v2064 = vld [vmem:[%s1257 + $0x16a] sm:$0xff]
        %v2065 = vld [vmem:[%s1257 + $0x172] sm:$0xff]
        %s2066 = sadd.s32 40, %s188
        %s2067 = scalar_lea.vmem %s1, %s2066
        %v2068 = vld [vmem:[%s2067] sm:$0xff]
        %v2070 = vsel %vm226, %v2034, 0
        %v2073 = vsel %vm226, %v2035, 0
        %v2076 = vsel %vm226, %v2036, 0
        %v2079 = vsel %vm226, %v2037, 0
        %v2082 = vsel %vm226, %v2038, 0
        %v2085 = vsel %vm226, %v2039, 0
        %v2088 = vsel %vm226, %v2040, 0
        %v2091 = vsel %vm226, %v2041, 0
        %v2094 = vsel %vm226, %v2042, 0
        %v2097 = vsel %vm226, %v2043, 0
        %v2100 = vsel %vm226, %v2044, 0
        %v2103 = vsel %vm226, %v2045, 0
        %v2106 = vsel %vm226, %v2046, 0
        %v2109 = vsel %vm226, %v2047, 0
        %v2112 = vsel %vm226, %v2048, 0
        %v2115 = vsel %vm226, %v2049, 0
        %v2118 = vsel %vm226, %v2050, 0
        %v2121 = vsel %vm226, %v2051, 0
        %v2124 = vsel %vm226, %v2052, 0
        %v2127 = vsel %vm226, %v2053, 0
        %v2130 = vsel %vm226, %v2054, 0
        %v2133 = vsel %vm226, %v2055, 0
        %v2136 = vsel %vm226, %v2056, 0
        %v2139 = vsel %vm226, %v2057, 0
        %v2142 = vsel %vm226, %v2058, 0
        %v2145 = vsel %vm226, %v2059, 0
        %v2148 = vsel %vm226, %v2060, 0
        %v2151 = vsel %vm226, %v2061, 0
        %v2154 = vsel %vm226, %v2062, 0
        %v2157 = vsel %vm226, %v2063, 0
        %v2160 = vsel %vm226, %v2064, 0
        %v2163 = vsel %vm226, %v2065, 0
        %2165 = vmatprep.subr.mxu0 0.0
        %2166 = vmatpush1.msra.mxu0 %v2068
        %2167 = vmatprep.subr.mxu0 0.0
        %2168 = vmatpush1.msra.mxu0 0.0
        %2169 = vmatprep.subr.mxu0 0.0
        %2170 = vmatpush1.msra.mxu0 0.0
        %2171 = vmatprep.subr.mxu0 0.0
        %2172 = vmatpush1.msra.mxu0 0.0
        %2173 = vmatprep.subr.mxu0 0.0
        %2174 = vmatpush1.msra.mxu0 0.0
        %2175 = vmatprep.subr.mxu0 0.0
        %2176 = vmatpush1.msra.mxu0 0.0
        %2177 = vmatprep.subr.mxu0 0.0
        %2178 = vmatpush1.msra.mxu0 0.0
        %2179 = vmatprep.subr.mxu0 0.0
        %2180 = vmatpush1.msra.mxu0 0.0
        %2181 = vmatprep.subr.mxu0 0.0
        %2182 = vmatpush1.msra.mxu0 0.0
        %2183 = vmatprep.subr.mxu0 0.0
        %2184 = vmatpush1.msra.mxu0 0.0
        %2185 = vmatprep.subr.mxu0 0.0
        %2186 = vmatpush1.msra.mxu0 0.0
        %2187 = vmatprep.subr.mxu0 0.0
        %2188 = vmatpush1.msra.mxu0 0.0
        %2189 = vmatprep.subr.mxu0 0.0
        %2190 = vmatpush1.msra.mxu0 0.0
        %2191 = vmatprep.subr.mxu0 0.0
        %2192 = vmatpush1.msra.mxu0 0.0
        %2193 = vmatprep.subr.mxu0 0.0
        %2194 = vmatpush1.msra.mxu0 0.0
        %2195 = vmatprep.subr.mxu0 0.0
        %2196 = vmatpush1.msra.mxu0 0.0
        %2197 = vmatprep.subr.mxu0 0.0
        %2198 = vmatpush1.msra.mxu0 0.0
        %2199 = vmatprep.subr.mxu0 0.0
        %2200 = vmatpush1.msra.mxu0 0.0
        %2201 = vmatprep.subr.mxu0 0.0
        %2202 = vmatpush1.msra.mxu0 0.0
        %2203 = vmatprep.subr.mxu0 0.0
        %2204 = vmatpush1.msra.mxu0 0.0
        %2205 = vmatprep.subr.mxu0 0.0
        %2206 = vmatpush1.msra.mxu0 0.0
        %2207 = vmatprep.subr.mxu0 0.0
        %2208 = vmatpush1.msra.mxu0 0.0
        %2209 = vmatprep.subr.mxu0 0.0
        %2210 = vmatpush1.msra.mxu0 0.0
        %2211 = vmatprep.subr.mxu0 0.0
        %2212 = vmatpush1.msra.mxu0 0.0
        %2213 = vmatprep.subr.mxu0 0.0
        %2214 = vmatpush1.msra.mxu0 0.0
        %2215 = vmatprep.subr.mxu0 0.0
        %2216 = vmatpush1.msra.mxu0 0.0
        %2217 = vmatprep.subr.mxu0 0.0
        %2218 = vmatpush1.msra.mxu0 0.0
        %2219 = vmatprep.subr.mxu0 0.0
        %2220 = vmatpush1.msra.mxu0 0.0
        %2221 = vmatprep.subr.mxu0 0.0
        %2222 = vmatpush1.msra.mxu0 0.0
        %2223 = vmatprep.subr.mxu0 0.0
        %2224 = vmatpush1.msra.mxu0 0.0
        %2225 = vmatprep.subr.mxu0 0.0
        %2226 = vmatpush1.msra.mxu0 0.0
        %2227 = vmatprep.subr.mxu0 0.0
        %2228 = vmatpush1.msra.mxu0 0.0
        %2229 = vmatprep.mubr.f32.mxu0 0.0
        %2230 = vmatmul.mubr.f32.gmra.mrb[0].mxu0 %v2070
        %v2231 = vpop.f32.mrb[0].mxu0
        %v2232 = vadd.f32 0.0, %v2231
        %v2233 = vpop.f32.mrb[0].mxu0
        %2234 = vmatprep.mubr.f32.mxu0 0.0
        %2235 = vmatmul.mubr.f32.gmra.mrb[0].mxu0 %v2073
        %v2236 = vpop.f32.mrb[0].mxu0
        %v2237 = vadd.f32 0.0, %v2236
        %v2238 = vpop.f32.mrb[0].mxu0
        %2239 = vmatprep.mubr.f32.mxu0 0.0
        %2240 = vmatmul.mubr.f32.gmra.mrb[0].mxu0 %v2076
        %v2241 = vpop.f32.mrb[0].mxu0
        %v2242 = vadd.f32 0.0, %v2241
        %v2243 = vpop.f32.mrb[0].mxu0
        %2244 = vmatprep.mubr.f32.mxu0 0.0
        %2245 = vmatmul.mubr.f32.gmra.mrb[0].mxu0 %v2079
        %v2246 = vpop.f32.mrb[0].mxu0
        %v2247 = vadd.f32 0.0, %v2246
        %v2248 = vpop.f32.mrb[0].mxu0
        %2249 = vmatprep.mubr.f32.mxu0 0.0
        %2250 = vmatmul.mubr.f32.gmra.mrb[0].mxu0 %v2082
        %v2251 = vpop.f32.mrb[0].mxu0
        %v2252 = vadd.f32 0.0, %v2251
        %v2253 = vpop.f32.mrb[0].mxu0
        %2254 = vmatprep.mubr.f32.mxu0 0.0
        %2255 = vmatmul.mubr.f32.gmra.mrb[0].mxu0 %v2085
        %v2256 = vpop.f32.mrb[0].mxu0
        %v2257 = vadd.f32 0.0, %v2256
        %v2258 = vpop.f32.mrb[0].mxu0
        %2259 = vmatprep.mubr.f32.mxu0 0.0
        %2260 = vmatmul.mubr.f32.gmra.mrb[0].mxu0 %v2088
        %v2261 = vpop.f32.mrb[0].mxu0
        %v2262 = vadd.f32 0.0, %v2261
        %v2263 = vpop.f32.mrb[0].mxu0
        %2264 = vmatprep.mubr.f32.mxu0 0.0
        %2265 = vmatmul.mubr.f32.gmra.mrb[0].mxu0 %v2091
        %v2266 = vpop.f32.mrb[0].mxu0
        %v2267 = vadd.f32 0.0, %v2266
        %v2268 = vpop.f32.mrb[0].mxu0
        %2269 = vmatprep.mubr.f32.mxu0 0.0
        %2270 = vmatmul.mubr.f32.gmra.mrb[0].mxu0 %v2094
        %v2271 = vpop.f32.mrb[0].mxu0
        %v2272 = vadd.f32 0.0, %v2271
        %v2273 = vpop.f32.mrb[0].mxu0
        %2274 = vmatprep.mubr.f32.mxu0 0.0
        %2275 = vmatmul.mubr.f32.gmra.mrb[0].mxu0 %v2097
        %v2276 = vpop.f32.mrb[0].mxu0
        %v2277 = vadd.f32 0.0, %v2276
        %v2278 = vpop.f32.mrb[0].mxu0
        %2279 = vmatprep.mubr.f32.mxu0 0.0
        %2280 = vmatmul.mubr.f32.gmra.mrb[0].mxu0 %v2100
        %v2281 = vpop.f32.mrb[0].mxu0
        %v2282 = vadd.f32 0.0, %v2281
        %v2283 = vpop.f32.mrb[0].mxu0
        %2284 = vmatprep.mubr.f32.mxu0 0.0
        %2285 = vmatmul.mubr.f32.gmra.mrb[0].mxu0 %v2103
        %v2286 = vpop.f32.mrb[0].mxu0
        %v2287 = vadd.f32 0.0, %v2286
        %v2288 = vpop.f32.mrb[0].mxu0
        %2289 = vmatprep.mubr.f32.mxu0 0.0
        %2290 = vmatmul.mubr.f32.gmra.mrb[0].mxu0 %v2106
        %v2291 = vpop.f32.mrb[0].mxu0
        %v2292 = vadd.f32 0.0, %v2291
        %v2293 = vpop.f32.mrb[0].mxu0
        %2294 = vmatprep.mubr.f32.mxu0 0.0
        %2295 = vmatmul.mubr.f32.gmra.mrb[0].mxu0 %v2109
        %v2296 = vpop.f32.mrb[0].mxu0
        %v2297 = vadd.f32 0.0, %v2296
        %v2298 = vpop.f32.mrb[0].mxu0
        %2299 = vmatprep.mubr.f32.mxu0 0.0
        %2300 = vmatmul.mubr.f32.gmra.mrb[0].mxu0 %v2112
        %v2301 = vpop.f32.mrb[0].mxu0
        %v2302 = vadd.f32 0.0, %v2301
        %v2303 = vpop.f32.mrb[0].mxu0
        %2304 = vmatprep.mubr.f32.mxu0 0.0
        %2305 = vmatmul.mubr.f32.gmra.mrb[0].mxu0 %v2115
        %v2306 = vpop.f32.mrb[0].mxu0
        %v2307 = vadd.f32 0.0, %v2306
        %v2308 = vpop.f32.mrb[0].mxu0
        %2309 = vmatprep.mubr.f32.mxu0 0.0
        %2310 = vmatmul.mubr.f32.gmra.mrb[0].mxu0 %v2118
        %v2311 = vpop.f32.mrb[0].mxu0
        %v2312 = vadd.f32 0.0, %v2311
        %v2313 = vpop.f32.mrb[0].mxu0
        %2314 = vmatprep.mubr.f32.mxu0 0.0
        %2315 = vmatmul.mubr.f32.gmra.mrb[0].mxu0 %v2121
        %v2316 = vpop.f32.mrb[0].mxu0
        %v2317 = vadd.f32 0.0, %v2316
        %v2318 = vpop.f32.mrb[0].mxu0
        %2319 = vmatprep.mubr.f32.mxu0 0.0
        %2320 = vmatmul.mubr.f32.gmra.mrb[0].mxu0 %v2124
        %v2321 = vpop.f32.mrb[0].mxu0
        %v2322 = vadd.f32 0.0, %v2321
        %v2323 = vpop.f32.mrb[0].mxu0
        %2324 = vmatprep.mubr.f32.mxu0 0.0
        %2325 = vmatmul.mubr.f32.gmra.mrb[0].mxu0 %v2127
        %v2326 = vpop.f32.mrb[0].mxu0
        %v2327 = vadd.f32 0.0, %v2326
        %v2328 = vpop.f32.mrb[0].mxu0
        %2329 = vmatprep.mubr.f32.mxu0 0.0
        %2330 = vmatmul.mubr.f32.gmra.mrb[0].mxu0 %v2130
        %v2331 = vpop.f32.mrb[0].mxu0
        %v2332 = vadd.f32 0.0, %v2331
        %v2333 = vpop.f32.mrb[0].mxu0
        %2334 = vmatprep.mubr.f32.mxu0 0.0
        %2335 = vmatmul.mubr.f32.gmra.mrb[0].mxu0 %v2133
        %v2336 = vpop.f32.mrb[0].mxu0
        %v2337 = vadd.f32 0.0, %v2336
        %v2338 = vpop.f32.mrb[0].mxu0
        %2339 = vmatprep.mubr.f32.mxu0 0.0
        %2340 = vmatmul.mubr.f32.gmra.mrb[0].mxu0 %v2136
        %v2341 = vpop.f32.mrb[0].mxu0
        %v2342 = vadd.f32 0.0, %v2341
        %v2343 = vpop.f32.mrb[0].mxu0
        %2344 = vmatprep.mubr.f32.mxu0 0.0
        %2345 = vmatmul.mubr.f32.gmra.mrb[0].mxu0 %v2139
        %v2346 = vpop.f32.mrb[0].mxu0
        %v2347 = vadd.f32 0.0, %v2346
        %v2348 = vpop.f32.mrb[0].mxu0
        %2349 = vmatprep.mubr.f32.mxu0 0.0
        %2350 = vmatmul.mubr.f32.gmra.mrb[0].mxu0 %v2142
        %v2351 = vpop.f32.mrb[0].mxu0
        %v2352 = vadd.f32 0.0, %v2351
        %v2353 = vpop.f32.mrb[0].mxu0
        %2354 = vmatprep.mubr.f32.mxu0 0.0
        %2355 = vmatmul.mubr.f32.gmra.mrb[0].mxu0 %v2145
        %v2356 = vpop.f32.mrb[0].mxu0
        %v2357 = vadd.f32 0.0, %v2356
        %v2358 = vpop.f32.mrb[0].mxu0
        %2359 = vmatprep.mubr.f32.mxu0 0.0
        %2360 = vmatmul.mubr.f32.gmra.mrb[0].mxu0 %v2148
        %v2361 = vpop.f32.mrb[0].mxu0
        %v2362 = vadd.f32 0.0, %v2361
        %v2363 = vpop.f32.mrb[0].mxu0
        %2364 = vmatprep.mubr.f32.mxu0 0.0
        %2365 = vmatmul.mubr.f32.gmra.mrb[0].mxu0 %v2151
        %v2366 = vpop.f32.mrb[0].mxu0
        %v2367 = vadd.f32 0.0, %v2366
        %v2368 = vpop.f32.mrb[0].mxu0
        %2369 = vmatprep.mubr.f32.mxu0 0.0
        %2370 = vmatmul.mubr.f32.gmra.mrb[0].mxu0 %v2154
        %v2371 = vpop.f32.mrb[0].mxu0
        %v2372 = vadd.f32 0.0, %v2371
        %v2373 = vpop.f32.mrb[0].mxu0
        %2374 = vmatprep.mubr.f32.mxu0 0.0
        %2375 = vmatmul.mubr.f32.gmra.mrb[0].mxu0 %v2157
        %v2376 = vpop.f32.mrb[0].mxu0
        %v2377 = vadd.f32 0.0, %v2376
        %v2378 = vpop.f32.mrb[0].mxu0
        %2379 = vmatprep.mubr.f32.mxu0 0.0
        %2380 = vmatmul.mubr.f32.gmra.mrb[0].mxu0 %v2160
        %v2381 = vpop.f32.mrb[0].mxu0
        %v2382 = vadd.f32 0.0, %v2381
        %v2383 = vpop.f32.mrb[0].mxu0
        %2384 = vmatprep.mubr.f32.mxu0 0.0
        %2385 = vmatmul.mubr.f32.gmra.mrb[0].mxu0 %v2163
        %v2386 = vpop.f32.mrb[0].mxu0
        %v2387 = vadd.f32 0.0, %v2386
        %v2388 = vpop.f32.mrb[0].mxu0
        %2389 = vdwg.mxu0
        %v2390 = vadd.f32 %v2002, %v2232
        %v2391 = vadd.f32 %v2003, %v2237
        %v2392 = vadd.f32 %v2004, %v2242
        %v2393 = vadd.f32 %v2005, %v2247
        %v2394 = vadd.f32 %v2006, %v2252
        %v2395 = vadd.f32 %v2007, %v2257
        %v2396 = vadd.f32 %v2008, %v2262
        %v2397 = vadd.f32 %v2009, %v2267
        %v2398 = vadd.f32 %v2010, %v2272
        %v2399 = vadd.f32 %v2011, %v2277
        %v2400 = vadd.f32 %v2012, %v2282
        %v2401 = vadd.f32 %v2013, %v2287
        %v2402 = vadd.f32 %v2014, %v2292
        %v2403 = vadd.f32 %v2015, %v2297
        %v2404 = vadd.f32 %v2016, %v2302
        %v2405 = vadd.f32 %v2017, %v2307
        %v2406 = vadd.f32 %v2018, %v2312
        %v2407 = vadd.f32 %v2019, %v2317
        %v2408 = vadd.f32 %v2020, %v2322
        %v2409 = vadd.f32 %v2021, %v2327
        %v2410 = vadd.f32 %v2022, %v2332
        %v2411 = vadd.f32 %v2023, %v2337
        %v2412 = vadd.f32 %v2024, %v2342
        %v2413 = vadd.f32 %v2025, %v2347
        %v2414 = vadd.f32 %v2026, %v2352
        %v2415 = vadd.f32 %v2027, %v2357
        %v2416 = vadd.f32 %v2028, %v2362
        %v2417 = vadd.f32 %v2029, %v2367
        %v2418 = vadd.f32 %v2030, %v2372
        %v2419 = vadd.f32 %v2031, %v2377
        %v2420 = vadd.f32 %v2032, %v2382
        %v2421 = vadd.f32 %v2033, %v2387
        %s2422 = scalar_lea.vmem %s155, 48
        %v2423 = vld [vmem:[%s2422] sm:$0xff]
        %v2424 = vld [vmem:[%s2422 + $0x8] sm:$0xff]
        %v2425 = vld [vmem:[%s2422 + $0x18] sm:$0xff]
        %v2426 = vld [vmem:[%s2422 + $0x20] sm:$0xff]
        %v2427 = vld [vmem:[%s2422 + $0x30] sm:$0xff]
        %v2428 = vld [vmem:[%s2422 + $0x38] sm:$0xff]
        %v2429 = vld [vmem:[%s2422 + $0x48] sm:$0xff]
        %v2430 = vld [vmem:[%s2422 + $0x50] sm:$0xff]
        %v2431 = vld [vmem:[%s2422 + $0x60] sm:$0xff]
        %v2432 = vld [vmem:[%s2422 + $0x68] sm:$0xff]
        %v2433 = vld [vmem:[%s2422 + $0x78] sm:$0xff]
        %v2434 = vld [vmem:[%s2422 + $0x80] sm:$0xff]
        %v2435 = vld [vmem:[%s2422 + $0x90] sm:$0xff]
        %v2436 = vld [vmem:[%s2422 + $0x98] sm:$0xff]
        %v2437 = vld [vmem:[%s2422 + $0xa8] sm:$0xff]
        %v2438 = vld [vmem:[%s2422 + $0xb0] sm:$0xff]
        %v2439 = vld [vmem:[%s2422 + $0xc0] sm:$0xff]
        %v2440 = vld [vmem:[%s2422 + $0xc8] sm:$0xff]
        %v2441 = vld [vmem:[%s2422 + $0xd8] sm:$0xff]
        %v2442 = vld [vmem:[%s2422 + $0xe0] sm:$0xff]
        %v2443 = vld [vmem:[%s2422 + $0xf0] sm:$0xff]
        %v2444 = vld [vmem:[%s2422 + $0xf8] sm:$0xff]
        %v2445 = vld [vmem:[%s2422 + $0x108] sm:$0xff]
        %v2446 = vld [vmem:[%s2422 + $0x110] sm:$0xff]
        %v2447 = vld [vmem:[%s2422 + $0x120] sm:$0xff]
        %v2448 = vld [vmem:[%s2422 + $0x128] sm:$0xff]
        %v2449 = vld [vmem:[%s2422 + $0x138] sm:$0xff]
        %v2450 = vld [vmem:[%s2422 + $0x140] sm:$0xff]
        %v2451 = vld [vmem:[%s2422 + $0x150] sm:$0xff]
        %v2452 = vld [vmem:[%s2422 + $0x158] sm:$0xff]
        %v2453 = vld [vmem:[%s2422 + $0x168] sm:$0xff]
        %v2454 = vld [vmem:[%s2422 + $0x170] sm:$0xff]
        %s2455 = sadd.s32 48, %s188
        %s2456 = scalar_lea.vmem %s1, %s2455
        %v2457 = vld [vmem:[%s2456] sm:$0xff]
        %v2459 = vsel %vm226, %v2423, 0
        %v2462 = vsel %vm226, %v2424, 0
        %v2465 = vsel %vm226, %v2425, 0
        %v2468 = vsel %vm226, %v2426, 0
        %v2471 = vsel %vm226, %v2427, 0
        %v2474 = vsel %vm226, %v2428, 0
        %v2477 = vsel %vm226, %v2429, 0
        %v2480 = vsel %vm226, %v2430, 0
        %v2483 = vsel %vm226, %v2431, 0
        %v2486 = vsel %vm226, %v2432, 0
        %v2489 = vsel %vm226, %v2433, 0
        %v2492 = vsel %vm226, %v2434, 0
        %v2495 = vsel %vm226, %v2435, 0
        %v2498 = vsel %vm226, %v2436, 0
        %v2501 = vsel %vm226, %v2437, 0
        %v2504 = vsel %vm226, %v2438, 0
        %v2507 = vsel %vm226, %v2439, 0
        %v2510 = vsel %vm226, %v2440, 0
        %v2513 = vsel %vm226, %v2441, 0
        %v2516 = vsel %vm226, %v2442, 0
        %v2519 = vsel %vm226, %v2443, 0
        %v2522 = vsel %vm226, %v2444, 0
        %v2525 = vsel %vm226, %v2445, 0
        %v2528 = vsel %vm226, %v2446, 0
        %v2531 = vsel %vm226, %v2447, 0
        %v2534 = vsel %vm226, %v2448, 0
        %v2537 = vsel %vm226, %v2449, 0
        %v2540 = vsel %vm226, %v2450, 0
        %v2543 = vsel %vm226, %v2451, 0
        %v2546 = vsel %vm226, %v2452, 0
        %v2549 = vsel %vm226, %v2453, 0
        %v2552 = vsel %vm226, %v2454, 0
        %2554 = vmatprep.subr.mxu0 0.0
        %2555 = vmatpush1.msra.mxu0 %v2457
        %2556 = vmatprep.subr.mxu0 0.0
        %2557 = vmatpush1.msra.mxu0 0.0
        %2558 = vmatprep.subr.mxu0 0.0
        %2559 = vmatpush1.msra.mxu0 0.0
        %2560 = vmatprep.subr.mxu0 0.0
        %2561 = vmatpush1.msra.mxu0 0.0
        %2562 = vmatprep.subr.mxu0 0.0
        %2563 = vmatpush1.msra.mxu0 0.0
        %2564 = vmatprep.subr.mxu0 0.0
        %2565 = vmatpush1.msra.mxu0 0.0
        %2566 = vmatprep.subr.mxu0 0.0
        %2567 = vmatpush1.msra.mxu0 0.0
        %2568 = vmatprep.subr.mxu0 0.0
        %2569 = vmatpush1.msra.mxu0 0.0
        %2570 = vmatprep.subr.mxu0 0.0
        %2571 = vmatpush1.msra.mxu0 0.0
        %2572 = vmatprep.subr.mxu0 0.0
        %2573 = vmatpush1.msra.mxu0 0.0
        %2574 = vmatprep.subr.mxu0 0.0
        %2575 = vmatpush1.msra.mxu0 0.0
        %2576 = vmatprep.subr.mxu0 0.0
        %2577 = vmatpush1.msra.mxu0 0.0
        %2578 = vmatprep.subr.mxu0 0.0
        %2579 = vmatpush1.msra.mxu0 0.0
        %2580 = vmatprep.subr.mxu0 0.0
        %2581 = vmatpush1.msra.mxu0 0.0
        %2582 = vmatprep.subr.mxu0 0.0
        %2583 = vmatpush1.msra.mxu0 0.0
        %2584 = vmatprep.subr.mxu0 0.0
        %2585 = vmatpush1.msra.mxu0 0.0
        %2586 = vmatprep.subr.mxu0 0.0
        %2587 = vmatpush1.msra.mxu0 0.0
        %2588 = vmatprep.subr.mxu0 0.0
        %2589 = vmatpush1.msra.mxu0 0.0
        %2590 = vmatprep.subr.mxu0 0.0
        %2591 = vmatpush1.msra.mxu0 0.0
        %2592 = vmatprep.subr.mxu0 0.0
        %2593 = vmatpush1.msra.mxu0 0.0
        %2594 = vmatprep.subr.mxu0 0.0
        %2595 = vmatpush1.msra.mxu0 0.0
        %2596 = vmatprep.subr.mxu0 0.0
        %2597 = vmatpush1.msra.mxu0 0.0
        %2598 = vmatprep.subr.mxu0 0.0
        %2599 = vmatpush1.msra.mxu0 0.0
        %2600 = vmatprep.subr.mxu0 0.0
        %2601 = vmatpush1.msra.mxu0 0.0
        %2602 = vmatprep.subr.mxu0 0.0
        %2603 = vmatpush1.msra.mxu0 0.0
        %2604 = vmatprep.subr.mxu0 0.0
        %2605 = vmatpush1.msra.mxu0 0.0
        %2606 = vmatprep.subr.mxu0 0.0
        %2607 = vmatpush1.msra.mxu0 0.0
        %2608 = vmatprep.subr.mxu0 0.0
        %2609 = vmatpush1.msra.mxu0 0.0
        %2610 = vmatprep.subr.mxu0 0.0
        %2611 = vmatpush1.msra.mxu0 0.0
        %2612 = vmatprep.subr.mxu0 0.0
        %2613 = vmatpush1.msra.mxu0 0.0
        %2614 = vmatprep.subr.mxu0 0.0
        %2615 = vmatpush1.msra.mxu0 0.0
        %2616 = vmatprep.subr.mxu0 0.0
        %2617 = vmatpush1.msra.mxu0 0.0
        %2618 = vmatprep.mubr.f32.mxu0 0.0
        %2619 = vmatmul.mubr.f32.gmra.mrb[0].mxu0 %v2459
        %v2620 = vpop.f32.mrb[0].mxu0
        %v2621 = vadd.f32 0.0, %v2620
        %v2622 = vpop.f32.mrb[0].mxu0
        %2623 = vmatprep.mubr.f32.mxu0 0.0
        %2624 = vmatmul.mubr.f32.gmra.mrb[0].mxu0 %v2462
        %v2625 = vpop.f32.mrb[0].mxu0
        %v2626 = vadd.f32 0.0, %v2625
        %v2627 = vpop.f32.mrb[0].mxu0
        %2628 = vmatprep.mubr.f32.mxu0 0.0
        %2629 = vmatmul.mubr.f32.gmra.mrb[0].mxu0 %v2465
        %v2630 = vpop.f32.mrb[0].mxu0
        %v2631 = vadd.f32 0.0, %v2630
        %v2632 = vpop.f32.mrb[0].mxu0
        %2633 = vmatprep.mubr.f32.mxu0 0.0
        %2634 = vmatmul.mubr.f32.gmra.mrb[0].mxu0 %v2468
        %v2635 = vpop.f32.mrb[0].mxu0
        %v2636 = vadd.f32 0.0, %v2635
        %v2637 = vpop.f32.mrb[0].mxu0
        %2638 = vmatprep.mubr.f32.mxu0 0.0
        %2639 = vmatmul.mubr.f32.gmra.mrb[0].mxu0 %v2471
        %v2640 = vpop.f32.mrb[0].mxu0
        %v2641 = vadd.f32 0.0, %v2640
        %v2642 = vpop.f32.mrb[0].mxu0
        %2643 = vmatprep.mubr.f32.mxu0 0.0
        %2644 = vmatmul.mubr.f32.gmra.mrb[0].mxu0 %v2474
        %v2645 = vpop.f32.mrb[0].mxu0
        %v2646 = vadd.f32 0.0, %v2645
        %v2647 = vpop.f32.mrb[0].mxu0
        %2648 = vmatprep.mubr.f32.mxu0 0.0
        %2649 = vmatmul.mubr.f32.gmra.mrb[0].mxu0 %v2477
        %v2650 = vpop.f32.mrb[0].mxu0
        %v2651 = vadd.f32 0.0, %v2650
        %v2652 = vpop.f32.mrb[0].mxu0
        %2653 = vmatprep.mubr.f32.mxu0 0.0
        %2654 = vmatmul.mubr.f32.gmra.mrb[0].mxu0 %v2480
        %v2655 = vpop.f32.mrb[0].mxu0
        %v2656 = vadd.f32 0.0, %v2655
        %v2657 = vpop.f32.mrb[0].mxu0
        %2658 = vmatprep.mubr.f32.mxu0 0.0
        %2659 = vmatmul.mubr.f32.gmra.mrb[0].mxu0 %v2483
        %v2660 = vpop.f32.mrb[0].mxu0
        %v2661 = vadd.f32 0.0, %v2660
        %v2662 = vpop.f32.mrb[0].mxu0
        %2663 = vmatprep.mubr.f32.mxu0 0.0
        %2664 = vmatmul.mubr.f32.gmra.mrb[0].mxu0 %v2486
        %v2665 = vpop.f32.mrb[0].mxu0
        %v2666 = vadd.f32 0.0, %v2665
        %v2667 = vpop.f32.mrb[0].mxu0
        %2668 = vmatprep.mubr.f32.mxu0 0.0
        %2669 = vmatmul.mubr.f32.gmra.mrb[0].mxu0 %v2489
        %v2670 = vpop.f32.mrb[0].mxu0
        %v2671 = vadd.f32 0.0, %v2670
        %v2672 = vpop.f32.mrb[0].mxu0
        %2673 = vmatprep.mubr.f32.mxu0 0.0
        %2674 = vmatmul.mubr.f32.gmra.mrb[0].mxu0 %v2492
        %v2675 = vpop.f32.mrb[0].mxu0
        %v2676 = vadd.f32 0.0, %v2675
        %v2677 = vpop.f32.mrb[0].mxu0
        %2678 = vmatprep.mubr.f32.mxu0 0.0
        %2679 = vmatmul.mubr.f32.gmra.mrb[0].mxu0 %v2495
        %v2680 = vpop.f32.mrb[0].mxu0
        %v2681 = vadd.f32 0.0, %v2680
        %v2682 = vpop.f32.mrb[0].mxu0
        %2683 = vmatprep.mubr.f32.mxu0 0.0
        %2684 = vmatmul.mubr.f32.gmra.mrb[0].mxu0 %v2498
        %v2685 = vpop.f32.mrb[0].mxu0
        %v2686 = vadd.f32 0.0, %v2685
        %v2687 = vpop.f32.mrb[0].mxu0
        %2688 = vmatprep.mubr.f32.mxu0 0.0
        %2689 = vmatmul.mubr.f32.gmra.mrb[0].mxu0 %v2501
        %v2690 = vpop.f32.mrb[0].mxu0
        %v2691 = vadd.f32 0.0, %v2690
        %v2692 = vpop.f32.mrb[0].mxu0
        %2693 = vmatprep.mubr.f32.mxu0 0.0
        %2694 = vmatmul.mubr.f32.gmra.mrb[0].mxu0 %v2504
        %v2695 = vpop.f32.mrb[0].mxu0
        %v2696 = vadd.f32 0.0, %v2695
        %v2697 = vpop.f32.mrb[0].mxu0
        %2698 = vmatprep.mubr.f32.mxu0 0.0
        %2699 = vmatmul.mubr.f32.gmra.mrb[0].mxu0 %v2507
        %v2700 = vpop.f32.mrb[0].mxu0
        %v2701 = vadd.f32 0.0, %v2700
        %v2702 = vpop.f32.mrb[0].mxu0
        %2703 = vmatprep.mubr.f32.mxu0 0.0
        %2704 = vmatmul.mubr.f32.gmra.mrb[0].mxu0 %v2510
        %v2705 = vpop.f32.mrb[0].mxu0
        %v2706 = vadd.f32 0.0, %v2705
        %v2707 = vpop.f32.mrb[0].mxu0
        %2708 = vmatprep.mubr.f32.mxu0 0.0
        %2709 = vmatmul.mubr.f32.gmra.mrb[0].mxu0 %v2513
        %v2710 = vpop.f32.mrb[0].mxu0
        %v2711 = vadd.f32 0.0, %v2710
        %v2712 = vpop.f32.mrb[0].mxu0
        %2713 = vmatprep.mubr.f32.mxu0 0.0
        %2714 = vmatmul.mubr.f32.gmra.mrb[0].mxu0 %v2516
        %v2715 = vpop.f32.mrb[0].mxu0
        %v2716 = vadd.f32 0.0, %v2715
        %v2717 = vpop.f32.mrb[0].mxu0
        %2718 = vmatprep.mubr.f32.mxu0 0.0
        %2719 = vmatmul.mubr.f32.gmra.mrb[0].mxu0 %v2519
        %v2720 = vpop.f32.mrb[0].mxu0
        %v2721 = vadd.f32 0.0, %v2720
        %v2722 = vpop.f32.mrb[0].mxu0
        %2723 = vmatprep.mubr.f32.mxu0 0.0
        %2724 = vmatmul.mubr.f32.gmra.mrb[0].mxu0 %v2522
        %v2725 = vpop.f32.mrb[0].mxu0
        %v2726 = vadd.f32 0.0, %v2725
        %v2727 = vpop.f32.mrb[0].mxu0
        %2728 = vmatprep.mubr.f32.mxu0 0.0
        %2729 = vmatmul.mubr.f32.gmra.mrb[0].mxu0 %v2525
        %v2730 = vpop.f32.mrb[0].mxu0
        %v2731 = vadd.f32 0.0, %v2730
        %v2732 = vpop.f32.mrb[0].mxu0
        %2733 = vmatprep.mubr.f32.mxu0 0.0
        %2734 = vmatmul.mubr.f32.gmra.mrb[0].mxu0 %v2528
        %v2735 = vpop.f32.mrb[0].mxu0
        %v2736 = vadd.f32 0.0, %v2735
        %v2737 = vpop.f32.mrb[0].mxu0
        %2738 = vmatprep.mubr.f32.mxu0 0.0
        %2739 = vmatmul.mubr.f32.gmra.mrb[0].mxu0 %v2531
        %v2740 = vpop.f32.mrb[0].mxu0
        %v2741 = vadd.f32 0.0, %v2740
        %v2742 = vpop.f32.mrb[0].mxu0
        %2743 = vmatprep.mubr.f32.mxu0 0.0
        %2744 = vmatmul.mubr.f32.gmra.mrb[0].mxu0 %v2534
        %v2745 = vpop.f32.mrb[0].mxu0
        %v2746 = vadd.f32 0.0, %v2745
        %v2747 = vpop.f32.mrb[0].mxu0
        %2748 = vmatprep.mubr.f32.mxu0 0.0
        %2749 = vmatmul.mubr.f32.gmra.mrb[0].mxu0 %v2537
        %v2750 = vpop.f32.mrb[0].mxu0
        %v2751 = vadd.f32 0.0, %v2750
        %v2752 = vpop.f32.mrb[0].mxu0
        %2753 = vmatprep.mubr.f32.mxu0 0.0
        %2754 = vmatmul.mubr.f32.gmra.mrb[0].mxu0 %v2540
        %v2755 = vpop.f32.mrb[0].mxu0
        %v2756 = vadd.f32 0.0, %v2755
        %v2757 = vpop.f32.mrb[0].mxu0
        %2758 = vmatprep.mubr.f32.mxu0 0.0
        %2759 = vmatmul.mubr.f32.gmra.mrb[0].mxu0 %v2543
        %v2760 = vpop.f32.mrb[0].mxu0
        %v2761 = vadd.f32 0.0, %v2760
        %v2762 = vpop.f32.mrb[0].mxu0
        %2763 = vmatprep.mubr.f32.mxu0 0.0
        %2764 = vmatmul.mubr.f32.gmra.mrb[0].mxu0 %v2546
        %v2765 = vpop.f32.mrb[0].mxu0
        %v2766 = vadd.f32 0.0, %v2765
        %v2767 = vpop.f32.mrb[0].mxu0
        %2768 = vmatprep.mubr.f32.mxu0 0.0
        %2769 = vmatmul.mubr.f32.gmra.mrb[0].mxu0 %v2549
        %v2770 = vpop.f32.mrb[0].mxu0
        %v2771 = vadd.f32 0.0, %v2770
        %v2772 = vpop.f32.mrb[0].mxu0
        %2773 = vmatprep.mubr.f32.mxu0 0.0
        %2774 = vmatmul.mubr.f32.gmra.mrb[0].mxu0 %v2552
        %v2775 = vpop.f32.mrb[0].mxu0
        %v2776 = vadd.f32 0.0, %v2775
        %v2777 = vpop.f32.mrb[0].mxu0
        %2778 = vdwg.mxu0
        %v2779 = vadd.f32 %v2390, %v2621
        %v2780 = vadd.f32 %v2391, %v2626
        %v2781 = vadd.f32 %v2392, %v2631
        %v2782 = vadd.f32 %v2393, %v2636
        %v2783 = vadd.f32 %v2394, %v2641
        %v2784 = vadd.f32 %v2395, %v2646
        %v2785 = vadd.f32 %v2396, %v2651
        %v2786 = vadd.f32 %v2397, %v2656
        %v2787 = vadd.f32 %v2398, %v2661
        %v2788 = vadd.f32 %v2399, %v2666
        %v2789 = vadd.f32 %v2400, %v2671
        %v2790 = vadd.f32 %v2401, %v2676
        %v2791 = vadd.f32 %v2402, %v2681
        %v2792 = vadd.f32 %v2403, %v2686
        %v2793 = vadd.f32 %v2404, %v2691
        %v2794 = vadd.f32 %v2405, %v2696
        %v2795 = vadd.f32 %v2406, %v2701
        %v2796 = vadd.f32 %v2407, %v2706
        %v2797 = vadd.f32 %v2408, %v2711
        %v2798 = vadd.f32 %v2409, %v2716
        %v2799 = vadd.f32 %v2410, %v2721
        %v2800 = vadd.f32 %v2411, %v2726
        %v2801 = vadd.f32 %v2412, %v2731
        %v2802 = vadd.f32 %v2413, %v2736
        %v2803 = vadd.f32 %v2414, %v2741
        %v2804 = vadd.f32 %v2415, %v2746
        %v2805 = vadd.f32 %v2416, %v2751
        %v2806 = vadd.f32 %v2417, %v2756
        %v2807 = vadd.f32 %v2418, %v2761
        %v2808 = vadd.f32 %v2419, %v2766
        %v2809 = vadd.f32 %v2420, %v2771
        %v2810 = vadd.f32 %v2421, %v2776
        %v2811 = vld [vmem:[%s2422 + $0x1] sm:$0xff]
        %v2812 = vld [vmem:[%s2422 + $0x9] sm:$0xff]
        %v2813 = vld [vmem:[%s2422 + $0x19] sm:$0xff]
        %v2814 = vld [vmem:[%s2422 + $0x21] sm:$0xff]
        %v2815 = vld [vmem:[%s2422 + $0x31] sm:$0xff]
        %v2816 = vld [vmem:[%s2422 + $0x39] sm:$0xff]
        %v2817 = vld [vmem:[%s2422 + $0x49] sm:$0xff]
        %v2818 = vld [vmem:[%s2422 + $0x51] sm:$0xff]
        %v2819 = vld [vmem:[%s2422 + $0x61] sm:$0xff]
        %v2820 = vld [vmem:[%s2422 + $0x69] sm:$0xff]
        %v2821 = vld [vmem:[%s2422 + $0x79] sm:$0xff]
        %v2822 = vld [vmem:[%s2422 + $0x81] sm:$0xff]
        %v2823 = vld [vmem:[%s2422 + $0x91] sm:$0xff]
        %v2824 = vld [vmem:[%s2422 + $0x99] sm:$0xff]
        %v2825 = vld [vmem:[%s2422 + $0xa9] sm:$0xff]
        %v2826 = vld [vmem:[%s2422 + $0xb1] sm:$0xff]
        %v2827 = vld [vmem:[%s2422 + $0xc1] sm:$0xff]
        %v2828 = vld [vmem:[%s2422 + $0xc9] sm:$0xff]
        %v2829 = vld [vmem:[%s2422 + $0xd9] sm:$0xff]
        %v2830 = vld [vmem:[%s2422 + $0xe1] sm:$0xff]
        %v2831 = vld [vmem:[%s2422 + $0xf1] sm:$0xff]
        %v2832 = vld [vmem:[%s2422 + $0xf9] sm:$0xff]
        %v2833 = vld [vmem:[%s2422 + $0x109] sm:$0xff]
        %v2834 = vld [vmem:[%s2422 + $0x111] sm:$0xff]
        %v2835 = vld [vmem:[%s2422 + $0x121] sm:$0xff]
        %v2836 = vld [vmem:[%s2422 + $0x129] sm:$0xff]
        %v2837 = vld [vmem:[%s2422 + $0x139] sm:$0xff]
        %v2838 = vld [vmem:[%s2422 + $0x141] sm:$0xff]
        %v2839 = vld [vmem:[%s2422 + $0x151] sm:$0xff]
        %v2840 = vld [vmem:[%s2422 + $0x159] sm:$0xff]
        %v2841 = vld [vmem:[%s2422 + $0x169] sm:$0xff]
        %v2842 = vld [vmem:[%s2422 + $0x171] sm:$0xff]
        %s2843 = sadd.s32 56, %s188
        %s2844 = scalar_lea.vmem %s1, %s2843
        %v2845 = vld [vmem:[%s2844] sm:$0xff]
        %v2847 = vsel %vm226, %v2811, 0
        %v2850 = vsel %vm226, %v2812, 0
        %v2853 = vsel %vm226, %v2813, 0
        %v2856 = vsel %vm226, %v2814, 0
        %v2859 = vsel %vm226, %v2815, 0
        %v2862 = vsel %vm226, %v2816, 0
        %v2865 = vsel %vm226, %v2817, 0
        %v2868 = vsel %vm226, %v2818, 0
        %v2871 = vsel %vm226, %v2819, 0
        %v2874 = vsel %vm226, %v2820, 0
        %v2877 = vsel %vm226, %v2821, 0
        %v2880 = vsel %vm226, %v2822, 0
        %v2883 = vsel %vm226, %v2823, 0
        %v2886 = vsel %vm226, %v2824, 0
        %v2889 = vsel %vm226, %v2825, 0
        %v2892 = vsel %vm226, %v2826, 0
        %v2895 = vsel %vm226, %v2827, 0
        %v2898 = vsel %vm226, %v2828, 0
        %v2901 = vsel %vm226, %v2829, 0
        %v2904 = vsel %vm226, %v2830, 0
        %v2907 = vsel %vm226, %v2831, 0
        %v2910 = vsel %vm226, %v2832, 0
        %v2913 = vsel %vm226, %v2833, 0
        %v2916 = vsel %vm226, %v2834, 0
        %v2919 = vsel %vm226, %v2835, 0
        %v2922 = vsel %vm226, %v2836, 0
        %v2925 = vsel %vm226, %v2837, 0
        %v2928 = vsel %vm226, %v2838, 0
        %v2931 = vsel %vm226, %v2839, 0
        %v2934 = vsel %vm226, %v2840, 0
        %v2937 = vsel %vm226, %v2841, 0
        %v2940 = vsel %vm226, %v2842, 0
        %2942 = vmatprep.subr.mxu0 0.0
        %2943 = vmatpush1.msra.mxu0 %v2845
        %2944 = vmatprep.subr.mxu0 0.0
        %2945 = vmatpush1.msra.mxu0 0.0
        %2946 = vmatprep.subr.mxu0 0.0
        %2947 = vmatpush1.msra.mxu0 0.0
        %2948 = vmatprep.subr.mxu0 0.0
        %2949 = vmatpush1.msra.mxu0 0.0
        %2950 = vmatprep.subr.mxu0 0.0
        %2951 = vmatpush1.msra.mxu0 0.0
        %2952 = vmatprep.subr.mxu0 0.0
        %2953 = vmatpush1.msra.mxu0 0.0
        %2954 = vmatprep.subr.mxu0 0.0
        %2955 = vmatpush1.msra.mxu0 0.0
        %2956 = vmatprep.subr.mxu0 0.0
        %2957 = vmatpush1.msra.mxu0 0.0
        %2958 = vmatprep.subr.mxu0 0.0
        %2959 = vmatpush1.msra.mxu0 0.0
        %2960 = vmatprep.subr.mxu0 0.0
        %2961 = vmatpush1.msra.mxu0 0.0
        %2962 = vmatprep.subr.mxu0 0.0
        %2963 = vmatpush1.msra.mxu0 0.0
        %2964 = vmatprep.subr.mxu0 0.0
        %2965 = vmatpush1.msra.mxu0 0.0
        %2966 = vmatprep.subr.mxu0 0.0
        %2967 = vmatpush1.msra.mxu0 0.0
        %2968 = vmatprep.subr.mxu0 0.0
        %2969 = vmatpush1.msra.mxu0 0.0
        %2970 = vmatprep.subr.mxu0 0.0
        %2971 = vmatpush1.msra.mxu0 0.0
        %2972 = vmatprep.subr.mxu0 0.0
        %2973 = vmatpush1.msra.mxu0 0.0
        %2974 = vmatprep.subr.mxu0 0.0
        %2975 = vmatpush1.msra.mxu0 0.0
        %2976 = vmatprep.subr.mxu0 0.0
        %2977 = vmatpush1.msra.mxu0 0.0
        %2978 = vmatprep.subr.mxu0 0.0
        %2979 = vmatpush1.msra.mxu0 0.0
        %2980 = vmatprep.subr.mxu0 0.0
        %2981 = vmatpush1.msra.mxu0 0.0
        %2982 = vmatprep.subr.mxu0 0.0
        %2983 = vmatpush1.msra.mxu0 0.0
        %2984 = vmatprep.subr.mxu0 0.0
        %2985 = vmatpush1.msra.mxu0 0.0
        %2986 = vmatprep.subr.mxu0 0.0
        %2987 = vmatpush1.msra.mxu0 0.0
        %2988 = vmatprep.subr.mxu0 0.0
        %2989 = vmatpush1.msra.mxu0 0.0
        %2990 = vmatprep.subr.mxu0 0.0
        %2991 = vmatpush1.msra.mxu0 0.0
        %2992 = vmatprep.subr.mxu0 0.0
        %2993 = vmatpush1.msra.mxu0 0.0
        %2994 = vmatprep.subr.mxu0 0.0
        %2995 = vmatpush1.msra.mxu0 0.0
        %2996 = vmatprep.subr.mxu0 0.0
        %2997 = vmatpush1.msra.mxu0 0.0
        %2998 = vmatprep.subr.mxu0 0.0
        %2999 = vmatpush1.msra.mxu0 0.0
        %3000 = vmatprep.subr.mxu0 0.0
        %3001 = vmatpush1.msra.mxu0 0.0
        %3002 = vmatprep.subr.mxu0 0.0
        %3003 = vmatpush1.msra.mxu0 0.0
        %3004 = vmatprep.subr.mxu0 0.0
        %3005 = vmatpush1.msra.mxu0 0.0
        %3006 = vmatprep.mubr.f32.mxu0 0.0
        %3007 = vmatmul.mubr.f32.gmra.mrb[0].mxu0 %v2847
        %v3008 = vpop.f32.mrb[0].mxu0
        %v3009 = vadd.f32 0.0, %v3008
        %v3010 = vpop.f32.mrb[0].mxu0
        %3011 = vmatprep.mubr.f32.mxu0 0.0
        %3012 = vmatmul.mubr.f32.gmra.mrb[0].mxu0 %v2850
        %v3013 = vpop.f32.mrb[0].mxu0
        %v3014 = vadd.f32 0.0, %v3013
        %v3015 = vpop.f32.mrb[0].mxu0
        %3016 = vmatprep.mubr.f32.mxu0 0.0
        %3017 = vmatmul.mubr.f32.gmra.mrb[0].mxu0 %v2853
        %v3018 = vpop.f32.mrb[0].mxu0
        %v3019 = vadd.f32 0.0, %v3018
        %v3020 = vpop.f32.mrb[0].mxu0
        %3021 = vmatprep.mubr.f32.mxu0 0.0
        %3022 = vmatmul.mubr.f32.gmra.mrb[0].mxu0 %v2856
        %v3023 = vpop.f32.mrb[0].mxu0
        %v3024 = vadd.f32 0.0, %v3023
        %v3025 = vpop.f32.mrb[0].mxu0
        %3026 = vmatprep.mubr.f32.mxu0 0.0
        %3027 = vmatmul.mubr.f32.gmra.mrb[0].mxu0 %v2859
        %v3028 = vpop.f32.mrb[0].mxu0
        %v3029 = vadd.f32 0.0, %v3028
        %v3030 = vpop.f32.mrb[0].mxu0
        %3031 = vmatprep.mubr.f32.mxu0 0.0
        %3032 = vmatmul.mubr.f32.gmra.mrb[0].mxu0 %v2862
        %v3033 = vpop.f32.mrb[0].mxu0
        %v3034 = vadd.f32 0.0, %v3033
        %v3035 = vpop.f32.mrb[0].mxu0
        %3036 = vmatprep.mubr.f32.mxu0 0.0
        %3037 = vmatmul.mubr.f32.gmra.mrb[0].mxu0 %v2865
        %v3038 = vpop.f32.mrb[0].mxu0
        %v3039 = vadd.f32 0.0, %v3038
        %v3040 = vpop.f32.mrb[0].mxu0
        %3041 = vmatprep.mubr.f32.mxu0 0.0
        %3042 = vmatmul.mubr.f32.gmra.mrb[0].mxu0 %v2868
        %v3043 = vpop.f32.mrb[0].mxu0
        %v3044 = vadd.f32 0.0, %v3043
        %v3045 = vpop.f32.mrb[0].mxu0
        %3046 = vmatprep.mubr.f32.mxu0 0.0
        %3047 = vmatmul.mubr.f32.gmra.mrb[0].mxu0 %v2871
        %v3048 = vpop.f32.mrb[0].mxu0
        %v3049 = vadd.f32 0.0, %v3048
        %v3050 = vpop.f32.mrb[0].mxu0
        %3051 = vmatprep.mubr.f32.mxu0 0.0
        %3052 = vmatmul.mubr.f32.gmra.mrb[0].mxu0 %v2874
        %v3053 = vpop.f32.mrb[0].mxu0
        %v3054 = vadd.f32 0.0, %v3053
        %v3055 = vpop.f32.mrb[0].mxu0
        %3056 = vmatprep.mubr.f32.mxu0 0.0
        %3057 = vmatmul.mubr.f32.gmra.mrb[0].mxu0 %v2877
        %v3058 = vpop.f32.mrb[0].mxu0
        %v3059 = vadd.f32 0.0, %v3058
        %v3060 = vpop.f32.mrb[0].mxu0
        %3061 = vmatprep.mubr.f32.mxu0 0.0
        %3062 = vmatmul.mubr.f32.gmra.mrb[0].mxu0 %v2880
        %v3063 = vpop.f32.mrb[0].mxu0
        %v3064 = vadd.f32 0.0, %v3063
        %v3065 = vpop.f32.mrb[0].mxu0
        %3066 = vmatprep.mubr.f32.mxu0 0.0
        %3067 = vmatmul.mubr.f32.gmra.mrb[0].mxu0 %v2883
        %v3068 = vpop.f32.mrb[0].mxu0
        %v3069 = vadd.f32 0.0, %v3068
        %v3070 = vpop.f32.mrb[0].mxu0
        %3071 = vmatprep.mubr.f32.mxu0 0.0
        %3072 = vmatmul.mubr.f32.gmra.mrb[0].mxu0 %v2886
        %v3073 = vpop.f32.mrb[0].mxu0
        %v3074 = vadd.f32 0.0, %v3073
        %v3075 = vpop.f32.mrb[0].mxu0
        %3076 = vmatprep.mubr.f32.mxu0 0.0
        %3077 = vmatmul.mubr.f32.gmra.mrb[0].mxu0 %v2889
        %v3078 = vpop.f32.mrb[0].mxu0
        %v3079 = vadd.f32 0.0, %v3078
        %v3080 = vpop.f32.mrb[0].mxu0
        %3081 = vmatprep.mubr.f32.mxu0 0.0
        %3082 = vmatmul.mubr.f32.gmra.mrb[0].mxu0 %v2892
        %v3083 = vpop.f32.mrb[0].mxu0
        %v3084 = vadd.f32 0.0, %v3083
        %v3085 = vpop.f32.mrb[0].mxu0
        %3086 = vmatprep.mubr.f32.mxu0 0.0
        %3087 = vmatmul.mubr.f32.gmra.mrb[0].mxu0 %v2895
        %v3088 = vpop.f32.mrb[0].mxu0
        %v3089 = vadd.f32 0.0, %v3088
        %v3090 = vpop.f32.mrb[0].mxu0
        %3091 = vmatprep.mubr.f32.mxu0 0.0
        %3092 = vmatmul.mubr.f32.gmra.mrb[0].mxu0 %v2898
        %v3093 = vpop.f32.mrb[0].mxu0
        %v3094 = vadd.f32 0.0, %v3093
        %v3095 = vpop.f32.mrb[0].mxu0
        %3096 = vmatprep.mubr.f32.mxu0 0.0
        %3097 = vmatmul.mubr.f32.gmra.mrb[0].mxu0 %v2901
        %v3098 = vpop.f32.mrb[0].mxu0
        %v3099 = vadd.f32 0.0, %v3098
        %v3100 = vpop.f32.mrb[0].mxu0
        %3101 = vmatprep.mubr.f32.mxu0 0.0
        %3102 = vmatmul.mubr.f32.gmra.mrb[0].mxu0 %v2904
        %v3103 = vpop.f32.mrb[0].mxu0
        %v3104 = vadd.f32 0.0, %v3103
        %v3105 = vpop.f32.mrb[0].mxu0
        %3106 = vmatprep.mubr.f32.mxu0 0.0
        %3107 = vmatmul.mubr.f32.gmra.mrb[0].mxu0 %v2907
        %v3108 = vpop.f32.mrb[0].mxu0
        %v3109 = vadd.f32 0.0, %v3108
        %v3110 = vpop.f32.mrb[0].mxu0
        %3111 = vmatprep.mubr.f32.mxu0 0.0
        %3112 = vmatmul.mubr.f32.gmra.mrb[0].mxu0 %v2910
        %v3113 = vpop.f32.mrb[0].mxu0
        %v3114 = vadd.f32 0.0, %v3113
        %v3115 = vpop.f32.mrb[0].mxu0
        %3116 = vmatprep.mubr.f32.mxu0 0.0
        %3117 = vmatmul.mubr.f32.gmra.mrb[0].mxu0 %v2913
        %v3118 = vpop.f32.mrb[0].mxu0
        %v3119 = vadd.f32 0.0, %v3118
        %v3120 = vpop.f32.mrb[0].mxu0
        %3121 = vmatprep.mubr.f32.mxu0 0.0
        %3122 = vmatmul.mubr.f32.gmra.mrb[0].mxu0 %v2916
        %v3123 = vpop.f32.mrb[0].mxu0
        %v3124 = vadd.f32 0.0, %v3123
        %v3125 = vpop.f32.mrb[0].mxu0
        %3126 = vmatprep.mubr.f32.mxu0 0.0
        %3127 = vmatmul.mubr.f32.gmra.mrb[0].mxu0 %v2919
        %v3128 = vpop.f32.mrb[0].mxu0
        %v3129 = vadd.f32 0.0, %v3128
        %v3130 = vpop.f32.mrb[0].mxu0
        %3131 = vmatprep.mubr.f32.mxu0 0.0
        %3132 = vmatmul.mubr.f32.gmra.mrb[0].mxu0 %v2922
        %v3133 = vpop.f32.mrb[0].mxu0
        %v3134 = vadd.f32 0.0, %v3133
        %v3135 = vpop.f32.mrb[0].mxu0
        %3136 = vmatprep.mubr.f32.mxu0 0.0
        %3137 = vmatmul.mubr.f32.gmra.mrb[0].mxu0 %v2925
        %v3138 = vpop.f32.mrb[0].mxu0
        %v3139 = vadd.f32 0.0, %v3138
        %v3140 = vpop.f32.mrb[0].mxu0
        %3141 = vmatprep.mubr.f32.mxu0 0.0
        %3142 = vmatmul.mubr.f32.gmra.mrb[0].mxu0 %v2928
        %v3143 = vpop.f32.mrb[0].mxu0
        %v3144 = vadd.f32 0.0, %v3143
        %v3145 = vpop.f32.mrb[0].mxu0
        %3146 = vmatprep.mubr.f32.mxu0 0.0
        %3147 = vmatmul.mubr.f32.gmra.mrb[0].mxu0 %v2931
        %v3148 = vpop.f32.mrb[0].mxu0
        %v3149 = vadd.f32 0.0, %v3148
        %v3150 = vpop.f32.mrb[0].mxu0
        %3151 = vmatprep.mubr.f32.mxu0 0.0
        %3152 = vmatmul.mubr.f32.gmra.mrb[0].mxu0 %v2934
        %v3153 = vpop.f32.mrb[0].mxu0
        %v3154 = vadd.f32 0.0, %v3153
        %v3155 = vpop.f32.mrb[0].mxu0
        %3156 = vmatprep.mubr.f32.mxu0 0.0
        %3157 = vmatmul.mubr.f32.gmra.mrb[0].mxu0 %v2937
        %v3158 = vpop.f32.mrb[0].mxu0
        %v3159 = vadd.f32 0.0, %v3158
        %v3160 = vpop.f32.mrb[0].mxu0
        %3161 = vmatprep.mubr.f32.mxu0 0.0
        %3162 = vmatmul.mubr.f32.gmra.mrb[0].mxu0 %v2940
        %v3163 = vpop.f32.mrb[0].mxu0
        %v3164 = vadd.f32 0.0, %v3163
        %v3165 = vpop.f32.mrb[0].mxu0
        %3166 = vdwg.mxu0
        %v3167 = vadd.f32 %v2779, %v3009
        %v3168 = vadd.f32 %v2780, %v3014
        %v3169 = vadd.f32 %v2781, %v3019
        %v3170 = vadd.f32 %v2782, %v3024
        %v3171 = vadd.f32 %v2783, %v3029
        %v3172 = vadd.f32 %v2784, %v3034
        %v3173 = vadd.f32 %v2785, %v3039
        %v3174 = vadd.f32 %v2786, %v3044
        %v3175 = vadd.f32 %v2787, %v3049
        %v3176 = vadd.f32 %v2788, %v3054
        %v3177 = vadd.f32 %v2789, %v3059
        %v3178 = vadd.f32 %v2790, %v3064
        %v3179 = vadd.f32 %v2791, %v3069
        %v3180 = vadd.f32 %v2792, %v3074
        %v3181 = vadd.f32 %v2793, %v3079
        %v3182 = vadd.f32 %v2794, %v3084
        %v3183 = vadd.f32 %v2795, %v3089
        %v3184 = vadd.f32 %v2796, %v3094
        %v3185 = vadd.f32 %v2797, %v3099
        %v3186 = vadd.f32 %v2798, %v3104
        %v3187 = vadd.f32 %v2799, %v3109
        %v3188 = vadd.f32 %v2800, %v3114
        %v3189 = vadd.f32 %v2801, %v3119
        %v3190 = vadd.f32 %v2802, %v3124
        %v3191 = vadd.f32 %v2803, %v3129
        %v3192 = vadd.f32 %v2804, %v3134
        %v3193 = vadd.f32 %v2805, %v3139
        %v3194 = vadd.f32 %v2806, %v3144
        %v3195 = vadd.f32 %v2807, %v3149
        %v3196 = vadd.f32 %v2808, %v3154
        %v3197 = vadd.f32 %v2809, %v3159
        %v3198 = vadd.f32 %v2810, %v3164
        %v3199 = vld [vmem:[%s2422 + $0x2] sm:$0xff]
        %v3200 = vld [vmem:[%s2422 + $0xa] sm:$0xff]
        %v3201 = vld [vmem:[%s2422 + $0x1a] sm:$0xff]
        %v3202 = vld [vmem:[%s2422 + $0x22] sm:$0xff]
        %v3203 = vld [vmem:[%s2422 + $0x32] sm:$0xff]
        %v3204 = vld [vmem:[%s2422 + $0x3a] sm:$0xff]
        %v3205 = vld [vmem:[%s2422 + $0x4a] sm:$0xff]
        %v3206 = vld [vmem:[%s2422 + $0x52] sm:$0xff]
        %v3207 = vld [vmem:[%s2422 + $0x62] sm:$0xff]
        %v3208 = vld [vmem:[%s2422 + $0x6a] sm:$0xff]
        %v3209 = vld [vmem:[%s2422 + $0x7a] sm:$0xff]
        %v3210 = vld [vmem:[%s2422 + $0x82] sm:$0xff]
        %v3211 = vld [vmem:[%s2422 + $0x92] sm:$0xff]
        %v3212 = vld [vmem:[%s2422 + $0x9a] sm:$0xff]
        %v3213 = vld [vmem:[%s2422 + $0xaa] sm:$0xff]
        %v3214 = vld [vmem:[%s2422 + $0xb2] sm:$0xff]
        %v3215 = vld [vmem:[%s2422 + $0xc2] sm:$0xff]
        %v3216 = vld [vmem:[%s2422 + $0xca] sm:$0xff]
        %v3217 = vld [vmem:[%s2422 + $0xda] sm:$0xff]
        %v3218 = vld [vmem:[%s2422 + $0xe2] sm:$0xff]
        %v3219 = vld [vmem:[%s2422 + $0xf2] sm:$0xff]
        %v3220 = vld [vmem:[%s2422 + $0xfa] sm:$0xff]
        %v3221 = vld [vmem:[%s2422 + $0x10a] sm:$0xff]
        %v3222 = vld [vmem:[%s2422 + $0x112] sm:$0xff]
        %v3223 = vld [vmem:[%s2422 + $0x122] sm:$0xff]
        %v3224 = vld [vmem:[%s2422 + $0x12a] sm:$0xff]
        %v3225 = vld [vmem:[%s2422 + $0x13a] sm:$0xff]
        %v3226 = vld [vmem:[%s2422 + $0x142] sm:$0xff]
        %v3227 = vld [vmem:[%s2422 + $0x152] sm:$0xff]
        %v3228 = vld [vmem:[%s2422 + $0x15a] sm:$0xff]
        %v3229 = vld [vmem:[%s2422 + $0x16a] sm:$0xff]
        %v3230 = vld [vmem:[%s2422 + $0x172] sm:$0xff]
        %s3231 = sadd.s32 64, %s188
        %s3232 = scalar_lea.vmem %s1, %s3231
        %v3233 = vld [vmem:[%s3232] sm:$0xff]
        %v3235 = vsel %vm226, %v3199, 0
        %v3238 = vsel %vm226, %v3200, 0
        %v3241 = vsel %vm226, %v3201, 0
        %v3244 = vsel %vm226, %v3202, 0
        %v3247 = vsel %vm226, %v3203, 0
        %v3250 = vsel %vm226, %v3204, 0
        %v3253 = vsel %vm226, %v3205, 0
        %v3256 = vsel %vm226, %v3206, 0
        %v3259 = vsel %vm226, %v3207, 0
        %v3262 = vsel %vm226, %v3208, 0
        %v3265 = vsel %vm226, %v3209, 0
        %v3268 = vsel %vm226, %v3210, 0
        %v3271 = vsel %vm226, %v3211, 0
        %v3274 = vsel %vm226, %v3212, 0
        %v3277 = vsel %vm226, %v3213, 0
        %v3280 = vsel %vm226, %v3214, 0
        %v3283 = vsel %vm226, %v3215, 0
        %v3286 = vsel %vm226, %v3216, 0
        %v3289 = vsel %vm226, %v3217, 0
        %v3292 = vsel %vm226, %v3218, 0
        %v3295 = vsel %vm226, %v3219, 0
        %v3298 = vsel %vm226, %v3220, 0
        %v3301 = vsel %vm226, %v3221, 0
        %v3304 = vsel %vm226, %v3222, 0
        %v3307 = vsel %vm226, %v3223, 0
        %v3310 = vsel %vm226, %v3224, 0
        %v3313 = vsel %vm226, %v3225, 0
        %v3316 = vsel %vm226, %v3226, 0
        %v3319 = vsel %vm226, %v3227, 0
        %v3322 = vsel %vm226, %v3228, 0
        %v3325 = vsel %vm226, %v3229, 0
        %v3328 = vsel %vm226, %v3230, 0
        %3330 = vmatprep.subr.mxu0 0.0
        %3331 = vmatpush1.msra.mxu0 %v3233
        %3332 = vmatprep.subr.mxu0 0.0
        %3333 = vmatpush1.msra.mxu0 0.0
        %3334 = vmatprep.subr.mxu0 0.0
        %3335 = vmatpush1.msra.mxu0 0.0
        %3336 = vmatprep.subr.mxu0 0.0
        %3337 = vmatpush1.msra.mxu0 0.0
        %3338 = vmatprep.subr.mxu0 0.0
        %3339 = vmatpush1.msra.mxu0 0.0
        %3340 = vmatprep.subr.mxu0 0.0
        %3341 = vmatpush1.msra.mxu0 0.0
        %3342 = vmatprep.subr.mxu0 0.0
        %3343 = vmatpush1.msra.mxu0 0.0
        %3344 = vmatprep.subr.mxu0 0.0
        %3345 = vmatpush1.msra.mxu0 0.0
        %3346 = vmatprep.subr.mxu0 0.0
        %3347 = vmatpush1.msra.mxu0 0.0
        %3348 = vmatprep.subr.mxu0 0.0
        %3349 = vmatpush1.msra.mxu0 0.0
        %3350 = vmatprep.subr.mxu0 0.0
        %3351 = vmatpush1.msra.mxu0 0.0
        %3352 = vmatprep.subr.mxu0 0.0
        %3353 = vmatpush1.msra.mxu0 0.0
        %3354 = vmatprep.subr.mxu0 0.0
        %3355 = vmatpush1.msra.mxu0 0.0
        %3356 = vmatprep.subr.mxu0 0.0
        %3357 = vmatpush1.msra.mxu0 0.0
        %3358 = vmatprep.subr.mxu0 0.0
        %3359 = vmatpush1.msra.mxu0 0.0
        %3360 = vmatprep.subr.mxu0 0.0
        %3361 = vmatpush1.msra.mxu0 0.0
        %3362 = vmatprep.subr.mxu0 0.0
        %3363 = vmatpush1.msra.mxu0 0.0
        %3364 = vmatprep.subr.mxu0 0.0
        %3365 = vmatpush1.msra.mxu0 0.0
        %3366 = vmatprep.subr.mxu0 0.0
        %3367 = vmatpush1.msra.mxu0 0.0
        %3368 = vmatprep.subr.mxu0 0.0
        %3369 = vmatpush1.msra.mxu0 0.0
        %3370 = vmatprep.subr.mxu0 0.0
        %3371 = vmatpush1.msra.mxu0 0.0
        %3372 = vmatprep.subr.mxu0 0.0
        %3373 = vmatpush1.msra.mxu0 0.0
        %3374 = vmatprep.subr.mxu0 0.0
        %3375 = vmatpush1.msra.mxu0 0.0
        %3376 = vmatprep.subr.mxu0 0.0
        %3377 = vmatpush1.msra.mxu0 0.0
        %3378 = vmatprep.subr.mxu0 0.0
        %3379 = vmatpush1.msra.mxu0 0.0
        %3380 = vmatprep.subr.mxu0 0.0
        %3381 = vmatpush1.msra.mxu0 0.0
        %3382 = vmatprep.subr.mxu0 0.0
        %3383 = vmatpush1.msra.mxu0 0.0
        %3384 = vmatprep.subr.mxu0 0.0
        %3385 = vmatpush1.msra.mxu0 0.0
        %3386 = vmatprep.subr.mxu0 0.0
        %3387 = vmatpush1.msra.mxu0 0.0
        %3388 = vmatprep.subr.mxu0 0.0
        %3389 = vmatpush1.msra.mxu0 0.0
        %3390 = vmatprep.subr.mxu0 0.0
        %3391 = vmatpush1.msra.mxu0 0.0
        %3392 = vmatprep.subr.mxu0 0.0
        %3393 = vmatpush1.msra.mxu0 0.0
        %3394 = vmatprep.mubr.f32.mxu0 0.0
        %3395 = vmatmul.mubr.f32.gmra.mrb[0].mxu0 %v3235
        %v3396 = vpop.f32.mrb[0].mxu0
        %v3397 = vadd.f32 0.0, %v3396
        %v3398 = vpop.f32.mrb[0].mxu0
        %3399 = vmatprep.mubr.f32.mxu0 0.0
        %3400 = vmatmul.mubr.f32.gmra.mrb[0].mxu0 %v3238
        %v3401 = vpop.f32.mrb[0].mxu0
        %v3402 = vadd.f32 0.0, %v3401
        %v3403 = vpop.f32.mrb[0].mxu0
        %3404 = vmatprep.mubr.f32.mxu0 0.0
        %3405 = vmatmul.mubr.f32.gmra.mrb[0].mxu0 %v3241
        %v3406 = vpop.f32.mrb[0].mxu0
        %v3407 = vadd.f32 0.0, %v3406
        %v3408 = vpop.f32.mrb[0].mxu0
        %3409 = vmatprep.mubr.f32.mxu0 0.0
        %3410 = vmatmul.mubr.f32.gmra.mrb[0].mxu0 %v3244
        %v3411 = vpop.f32.mrb[0].mxu0
        %v3412 = vadd.f32 0.0, %v3411
        %v3413 = vpop.f32.mrb[0].mxu0
        %3414 = vmatprep.mubr.f32.mxu0 0.0
        %3415 = vmatmul.mubr.f32.gmra.mrb[0].mxu0 %v3247
        %v3416 = vpop.f32.mrb[0].mxu0
        %v3417 = vadd.f32 0.0, %v3416
        %v3418 = vpop.f32.mrb[0].mxu0
        %3419 = vmatprep.mubr.f32.mxu0 0.0
        %3420 = vmatmul.mubr.f32.gmra.mrb[0].mxu0 %v3250
        %v3421 = vpop.f32.mrb[0].mxu0
        %v3422 = vadd.f32 0.0, %v3421
        %v3423 = vpop.f32.mrb[0].mxu0
        %3424 = vmatprep.mubr.f32.mxu0 0.0
        %3425 = vmatmul.mubr.f32.gmra.mrb[0].mxu0 %v3253
        %v3426 = vpop.f32.mrb[0].mxu0
        %v3427 = vadd.f32 0.0, %v3426
        %v3428 = vpop.f32.mrb[0].mxu0
        %3429 = vmatprep.mubr.f32.mxu0 0.0
        %3430 = vmatmul.mubr.f32.gmra.mrb[0].mxu0 %v3256
        %v3431 = vpop.f32.mrb[0].mxu0
        %v3432 = vadd.f32 0.0, %v3431
        %v3433 = vpop.f32.mrb[0].mxu0
        %3434 = vmatprep.mubr.f32.mxu0 0.0
        %3435 = vmatmul.mubr.f32.gmra.mrb[0].mxu0 %v3259
        %v3436 = vpop.f32.mrb[0].mxu0
        %v3437 = vadd.f32 0.0, %v3436
        %v3438 = vpop.f32.mrb[0].mxu0
        %3439 = vmatprep.mubr.f32.mxu0 0.0
        %3440 = vmatmul.mubr.f32.gmra.mrb[0].mxu0 %v3262
        %v3441 = vpop.f32.mrb[0].mxu0
        %v3442 = vadd.f32 0.0, %v3441
        %v3443 = vpop.f32.mrb[0].mxu0
        %3444 = vmatprep.mubr.f32.mxu0 0.0
        %3445 = vmatmul.mubr.f32.gmra.mrb[0].mxu0 %v3265
        %v3446 = vpop.f32.mrb[0].mxu0
        %v3447 = vadd.f32 0.0, %v3446
        %v3448 = vpop.f32.mrb[0].mxu0
        %3449 = vmatprep.mubr.f32.mxu0 0.0
        %3450 = vmatmul.mubr.f32.gmra.mrb[0].mxu0 %v3268
        %v3451 = vpop.f32.mrb[0].mxu0
        %v3452 = vadd.f32 0.0, %v3451
        %v3453 = vpop.f32.mrb[0].mxu0
        %3454 = vmatprep.mubr.f32.mxu0 0.0
        %3455 = vmatmul.mubr.f32.gmra.mrb[0].mxu0 %v3271
        %v3456 = vpop.f32.mrb[0].mxu0
        %v3457 = vadd.f32 0.0, %v3456
        %v3458 = vpop.f32.mrb[0].mxu0
        %3459 = vmatprep.mubr.f32.mxu0 0.0
        %3460 = vmatmul.mubr.f32.gmra.mrb[0].mxu0 %v3274
        %v3461 = vpop.f32.mrb[0].mxu0
        %v3462 = vadd.f32 0.0, %v3461
        %v3463 = vpop.f32.mrb[0].mxu0
        %3464 = vmatprep.mubr.f32.mxu0 0.0
        %3465 = vmatmul.mubr.f32.gmra.mrb[0].mxu0 %v3277
        %v3466 = vpop.f32.mrb[0].mxu0
        %v3467 = vadd.f32 0.0, %v3466
        %v3468 = vpop.f32.mrb[0].mxu0
        %3469 = vmatprep.mubr.f32.mxu0 0.0
        %3470 = vmatmul.mubr.f32.gmra.mrb[0].mxu0 %v3280
        %v3471 = vpop.f32.mrb[0].mxu0
        %v3472 = vadd.f32 0.0, %v3471
        %v3473 = vpop.f32.mrb[0].mxu0
        %3474 = vmatprep.mubr.f32.mxu0 0.0
        %3475 = vmatmul.mubr.f32.gmra.mrb[0].mxu0 %v3283
        %v3476 = vpop.f32.mrb[0].mxu0
        %v3477 = vadd.f32 0.0, %v3476
        %v3478 = vpop.f32.mrb[0].mxu0
        %3479 = vmatprep.mubr.f32.mxu0 0.0
        %3480 = vmatmul.mubr.f32.gmra.mrb[0].mxu0 %v3286
        %v3481 = vpop.f32.mrb[0].mxu0
        %v3482 = vadd.f32 0.0, %v3481
        %v3483 = vpop.f32.mrb[0].mxu0
        %3484 = vmatprep.mubr.f32.mxu0 0.0
        %3485 = vmatmul.mubr.f32.gmra.mrb[0].mxu0 %v3289
        %v3486 = vpop.f32.mrb[0].mxu0
        %v3487 = vadd.f32 0.0, %v3486
        %v3488 = vpop.f32.mrb[0].mxu0
        %3489 = vmatprep.mubr.f32.mxu0 0.0
        %3490 = vmatmul.mubr.f32.gmra.mrb[0].mxu0 %v3292
        %v3491 = vpop.f32.mrb[0].mxu0
        %v3492 = vadd.f32 0.0, %v3491
        %v3493 = vpop.f32.mrb[0].mxu0
        %3494 = vmatprep.mubr.f32.mxu0 0.0
        %3495 = vmatmul.mubr.f32.gmra.mrb[0].mxu0 %v3295
        %v3496 = vpop.f32.mrb[0].mxu0
        %v3497 = vadd.f32 0.0, %v3496
        %v3498 = vpop.f32.mrb[0].mxu0
        %3499 = vmatprep.mubr.f32.mxu0 0.0
        %3500 = vmatmul.mubr.f32.gmra.mrb[0].mxu0 %v3298
        %v3501 = vpop.f32.mrb[0].mxu0
        %v3502 = vadd.f32 0.0, %v3501
        %v3503 = vpop.f32.mrb[0].mxu0
        %3504 = vmatprep.mubr.f32.mxu0 0.0
        %3505 = vmatmul.mubr.f32.gmra.mrb[0].mxu0 %v3301
        %v3506 = vpop.f32.mrb[0].mxu0
        %v3507 = vadd.f32 0.0, %v3506
        %v3508 = vpop.f32.mrb[0].mxu0
        %3509 = vmatprep.mubr.f32.mxu0 0.0
        %3510 = vmatmul.mubr.f32.gmra.mrb[0].mxu0 %v3304
        %v3511 = vpop.f32.mrb[0].mxu0
        %v3512 = vadd.f32 0.0, %v3511
        %v3513 = vpop.f32.mrb[0].mxu0
        %3514 = vmatprep.mubr.f32.mxu0 0.0
        %3515 = vmatmul.mubr.f32.gmra.mrb[0].mxu0 %v3307
        %v3516 = vpop.f32.mrb[0].mxu0
        %v3517 = vadd.f32 0.0, %v3516
        %v3518 = vpop.f32.mrb[0].mxu0
        %3519 = vmatprep.mubr.f32.mxu0 0.0
        %3520 = vmatmul.mubr.f32.gmra.mrb[0].mxu0 %v3310
        %v3521 = vpop.f32.mrb[0].mxu0
        %v3522 = vadd.f32 0.0, %v3521
        %v3523 = vpop.f32.mrb[0].mxu0
        %3524 = vmatprep.mubr.f32.mxu0 0.0
        %3525 = vmatmul.mubr.f32.gmra.mrb[0].mxu0 %v3313
        %v3526 = vpop.f32.mrb[0].mxu0
        %v3527 = vadd.f32 0.0, %v3526
        %v3528 = vpop.f32.mrb[0].mxu0
        %3529 = vmatprep.mubr.f32.mxu0 0.0
        %3530 = vmatmul.mubr.f32.gmra.mrb[0].mxu0 %v3316
        %v3531 = vpop.f32.mrb[0].mxu0
        %v3532 = vadd.f32 0.0, %v3531
        %v3533 = vpop.f32.mrb[0].mxu0
        %3534 = vmatprep.mubr.f32.mxu0 0.0
        %3535 = vmatmul.mubr.f32.gmra.mrb[0].mxu0 %v3319
        %v3536 = vpop.f32.mrb[0].mxu0
        %v3537 = vadd.f32 0.0, %v3536
        %v3538 = vpop.f32.mrb[0].mxu0
        %3539 = vmatprep.mubr.f32.mxu0 0.0
        %3540 = vmatmul.mubr.f32.gmra.mrb[0].mxu0 %v3322
        %v3541 = vpop.f32.mrb[0].mxu0
        %v3542 = vadd.f32 0.0, %v3541
        %v3543 = vpop.f32.mrb[0].mxu0
        %3544 = vmatprep.mubr.f32.mxu0 0.0
        %3545 = vmatmul.mubr.f32.gmra.mrb[0].mxu0 %v3325
        %v3546 = vpop.f32.mrb[0].mxu0
        %v3547 = vadd.f32 0.0, %v3546
        %v3548 = vpop.f32.mrb[0].mxu0
        %3549 = vmatprep.mubr.f32.mxu0 0.0
        %3550 = vmatmul.mubr.f32.gmra.mrb[0].mxu0 %v3328
        %v3551 = vpop.f32.mrb[0].mxu0
        %v3552 = vadd.f32 0.0, %v3551
        %v3553 = vpop.f32.mrb[0].mxu0
        %3554 = vdwg.mxu0
        %v3555 = vadd.f32 %v3167, %v3397
        %v3556 = vadd.f32 %v3168, %v3402
        %v3557 = vadd.f32 %v3169, %v3407
        %v3558 = vadd.f32 %v3170, %v3412
        %v3559 = vadd.f32 %v3171, %v3417
        %v3560 = vadd.f32 %v3172, %v3422
        %v3561 = vadd.f32 %v3173, %v3427
        %v3562 = vadd.f32 %v3174, %v3432
        %v3563 = vadd.f32 %v3175, %v3437
        %v3564 = vadd.f32 %v3176, %v3442
        %v3565 = vadd.f32 %v3177, %v3447
        %v3566 = vadd.f32 %v3178, %v3452
        %v3567 = vadd.f32 %v3179, %v3457
        %v3568 = vadd.f32 %v3180, %v3462
        %v3569 = vadd.f32 %v3181, %v3467
        %v3570 = vadd.f32 %v3182, %v3472
        %v3571 = vadd.f32 %v3183, %v3477
        %v3572 = vadd.f32 %v3184, %v3482
        %v3573 = vadd.f32 %v3185, %v3487
        %v3574 = vadd.f32 %v3186, %v3492
        %v3575 = vadd.f32 %v3187, %v3497
        %v3576 = vadd.f32 %v3188, %v3502
        %v3577 = vadd.f32 %v3189, %v3507
        %v3578 = vadd.f32 %v3190, %v3512
        %v3579 = vadd.f32 %v3191, %v3517
        %v3580 = vadd.f32 %v3192, %v3522
        %v3581 = vadd.f32 %v3193, %v3527
        %v3582 = vadd.f32 %v3194, %v3532
        %v3583 = vadd.f32 %v3195, %v3537
        %v3584 = vadd.f32 %v3196, %v3542
        %v3585 = vadd.f32 %v3197, %v3547
        %v3586 = vadd.f32 %v3198, %v3552
        %3587 = vst [vmem:[%s150] sm:$0xff] %v3555
        %3588 = vst [vmem:[%s150 + $0x8] sm:$0xff] %v3556
        %3589 = vst [vmem:[%s150 + $0x10] sm:$0xff] %v3557
        %3590 = vst [vmem:[%s150 + $0x18] sm:$0xff] %v3558
        %3591 = vst [vmem:[%s150 + $0x20] sm:$0xff] %v3559
        %3592 = vst [vmem:[%s150 + $0x28] sm:$0xff] %v3560
        %3593 = vst [vmem:[%s150 + $0x30] sm:$0xff] %v3561
        %3594 = vst [vmem:[%s150 + $0x38] sm:$0xff] %v3562
        %3595 = vst [vmem:[%s150 + $0x40] sm:$0xff] %v3563
        %3596 = vst [vmem:[%s150 + $0x48] sm:$0xff] %v3564
        %3597 = vst [vmem:[%s150 + $0x50] sm:$0xff] %v3565
        %3598 = vst [vmem:[%s150 + $0x58] sm:$0xff] %v3566
        %3599 = vst [vmem:[%s150 + $0x60] sm:$0xff] %v3567
        %3600 = vst [vmem:[%s150 + $0x68] sm:$0xff] %v3568
        %3601 = vst [vmem:[%s150 + $0x70] sm:$0xff] %v3569
        %3602 = vst [vmem:[%s150 + $0x78] sm:$0xff] %v3570
        %3603 = vst [vmem:[%s150 + $0x80] sm:$0xff] %v3571
        %3604 = vst [vmem:[%s150 + $0x88] sm:$0xff] %v3572
        %3605 = vst [vmem:[%s150 + $0x90] sm:$0xff] %v3573
        %3606 = vst [vmem:[%s150 + $0x98] sm:$0xff] %v3574
        %3607 = vst [vmem:[%s150 + $0xa0] sm:$0xff] %v3575
        %3608 = vst [vmem:[%s150 + $0xa8] sm:$0xff] %v3576
        %3609 = vst [vmem:[%s150 + $0xb0] sm:$0xff] %v3577
        %3610 = vst [vmem:[%s150 + $0xb8] sm:$0xff] %v3578
        %3611 = vst [vmem:[%s150 + $0xc0] sm:$0xff] %v3579
        %3612 = vst [vmem:[%s150 + $0xc8] sm:$0xff] %v3580
        %3613 = vst [vmem:[%s150 + $0xd0] sm:$0xff] %v3581
        %3614 = vst [vmem:[%s150 + $0xd8] sm:$0xff] %v3582
        %3615 = vst [vmem:[%s150 + $0xe0] sm:$0xff] %v3583
        %3616 = vst [vmem:[%s150 + $0xe8] sm:$0xff] %v3584
        %3617 = vst [vmem:[%s150 + $0xf0] sm:$0xff] %v3585
        %3618 = vst [vmem:[%s150 + $0xf8] sm:$0xff] %v3586
        %s3619 = sand.u32 %s85, 1
        %s3620 = scalar_lea.sflag [#allocation3], %s3619
        %s3621 = sand.u32 %s85, 1
        %s3622 = smul.addr %s3621, 256
        %s3623 = scalar_lea.vmem [#allocation2], %s3622
        // Predicated region
        $region29: #{tpu_custom_call.1} parent=27 // pred_check
          %p3624 = pneg %p95
        $region30: #{tpu_custom_call.1} parent=27 // pred_check_branch
          %3626 = sbr.rel (%p3624) target = $region32
        $region31: #{tpu_custom_call.1} parent=27 // pred_region
          %s3628 = ssub.s32 4096, 4096
          %3629 = vsyncadd %s3620, %s3628
          %s3630 = smul.addr %s20, 32
          %s3631 = sadd.s32 %s21, %s3630
          %s3632 = smul.addr %s3631, 128
          %s3633 = scalar_lea.hbm %s2, %s3632
          %s3634 = sshll.u32 %s3623, 4
          %s3635 = int_to_ptr.vmem [resolvable:$true] %s3634
          %3640 = dma.vmem_to_hbm [thread:$0]  %s3635, 4096, %s3633, %s3620, 128, 128, 8
        $region32: #{tpu_custom_call.1} parent=27 // pred_fallthru
          _
      $region28: #{tpu_custom_call.1} parent=5 // pred_fallthru
        _
      %p3641 = scmp.le.s32.totalorder 2, %s11
      // Predicated region
      $region33: #{tpu_custom_call.1} parent=5 // pred_check
        %p3642 = pneg %p3641
      $region34: #{tpu_custom_call.1} parent=5 // pred_check_branch
        %3644 = sbr.rel (%p3642) target = $region36
      $region35: #{tpu_custom_call.1} parent=5 // pred_region
        %s3645 = ssub.s32 %s11, 2
        // Predicated region
        $region37: #{tpu_custom_call.1} parent=35 // pred_check
          %p3646 = pneg %p101
        $region38: #{tpu_custom_call.1} parent=35 // pred_check_branch
          %3648 = sbr.rel (%p3646) target = $region40
        $region39: #{tpu_custom_call.1} parent=35 // pred_region
          %s3649 = sand.u32 %s86, 1
          %s3650 = scalar_lea.sflag [#allocation3], %s3649
          %s3651 = sand.u32 %s86, 1
          %s3652 = smul.addr %s3651, 256
          %s3653 = scalar_lea.vmem [#allocation2], %s3652
          %3654 = dma.done %s3650, 4096
        $region40: #{tpu_custom_call.1} parent=35 // pred_fallthru
          _
      $region36: #{tpu_custom_call.1} parent=5 // pred_fallthru
        _
    $region6: #{tpu_custom_call.1} parent=1 // loop_footer
      %s15 = sadd.s32 1, %s11
    $region7: #{tpu_custom_call.1} parent=1 // loop_footer_branch
      %10 = sbr.rel target = $region3
    $region8: #{tpu_custom_call.1} parent=1 // loop_exit
      _
    %3655 = vsyncpa [#allocation3], 1
    %s3656 = scalar_lea.sflag [#allocation3], 1
    %3657 = vsyncpa %s3656, 1

</llo_original>
